<compile_context>
chip_gen: v7x
topology: tpu7x:2x2x1
jax: 0.10.0
libtpu: 0.0.40
codegen_flags: <defaults>
</compile_context>

<pallas_src>
import jax
import jax.numpy as jnp
from jax.experimental import pallas as pl
from jax.experimental.pallas import tpu as pltpu

# Module-consistent sizes (RNNEx3.py: embedding_size=70, hidden_size=100;
# vocab/output sized down for a synthetic test).
INPUT_SIZE = 32       # vocab size (input_size == output_size in the char-RNN usage)
EMBED_SIZE = 70
HIDDEN_SIZE = 100
OUTPUT_SIZE = INPUT_SIZE
SEQ_LEN = 8           # number of fused forward() steps exercised in the test

# Lane-aligned padded sizes.
EP = 128              # padded embedding dim
HP = 128              # padded hidden dim  (4*HP = 512 -> 128-aligned gate slices)
OP = 128              # padded output dim  (lane-dense output stores)


def _round_up(n, m):
    return ((n + m - 1) // m) * m


def _rnnet_seq_kernel(tok_ref,            # scalar-prefetch: int32[T] tokens (SMEM)
                      emb_ref,            # (V, EP)       full embedding table (VMEM resident)
                      w_ref,              # (EP+HP, 4HP)  stacked [W_ih^T ; W_hh^T], padded
                      b_ref,              # (1, 4HP)      b_ih + b_hh, padded
                      w_fc_ref,           # (HP, OP)      fc weights (transposed, padded)
                      b_fc_ref,           # (1, OP)       fc bias, padded
                      h0_ref, c0_ref,     # (1, HP)       initial hidden / cell, padded
                      out_ref,            # (T_pad, OP)   logits slab (single resident output)
                      h_out_ref,          # (1, HP)       final hidden
                      c_out_ref,          # (1, HP)       final cell
                      xh_scr,             # (1, EP+HP)    persistent [x ; h] staging buffer
                      h_all_scr,          # (T_pad, HP)   per-step hidden states (lane-dense)
                      c_scr):             # (1, HP)       cell state carry
    T = tok_ref.shape[0]
    Ep = emb_ref.shape[1]
    Hp = h0_ref.shape[1]

    # State init -- single kernel invocation, so no pl.when phase gating needed.
    h_all_scr[...] = jnp.zeros_like(h_all_scr)
    xh_scr[:, Ep:] = h0_ref[...]
    c_scr[...] = c0_ref[...]

    # Fully-unrolled static recurrence over T tokens (T is a compile-time constant).
    # Embedding row gather is a dynamic-sublane VMEM load from the resident table.
    for t in range(T):
        tok = tok_ref[t]
        xh_scr[:, :Ep] = emb_ref[pl.ds(tok, 1), :]                # x_t -> lanes [0:EP)

        # Single fused MXU matmul for all four gates: (1, EP+HP) @ (EP+HP, 4HP).
        gates = jnp.dot(xh_scr[...], w_ref[...],
                        preferred_element_type=jnp.float32) + b_ref[...]

        i_g = jax.nn.sigmoid(gates[:, 0 * Hp:1 * Hp])
        f_g = jax.nn.sigmoid(gates[:, 1 * Hp:2 * Hp])
        g_g = jnp.tanh(gates[:, 2 * Hp:3 * Hp])
        o_g = jax.nn.sigmoid(gates[:, 3 * Hp:4 * Hp])

        c_new = f_g * c_scr[...] + i_g * g_g
        h_new = o_g * jnp.tanh(c_new)

        c_scr[...] = c_new
        xh_scr[:, Ep:] = h_new                                    # h_t -> lanes [EP:EP+HP)
        h_all_scr[t:t + 1, :] = h_new                             # static sublane store

    # Hoisted fc projection: one (T_pad, HP) @ (HP, OP) matmul after the loop.
    out_ref[...] = (jnp.dot(h_all_scr[...], w_fc_ref[...],
                            preferred_element_type=jnp.float32) + b_fc_ref[...])
    h_out_ref[...] = xh_scr[:, Ep:]
    c_out_ref[...] = c_scr[...]


@jax.jit
def rnnet_forward_seq(tokens, hidden, cell, kparams):
    """Apply RNNet.forward() over a token sequence in one fused kernel.

    tokens : int32[T]; hidden/cell : (1, 1, H) like PyTorch.
    Returns (logits (T, O), hidden (1,1,H), cell (1,1,H)).
    """
    emb = kparams["embedding_pad"]     # (V, EP)
    w = kparams["w_pad"]               # (EP+HP, 4HP)
    b = kparams["b_pad"]               # (1, 4HP)
    w_fc = kparams["w_fc_pad"]         # (HP, OP)
    b_fc = kparams["b_fc_pad"]         # (1, OP)

    V, Ep = emb.shape
    Hp, Op = w_fc.shape
    H = hidden.shape[-1]
    T = tokens.shape[0]
    T_pad = _round_up(max(T, 8), 8)    # sublane-aligned h slab / logits slab

    # Clamp token ids: in-kernel dynamic row loads are not bounds-checked.
    tok = jnp.clip(tokens.astype(jnp.int32), 0, V - 1)

    h0 = jnp.zeros((1, Hp), jnp.float32).at[:, :H].set(hidden.reshape(1, H))
    c0 = jnp.zeros((1, Hp), jnp.float32).at[:, :H].set(cell.reshape(1, H))

    const2d = lambda arr: pl.BlockSpec(arr.shape, lambda i, tok_ref: (0, 0))

    grid_spec = pltpu.PrefetchScalarGridSpec(
        num_scalar_prefetch=1,
        grid=(1,),                     # single invocation; recurrence loops inside the kernel
        in_specs=[
            const2d(emb),              # whole table resident (V*EP*4 = 16 KiB)
            const2d(w), const2d(b), const2d(w_fc), const2d(b_fc),
            const2d(h0), const2d(c0),
        ],
        out_specs=(
            pl.BlockSpec((T_pad, Op), lambda i, tok_ref: (0, 0)),
            pl.BlockSpec((1, Hp), lambda i, tok_ref: (0, 0)),
            pl.BlockSpec((1, Hp), lambda i, tok_ref: (0, 0)),
        ),
        scratch_shapes=[
            pltpu.VMEM((1, Ep + Hp), jnp.float32),   # persistent [x ; h] buffer
            pltpu.VMEM((T_pad, Hp), jnp.float32),    # per-step hidden states
            pltpu.VMEM((1, Hp), jnp.float32),        # cell carry
        ],
    )

    out_pad, h_pad, c_pad = pl.pallas_call(
        _rnnet_seq_kernel,
        grid_spec=grid_spec,
        out_shape=(
            jax.ShapeDtypeStruct((T_pad, Op), jnp.float32),
            jax.ShapeDtypeStruct((1, Hp), jnp.float32),
            jax.ShapeDtypeStruct((1, Hp), jnp.float32),
        ),
        compiler_params=pltpu.CompilerParams(
            dimension_semantics=("arbitrary",)),
    )(tok, emb, w, b, w_fc, b_fc, h0, c0)

    out = out_pad[:T, :OUTPUT_SIZE]
    h_new = h_pad[:, :H].reshape(1, 1, H)
    c_new = c_pad[:, :H].reshape(1, 1, H)
    return out, h_new, c_new


def rnnet_forward(token, hidden, cell, kparams):
    """Single RNNet.forward step (seq=1, batch=1), matching the PyTorch module API."""
    out, h_new, c_new = rnnet_forward_seq(token.reshape(1), hidden, cell, kparams)
    return out, h_new, c_new


def init_params(key, vocab, embed, hidden, output):
    """Deterministic synthetic parameters in PyTorch layout."""
    ks = jax.random.split(key, 7)
    bound = 1.0 / jnp.sqrt(hidden)
    u = lambda k, shape, b: jax.random.uniform(k, shape, jnp.float32, -b, b)
    return {
        "embedding": jax.random.normal(ks[0], (vocab, embed), jnp.float32),  # nn.Embedding ~ N(0,1)
        "w_ih": u(ks[1], (4 * hidden, embed), bound),    # (4H, E)
        "w_hh": u(ks[2], (4 * hidden, hidden), bound),   # (4H, H)
        "b_ih": u(ks[3], (4 * hidden,), bound),
        "b_hh": u(ks[4], (4 * hidden,), bound),
        "w_fc": u(ks[5], (output, hidden), bound),       # (O, H)
        "b_fc": u(ks[6], (output,), bound),
    }


def pad_params_for_kernel(p, embed, hidden, output, ep=EP, hp=HP, op=OP):
    """Zero-pad weights to lane-aligned sizes and stack [W_ih^T ; W_hh^T].

    Padded weight rows/columns are zero, so padded h/c entries never leak into
    real gate pre-activations or the fc output; padded state stays decoupled.
    """
    vocab = p["embedding"].shape[0]
    emb_pad = jnp.zeros((vocab, ep), jnp.float32).at[:, :embed].set(p["embedding"])

    w_ih_t = p["w_ih"].T                      # (E, 4H)
    w_hh_t = p["w_hh"].T                      # (H, 4H)
    b = p["b_ih"] + p["b_hh"]                 # (4H,)

    w_pad = jnp.zeros((ep + hp, 4 * hp), jnp.float32)
    b_pad = jnp.zeros((1, 4 * hp), jnp.float32)
    for g in range(4):  # gate order i, f, g, o — preserved blockwise with padding
        w_pad = w_pad.at[:embed, g * hp:g * hp + hidden].set(
            w_ih_t[:, g * hidden:(g + 1) * hidden])
        w_pad = w_pad.at[ep:ep + hidden, g * hp:g * hp + hidden].set(
            w_hh_t[:, g * hidden:(g + 1) * hidden])
        b_pad = b_pad.at[0, g * hp:g * hp + hidden].set(
            b[g * hidden:(g + 1) * hidden])

    w_fc_pad = jnp.zeros((hp, op), jnp.float32).at[:hidden, :output].set(p["w_fc"].T)
    b_fc_pad = jnp.zeros((1, op), jnp.float32).at[0, :output].set(p["b_fc"])

    return {
        "embedding_pad": emb_pad,
        "w_pad": w_pad,
        "b_pad": b_pad,
        "w_fc_pad": w_fc_pad,
        "b_fc_pad": b_fc_pad,
    }


def reference_forward_seq(tokens, hidden, cell, p):
    """Pure-JAX reference: PyTorch RNNet.forward applied step-by-step (unpadded)."""
    H = hidden.shape[-1]
    h = hidden.reshape(1, H)
    c = cell.reshape(1, H)
    w_ih_t = p["w_ih"].T
    w_hh_t = p["w_hh"].T
    b = (p["b_ih"] + p["b_hh"])[None, :]
    outs = []
    for t in range(tokens.shape[0]):
        x = p["embedding"][tokens[t]][None, :]
        gates = x @ w_ih_t + h @ w_hh_t + b
        i = jax.nn.sigmoid(gates[:, 0 * H:1 * H])
        f = jax.nn.sigmoid(gates[:, 1 * H:2 * H])
        g = jnp.tanh(gates[:, 2 * H:3 * H])
        o = jax.nn.sigmoid(gates[:, 3 * H:4 * H])
        c = f * c + i * g
        h = o * jnp.tanh(c)
        outs.append(h @ p["w_fc"].T + p["b_fc"][None, :])
    return jnp.concatenate(outs, axis=0), h.reshape(1, 1, H), c.reshape(1, 1, H)


if __name__ == "__main__":
    key = jax.random.PRNGKey(0)
    kp, kh, kc, kt = jax.random.split(key, 4)

    params = init_params(kp, INPUT_SIZE, EMBED_SIZE, HIDDEN_SIZE, OUTPUT_SIZE)
    kparams = pad_params_for_kernel(params, EMBED_SIZE, HIDDEN_SIZE, OUTPUT_SIZE)

    tokens = jax.random.randint(kt, (SEQ_LEN,), 0, INPUT_SIZE, dtype=jnp.int32)
    # init_hidden() in the module is zeros; use small random states to exercise the cell.
    hidden = 0.1 * jax.random.normal(kh, (1, 1, HIDDEN_SIZE), jnp.float32)
    cell = 0.1 * jax.random.normal(kc, (1, 1, HIDDEN_SIZE), jnp.float32)

    # Fused multi-step decode (T forward() steps in one pallas_call).
    out, h_new, c_new = rnnet_forward_seq(tokens, hidden, cell, kparams)
    jax.block_until_ready((out, h_new, c_new))

    out_ref, h_ref, c_ref = reference_forward_seq(tokens, hidden, cell, params)
    assert out.shape == (SEQ_LEN, OUTPUT_SIZE)
    assert h_new.shape == (1, 1, HIDDEN_SIZE) and c_new.shape == (1, 1, HIDDEN_SIZE)
    assert jnp.allclose(out, out_ref, atol=1e-4, rtol=1e-4)
    assert jnp.allclose(h_new, h_ref, atol=1e-4, rtol=1e-4)
    assert jnp.allclose(c_new, c_ref, atol=1e-4, rtol=1e-4)

    # Single-step path matching the original module's forward() signature.
    out1, h1, c1 = rnnet_forward(tokens[:1], hidden, cell, kparams)
    jax.block_until_ready((out1, h1, c1))
    out1_ref, h1_ref, c1_ref = reference_forward_seq(tokens[:1], hidden, cell, params)
    assert out1.shape == (1, OUTPUT_SIZE)
    assert jnp.allclose(out1, out1_ref, atol=1e-4, rtol=1e-4)
    assert jnp.allclose(h1, h1_ref, atol=1e-4, rtol=1e-4)
    assert jnp.allclose(c1, c1_ref, atol=1e-4, rtol=1e-4)

    print("KERNEL_OK")
</pallas_src>

<mosaic_0001>
module attributes {stable_mosaic.version = 11 : i64} {
  func.func @_rnnet_seq_kernel(%arg0: i32, %arg1: memref<8xi32, #tpu.memory_space<smem>>, %arg2: memref<32x128xf32, #tpu.memory_space<vmem>>, %arg3: memref<256x512xf32, #tpu.memory_space<vmem>>, %arg4: memref<1x512xf32, #tpu.memory_space<vmem>>, %arg5: memref<128x128xf32, #tpu.memory_space<vmem>>, %arg6: memref<1x128xf32, #tpu.memory_space<vmem>>, %arg7: memref<1x128xf32, #tpu.memory_space<vmem>>, %arg8: memref<1x128xf32, #tpu.memory_space<vmem>>, %arg9: memref<8x128xf32, #tpu.memory_space<vmem>>, %arg10: memref<1x128xf32, #tpu.memory_space<vmem>>, %arg11: memref<1x128xf32, #tpu.memory_space<vmem>>, %arg12: memref<1x256xf32, #tpu.memory_space<vmem>>, %arg13: memref<8x128xf32, #tpu.memory_space<vmem>>, %arg14: memref<1x128xf32, #tpu.memory_space<vmem>>) attributes {dimension_semantics = [#tpu.dimension_semantics<arbitrary>], iteration_bounds = array<i64: 1>, scalar_prefetch = 1 : i64, scratch_operands = 3 : i64, tpu.core_type = #tpu.core_type<tc>, window_params = [{pipeline_mode = #tpu.pipeline_mode<synchronous>, transform_indices = @transform_0, window_bounds = array<i64: 32, 128>}, {pipeline_mode = #tpu.pipeline_mode<synchronous>, transform_indices = @transform_1, window_bounds = array<i64: 256, 512>}, {pipeline_mode = #tpu.pipeline_mode<synchronous>, transform_indices = @transform_2, window_bounds = array<i64: 1, 512>}, {pipeline_mode = #tpu.pipeline_mode<synchronous>, transform_indices = @transform_3, window_bounds = array<i64: 128, 128>}, {pipeline_mode = #tpu.pipeline_mode<synchronous>, transform_indices = @transform_4, window_bounds = array<i64: 1, 128>}, {pipeline_mode = #tpu.pipeline_mode<synchronous>, transform_indices = @transform_5, window_bounds = array<i64: 1, 128>}, {pipeline_mode = #tpu.pipeline_mode<synchronous>, transform_indices = @transform_6, window_bounds = array<i64: 1, 128>}, {pipeline_mode = #tpu.pipeline_mode<synchronous>, transform_indices = @transform_7, window_bounds = array<i64: 8, 128>}, {pipeline_mode = #tpu.pipeline_mode<synchronous>, transform_indices = @transform_8, window_bounds = array<i64: 1, 128>}, {pipeline_mode = #tpu.pipeline_mode<synchronous>, transform_indices = @transform_9, window_bounds = array<i64: 1, 128>}]} {
    %cst = arith.constant 0.000000e+00 : f32
    %0 = vector.broadcast %cst : f32 to vector<8x128xf32>
    %c0 = arith.constant 0 : index
    %c0_0 = arith.constant 0 : index
    %1 = vector.load %arg13[%c0, %c0_0] : memref<8x128xf32, #tpu.memory_space<vmem>>, vector<8x128xf32>
    tpu.vector_store %arg13[%c0, %c0_0], %0 {strides = array<i32>} : memref<8x128xf32, #tpu.memory_space<vmem>>, vector<8x128xf32>,
    %c0_1 = arith.constant 0 : index
    %c0_2 = arith.constant 0 : index
    %2 = vector.load %arg7[%c0_1, %c0_2] : memref<1x128xf32, #tpu.memory_space<vmem>>, vector<1x128xf32>
    %c0_3 = arith.constant 0 : index
    %c128 = arith.constant 128 : index
    %3 = vector.load %arg12[%c0_3, %c128] : memref<1x256xf32, #tpu.memory_space<vmem>>, vector<1x128xf32>
    tpu.vector_store %arg12[%c0_3, %c128], %2 {strides = array<i32>} : memref<1x256xf32, #tpu.memory_space<vmem>>, vector<1x128xf32>,
    %c0_4 = arith.constant 0 : index
    %c0_5 = arith.constant 0 : index
    %4 = vector.load %arg8[%c0_4, %c0_5] : memref<1x128xf32, #tpu.memory_space<vmem>>, vector<1x128xf32>
    %c0_6 = arith.constant 0 : index
    %c0_7 = arith.constant 0 : index
    %5 = vector.load %arg14[%c0_6, %c0_7] : memref<1x128xf32, #tpu.memory_space<vmem>>, vector<1x128xf32>
    tpu.vector_store %arg14[%c0_6, %c0_7], %4 {strides = array<i32>} : memref<1x128xf32, #tpu.memory_space<vmem>>, vector<1x128xf32>,
    %c0_8 = arith.constant 0 : index
    %6 = memref.load %arg1[%c0_8] : memref<8xi32, #tpu.memory_space<smem>>
    %7 = arith.index_cast %6 : i32 to index
    %c0_9 = arith.constant 0 : index
    %8 = vector.load %arg2[%7, %c0_9] : memref<32x128xf32, #tpu.memory_space<vmem>>, vector<1x128xf32>
    %c0_10 = arith.constant 0 : index
    %c0_11 = arith.constant 0 : index
    %9 = vector.load %arg12[%c0_10, %c0_11] : memref<1x256xf32, #tpu.memory_space<vmem>>, vector<1x128xf32>
    tpu.vector_store %arg12[%c0_10, %c0_11], %8 {strides = array<i32>} : memref<1x256xf32, #tpu.memory_space<vmem>>, vector<1x128xf32>,
    %c0_12 = arith.constant 0 : index
    %c0_13 = arith.constant 0 : index
    %10 = vector.load %arg12[%c0_12, %c0_13] : memref<1x256xf32, #tpu.memory_space<vmem>>, vector<1x256xf32>
    %c0_14 = arith.constant 0 : index
    %c0_15 = arith.constant 0 : index
    %11 = vector.load %arg3[%c0_14, %c0_15] : memref<256x512xf32, #tpu.memory_space<vmem>>, vector<256x512xf32>
    %cst_16 = arith.constant dense<0.000000e+00> : vector<1x512xf32>
    %12 = tpu.matmul %10, %11, %cst_16 {dimension_numbers = #tpu.dot_dimension_numbers<[1], [0], [0], [1], [0, 0, 1, 1], [], []>} : vector<1x256xf32>, vector<256x512xf32>, vector<1x512xf32> -> vector<1x512xf32>
    %c0_17 = arith.constant 0 : index
    %c0_18 = arith.constant 0 : index
    %13 = vector.load %arg4[%c0_17, %c0_18] : memref<1x512xf32, #tpu.memory_space<vmem>>, vector<1x512xf32>
    %14 = arith.addf %12, %13 : vector<1x512xf32>
    %15 = vector.extract_strided_slice %14 {offsets = [0, 0], sizes = [1, 128], strides = [1, 1]} : vector<1x512xf32> to vector<1x128xf32>
    %16 = arith.negf %15 : vector<1x128xf32>
    %17 = math.exp %16 : vector<1x128xf32>
    %cst_19 = arith.constant 1.000000e+00 : f32
    %18 = vector.broadcast %cst_19 : f32 to vector<1x128xf32>
    %19 = arith.addf %18, %17 : vector<1x128xf32>
    %20 = arith.divf %18, %19 : vector<1x128xf32>
    %21 = vector.extract_strided_slice %14 {offsets = [0, 128], sizes = [1, 128], strides = [1, 1]} : vector<1x512xf32> to vector<1x128xf32>
    %22 = arith.negf %21 : vector<1x128xf32>
    %23 = math.exp %22 : vector<1x128xf32>
    %cst_20 = arith.constant 1.000000e+00 : f32
    %24 = vector.broadcast %cst_20 : f32 to vector<1x128xf32>
    %25 = arith.addf %24, %23 : vector<1x128xf32>
    %26 = arith.divf %24, %25 : vector<1x128xf32>
    %27 = vector.extract_strided_slice %14 {offsets = [0, 256], sizes = [1, 128], strides = [1, 1]} : vector<1x512xf32> to vector<1x128xf32>
    %28 = math.tanh %27 : vector<1x128xf32>
    %29 = vector.extract_strided_slice %14 {offsets = [0, 384], sizes = [1, 128], strides = [1, 1]} : vector<1x512xf32> to vector<1x128xf32>
    %30 = arith.negf %29 : vector<1x128xf32>
    %31 = math.exp %30 : vector<1x128xf32>
    %cst_21 = arith.constant 1.000000e+00 : f32
    %32 = vector.broadcast %cst_21 : f32 to vector<1x128xf32>
    %33 = arith.addf %32, %31 : vector<1x128xf32>
    %34 = arith.divf %32, %33 : vector<1x128xf32>
    %c0_22 = arith.constant 0 : index
    %c0_23 = arith.constant 0 : index
    %35 = vector.load %arg14[%c0_22, %c0_23] : memref<1x128xf32, #tpu.memory_space<vmem>>, vector<1x128xf32>
    %36 = arith.mulf %26, %35 : vector<1x128xf32>
    %37 = arith.mulf %20, %28 : vector<1x128xf32>
    %38 = arith.addf %36, %37 : vector<1x128xf32>
    %39 = math.tanh %38 : vector<1x128xf32>
    %40 = arith.mulf %34, %39 : vector<1x128xf32>
    %c0_24 = arith.constant 0 : index
    %c0_25 = arith.constant 0 : index
    %41 = vector.load %arg14[%c0_24, %c0_25] : memref<1x128xf32, #tpu.memory_space<vmem>>, vector<1x128xf32>
    tpu.vector_store %arg14[%c0_24, %c0_25], %38 {strides = array<i32>} : memref<1x128xf32, #tpu.memory_space<vmem>>, vector<1x128xf32>,
    %c0_26 = arith.constant 0 : index
    %c128_27 = arith.constant 128 : index
    %42 = vector.load %arg12[%c0_26, %c128_27] : memref<1x256xf32, #tpu.memory_space<vmem>>, vector<1x128xf32>
    tpu.vector_store %arg12[%c0_26, %c128_27], %40 {strides = array<i32>} : memref<1x256xf32, #tpu.memory_space<vmem>>, vector<1x128xf32>,
    %c0_28 = arith.constant 0 : index
    %c0_29 = arith.constant 0 : index
    %43 = vector.load %arg13[%c0_28, %c0_29] : memref<8x128xf32, #tpu.memory_space<vmem>>, vector<1x128xf32>
    tpu.vector_store %arg13[%c0_28, %c0_29], %40 {strides = array<i32>} : memref<8x128xf32, #tpu.memory_space<vmem>>, vector<1x128xf32>,
    %c1 = arith.constant 1 : index
    %44 = memref.load %arg1[%c1] : memref<8xi32, #tpu.memory_space<smem>>
    %45 = arith.index_cast %44 : i32 to index
    %c0_30 = arith.constant 0 : index
    %46 = vector.load %arg2[%45, %c0_30] : memref<32x128xf32, #tpu.memory_space<vmem>>, vector<1x128xf32>
    %c0_31 = arith.constant 0 : index
    %c0_32 = arith.constant 0 : index
    %47 = vector.load %arg12[%c0_31, %c0_32] : memref<1x256xf32, #tpu.memory_space<vmem>>, vector<1x128xf32>
    tpu.vector_store %arg12[%c0_31, %c0_32], %46 {strides = array<i32>} : memref<1x256xf32, #tpu.memory_space<vmem>>, vector<1x128xf32>,
    %c0_33 = arith.constant 0 : index
    %c0_34 = arith.constant 0 : index
    %48 = vector.load %arg12[%c0_33, %c0_34] : memref<1x256xf32, #tpu.memory_space<vmem>>, vector<1x256xf32>
    %c0_35 = arith.constant 0 : index
    %c0_36 = arith.constant 0 : index
    %49 = vector.load %arg3[%c0_35, %c0_36] : memref<256x512xf32, #tpu.memory_space<vmem>>, vector<256x512xf32>
    %cst_37 = arith.constant dense<0.000000e+00> : vector<1x512xf32>
    %50 = tpu.matmul %48, %49, %cst_37 {dimension_numbers = #tpu.dot_dimension_numbers<[1], [0], [0], [1], [0, 0, 1, 1], [], []>} : vector<1x256xf32>, vector<256x512xf32>, vector<1x512xf32> -> vector<1x512xf32>
    %c0_38 = arith.constant 0 : index
    %c0_39 = arith.constant 0 : index
    %51 = vector.load %arg4[%c0_38, %c0_39] : memref<1x512xf32, #tpu.memory_space<vmem>>, vector<1x512xf32>
    %52 = arith.addf %50, %51 : vector<1x512xf32>
    %53 = vector.extract_strided_slice %52 {offsets = [0, 0], sizes = [1, 128], strides = [1, 1]} : vector<1x512xf32> to vector<1x128xf32>
    %54 = arith.negf %53 : vector<1x128xf32>
    %55 = math.exp %54 : vector<1x128xf32>
    %cst_40 = arith.constant 1.000000e+00 : f32
    %56 = vector.broadcast %cst_40 : f32 to vector<1x128xf32>
    %57 = arith.addf %56, %55 : vector<1x128xf32>
    %58 = arith.divf %56, %57 : vector<1x128xf32>
    %59 = vector.extract_strided_slice %52 {offsets = [0, 128], sizes = [1, 128], strides = [1, 1]} : vector<1x512xf32> to vector<1x128xf32>
    %60 = arith.negf %59 : vector<1x128xf32>
    %61 = math.exp %60 : vector<1x128xf32>
    %cst_41 = arith.constant 1.000000e+00 : f32
    %62 = vector.broadcast %cst_41 : f32 to vector<1x128xf32>
    %63 = arith.addf %62, %61 : vector<1x128xf32>
    %64 = arith.divf %62, %63 : vector<1x128xf32>
    %65 = vector.extract_strided_slice %52 {offsets = [0, 256], sizes = [1, 128], strides = [1, 1]} : vector<1x512xf32> to vector<1x128xf32>
    %66 = math.tanh %65 : vector<1x128xf32>
    %67 = vector.extract_strided_slice %52 {offsets = [0, 384], sizes = [1, 128], strides = [1, 1]} : vector<1x512xf32> to vector<1x128xf32>
    %68 = arith.negf %67 : vector<1x128xf32>
    %69 = math.exp %68 : vector<1x128xf32>
    %cst_42 = arith.constant 1.000000e+00 : f32
    %70 = vector.broadcast %cst_42 : f32 to vector<1x128xf32>
    %71 = arith.addf %70, %69 : vector<1x128xf32>
    %72 = arith.divf %70, %71 : vector<1x128xf32>
    %c0_43 = arith.constant 0 : index
    %c0_44 = arith.constant 0 : index
    %73 = vector.load %arg14[%c0_43, %c0_44] : memref<1x128xf32, #tpu.memory_space<vmem>>, vector<1x128xf32>
    %74 = arith.mulf %64, %73 : vector<1x128xf32>
    %75 = arith.mulf %58, %66 : vector<1x128xf32>
    %76 = arith.addf %74, %75 : vector<1x128xf32>
    %77 = math.tanh %76 : vector<1x128xf32>
    %78 = arith.mulf %72, %77 : vector<1x128xf32>
    %c0_45 = arith.constant 0 : index
    %c0_46 = arith.constant 0 : index
    %79 = vector.load %arg14[%c0_45, %c0_46] : memref<1x128xf32, #tpu.memory_space<vmem>>, vector<1x128xf32>
    tpu.vector_store %arg14[%c0_45, %c0_46], %76 {strides = array<i32>} : memref<1x128xf32, #tpu.memory_space<vmem>>, vector<1x128xf32>,
    %c0_47 = arith.constant 0 : index
    %c128_48 = arith.constant 128 : index
    %80 = vector.load %arg12[%c0_47, %c128_48] : memref<1x256xf32, #tpu.memory_space<vmem>>, vector<1x128xf32>
    tpu.vector_store %arg12[%c0_47, %c128_48], %78 {strides = array<i32>} : memref<1x256xf32, #tpu.memory_space<vmem>>, vector<1x128xf32>,
    %c1_49 = arith.constant 1 : index
    %c0_50 = arith.constant 0 : index
    %81 = vector.load %arg13[%c1_49, %c0_50] : memref<8x128xf32, #tpu.memory_space<vmem>>, vector<1x128xf32>
    tpu.vector_store %arg13[%c1_49, %c0_50], %78 {strides = array<i32>} : memref<8x128xf32, #tpu.memory_space<vmem>>, vector<1x128xf32>,
    %c2 = arith.constant 2 : index
    %82 = memref.load %arg1[%c2] : memref<8xi32, #tpu.memory_space<smem>>
    %83 = arith.index_cast %82 : i32 to index
    %c0_51 = arith.constant 0 : index
    %84 = vector.load %arg2[%83, %c0_51] : memref<32x128xf32, #tpu.memory_space<vmem>>, vector<1x128xf32>
    %c0_52 = arith.constant 0 : index
    %c0_53 = arith.constant 0 : index
    %85 = vector.load %arg12[%c0_52, %c0_53] : memref<1x256xf32, #tpu.memory_space<vmem>>, vector<1x128xf32>
    tpu.vector_store %arg12[%c0_52, %c0_53], %84 {strides = array<i32>} : memref<1x256xf32, #tpu.memory_space<vmem>>, vector<1x128xf32>,
    %c0_54 = arith.constant 0 : index
    %c0_55 = arith.constant 0 : index
    %86 = vector.load %arg12[%c0_54, %c0_55] : memref<1x256xf32, #tpu.memory_space<vmem>>, vector<1x256xf32>
    %c0_56 = arith.constant 0 : index
    %c0_57 = arith.constant 0 : index
    %87 = vector.load %arg3[%c0_56, %c0_57] : memref<256x512xf32, #tpu.memory_space<vmem>>, vector<256x512xf32>
    %cst_58 = arith.constant dense<0.000000e+00> : vector<1x512xf32>
    %88 = tpu.matmul %86, %87, %cst_58 {dimension_numbers = #tpu.dot_dimension_numbers<[1], [0], [0], [1], [0, 0, 1, 1], [], []>} : vector<1x256xf32>, vector<256x512xf32>, vector<1x512xf32> -> vector<1x512xf32>
    %c0_59 = arith.constant 0 : index
    %c0_60 = arith.constant 0 : index
    %89 = vector.load %arg4[%c0_59, %c0_60] : memref<1x512xf32, #tpu.memory_space<vmem>>, vector<1x512xf32>
    %90 = arith.addf %88, %89 : vector<1x512xf32>
    %91 = vector.extract_strided_slice %90 {offsets = [0, 0], sizes = [1, 128], strides = [1, 1]} : vector<1x512xf32> to vector<1x128xf32>
    %92 = arith.negf %91 : vector<1x128xf32>
    %93 = math.exp %92 : vector<1x128xf32>
    %cst_61 = arith.constant 1.000000e+00 : f32
    %94 = vector.broadcast %cst_61 : f32 to vector<1x128xf32>
    %95 = arith.addf %94, %93 : vector<1x128xf32>
    %96 = arith.divf %94, %95 : vector<1x128xf32>
    %97 = vector.extract_strided_slice %90 {offsets = [0, 128], sizes = [1, 128], strides = [1, 1]} : vector<1x512xf32> to vector<1x128xf32>
    %98 = arith.negf %97 : vector<1x128xf32>
    %99 = math.exp %98 : vector<1x128xf32>
    %cst_62 = arith.constant 1.000000e+00 : f32
    %100 = vector.broadcast %cst_62 : f32 to vector<1x128xf32>
    %101 = arith.addf %100, %99 : vector<1x128xf32>
    %102 = arith.divf %100, %101 : vector<1x128xf32>
    %103 = vector.extract_strided_slice %90 {offsets = [0, 256], sizes = [1, 128], strides = [1, 1]} : vector<1x512xf32> to vector<1x128xf32>
    %104 = math.tanh %103 : vector<1x128xf32>
    %105 = vector.extract_strided_slice %90 {offsets = [0, 384], sizes = [1, 128], strides = [1, 1]} : vector<1x512xf32> to vector<1x128xf32>
    %106 = arith.negf %105 : vector<1x128xf32>
    %107 = math.exp %106 : vector<1x128xf32>
    %cst_63 = arith.constant 1.000000e+00 : f32
    %108 = vector.broadcast %cst_63 : f32 to vector<1x128xf32>
    %109 = arith.addf %108, %107 : vector<1x128xf32>
    %110 = arith.divf %108, %109 : vector<1x128xf32>
    %c0_64 = arith.constant 0 : index
    %c0_65 = arith.constant 0 : index
    %111 = vector.load %arg14[%c0_64, %c0_65] : memref<1x128xf32, #tpu.memory_space<vmem>>, vector<1x128xf32>
    %112 = arith.mulf %102, %111 : vector<1x128xf32>
    %113 = arith.mulf %96, %104 : vector<1x128xf32>
    %114 = arith.addf %112, %113 : vector<1x128xf32>
    %115 = math.tanh %114 : vector<1x128xf32>
    %116 = arith.mulf %110, %115 : vector<1x128xf32>
    %c0_66 = arith.constant 0 : index
    %c0_67 = arith.constant 0 : index
    %117 = vector.load %arg14[%c0_66, %c0_67] : memref<1x128xf32, #tpu.memory_space<vmem>>, vector<1x128xf32>
    tpu.vector_store %arg14[%c0_66, %c0_67], %114 {strides = array<i32>} : memref<1x128xf32, #tpu.memory_space<vmem>>, vector<1x128xf32>,
    %c0_68 = arith.constant 0 : index
    %c128_69 = arith.constant 128 : index
    %118 = vector.load %arg12[%c0_68, %c128_69] : memref<1x256xf32, #tpu.memory_space<vmem>>, vector<1x128xf32>
    tpu.vector_store %arg12[%c0_68, %c128_69], %116 {strides = array<i32>} : memref<1x256xf32, #tpu.memory_space<vmem>>, vector<1x128xf32>,
    %c2_70 = arith.constant 2 : index
    %c0_71 = arith.constant 0 : index
    %119 = vector.load %arg13[%c2_70, %c0_71] : memref<8x128xf32, #tpu.memory_space<vmem>>, vector<1x128xf32>
    tpu.vector_store %arg13[%c2_70, %c0_71], %116 {strides = array<i32>} : memref<8x128xf32, #tpu.memory_space<vmem>>, vector<1x128xf32>,
    %c3 = arith.constant 3 : index
    %120 = memref.load %arg1[%c3] : memref<8xi32, #tpu.memory_space<smem>>
    %121 = arith.index_cast %120 : i32 to index
    %c0_72 = arith.constant 0 : index
    %122 = vector.load %arg2[%121, %c0_72] : memref<32x128xf32, #tpu.memory_space<vmem>>, vector<1x128xf32>
    %c0_73 = arith.constant 0 : index
    %c0_74 = arith.constant 0 : index
    %123 = vector.load %arg12[%c0_73, %c0_74] : memref<1x256xf32, #tpu.memory_space<vmem>>, vector<1x128xf32>
    tpu.vector_store %arg12[%c0_73, %c0_74], %122 {strides = array<i32>} : memref<1x256xf32, #tpu.memory_space<vmem>>, vector<1x128xf32>,
    %c0_75 = arith.constant 0 : index
    %c0_76 = arith.constant 0 : index
    %124 = vector.load %arg12[%c0_75, %c0_76] : memref<1x256xf32, #tpu.memory_space<vmem>>, vector<1x256xf32>
    %c0_77 = arith.constant 0 : index
    %c0_78 = arith.constant 0 : index
    %125 = vector.load %arg3[%c0_77, %c0_78] : memref<256x512xf32, #tpu.memory_space<vmem>>, vector<256x512xf32>
    %cst_79 = arith.constant dense<0.000000e+00> : vector<1x512xf32>
    %126 = tpu.matmul %124, %125, %cst_79 {dimension_numbers = #tpu.dot_dimension_numbers<[1], [0], [0], [1], [0, 0, 1, 1], [], []>} : vector<1x256xf32>, vector<256x512xf32>, vector<1x512xf32> -> vector<1x512xf32>
    %c0_80 = arith.constant 0 : index
    %c0_81 = arith.constant 0 : index
    %127 = vector.load %arg4[%c0_80, %c0_81] : memref<1x512xf32, #tpu.memory_space<vmem>>, vector<1x512xf32>
    %128 = arith.addf %126, %127 : vector<1x512xf32>
    %129 = vector.extract_strided_slice %128 {offsets = [0, 0], sizes = [1, 128], strides = [1, 1]} : vector<1x512xf32> to vector<1x128xf32>
    %130 = arith.negf %129 : vector<1x128xf32>
    %131 = math.exp %130 : vector<1x128xf32>
    %cst_82 = arith.constant 1.000000e+00 : f32
    %132 = vector.broadcast %cst_82 : f32 to vector<1x128xf32>
    %133 = arith.addf %132, %131 : vector<1x128xf32>
    %134 = arith.divf %132, %133 : vector<1x128xf32>
    %135 = vector.extract_strided_slice %128 {offsets = [0, 128], sizes = [1, 128], strides = [1, 1]} : vector<1x512xf32> to vector<1x128xf32>
    %136 = arith.negf %135 : vector<1x128xf32>
    %137 = math.exp %136 : vector<1x128xf32>
    %cst_83 = arith.constant 1.000000e+00 : f32
    %138 = vector.broadcast %cst_83 : f32 to vector<1x128xf32>
    %139 = arith.addf %138, %137 : vector<1x128xf32>
    %140 = arith.divf %138, %139 : vector<1x128xf32>
    %141 = vector.extract_strided_slice %128 {offsets = [0, 256], sizes = [1, 128], strides = [1, 1]} : vector<1x512xf32> to vector<1x128xf32>
    %142 = math.tanh %141 : vector<1x128xf32>
    %143 = vector.extract_strided_slice %128 {offsets = [0, 384], sizes = [1, 128], strides = [1, 1]} : vector<1x512xf32> to vector<1x128xf32>
    %144 = arith.negf %143 : vector<1x128xf32>
    %145 = math.exp %144 : vector<1x128xf32>
    %cst_84 = arith.constant 1.000000e+00 : f32
    %146 = vector.broadcast %cst_84 : f32 to vector<1x128xf32>
    %147 = arith.addf %146, %145 : vector<1x128xf32>
    %148 = arith.divf %146, %147 : vector<1x128xf32>
    %c0_85 = arith.constant 0 : index
    %c0_86 = arith.constant 0 : index
    %149 = vector.load %arg14[%c0_85, %c0_86] : memref<1x128xf32, #tpu.memory_space<vmem>>, vector<1x128xf32>
    %150 = arith.mulf %140, %149 : vector<1x128xf32>
    %151 = arith.mulf %134, %142 : vector<1x128xf32>
    %152 = arith.addf %150, %151 : vector<1x128xf32>
    %153 = math.tanh %152 : vector<1x128xf32>
    %154 = arith.mulf %148, %153 : vector<1x128xf32>
    %c0_87 = arith.constant 0 : index
    %c0_88 = arith.constant 0 : index
    %155 = vector.load %arg14[%c0_87, %c0_88] : memref<1x128xf32, #tpu.memory_space<vmem>>, vector<1x128xf32>
    tpu.vector_store %arg14[%c0_87, %c0_88], %152 {strides = array<i32>} : memref<1x128xf32, #tpu.memory_space<vmem>>, vector<1x128xf32>,
    %c0_89 = arith.constant 0 : index
    %c128_90 = arith.constant 128 : index
    %156 = vector.load %arg12[%c0_89, %c128_90] : memref<1x256xf32, #tpu.memory_space<vmem>>, vector<1x128xf32>
    tpu.vector_store %arg12[%c0_89, %c128_90], %154 {strides = array<i32>} : memref<1x256xf32, #tpu.memory_space<vmem>>, vector<1x128xf32>,
    %c3_91 = arith.constant 3 : index
    %c0_92 = arith.constant 0 : index
    %157 = vector.load %arg13[%c3_91, %c0_92] : memref<8x128xf32, #tpu.memory_space<vmem>>, vector<1x128xf32>
    tpu.vector_store %arg13[%c3_91, %c0_92], %154 {strides = array<i32>} : memref<8x128xf32, #tpu.memory_space<vmem>>, vector<1x128xf32>,
    %c4 = arith.constant 4 : index
    %158 = memref.load %arg1[%c4] : memref<8xi32, #tpu.memory_space<smem>>
    %159 = arith.index_cast %158 : i32 to index
    %c0_93 = arith.constant 0 : index
    %160 = vector.load %arg2[%159, %c0_93] : memref<32x128xf32, #tpu.memory_space<vmem>>, vector<1x128xf32>
    %c0_94 = arith.constant 0 : index
    %c0_95 = arith.constant 0 : index
    %161 = vector.load %arg12[%c0_94, %c0_95] : memref<1x256xf32, #tpu.memory_space<vmem>>, vector<1x128xf32>
    tpu.vector_store %arg12[%c0_94, %c0_95], %160 {strides = array<i32>} : memref<1x256xf32, #tpu.memory_space<vmem>>, vector<1x128xf32>,
    %c0_96 = arith.constant 0 : index
    %c0_97 = arith.constant 0 : index
    %162 = vector.load %arg12[%c0_96, %c0_97] : memref<1x256xf32, #tpu.memory_space<vmem>>, vector<1x256xf32>
    %c0_98 = arith.constant 0 : index
    %c0_99 = arith.constant 0 : index
    %163 = vector.load %arg3[%c0_98, %c0_99] : memref<256x512xf32, #tpu.memory_space<vmem>>, vector<256x512xf32>
    %cst_100 = arith.constant dense<0.000000e+00> : vector<1x512xf32>
    %164 = tpu.matmul %162, %163, %cst_100 {dimension_numbers = #tpu.dot_dimension_numbers<[1], [0], [0], [1], [0, 0, 1, 1], [], []>} : vector<1x256xf32>, vector<256x512xf32>, vector<1x512xf32> -> vector<1x512xf32>
    %c0_101 = arith.constant 0 : index
    %c0_102 = arith.constant 0 : index
    %165 = vector.load %arg4[%c0_101, %c0_102] : memref<1x512xf32, #tpu.memory_space<vmem>>, vector<1x512xf32>
    %166 = arith.addf %164, %165 : vector<1x512xf32>
    %167 = vector.extract_strided_slice %166 {offsets = [0, 0], sizes = [1, 128], strides = [1, 1]} : vector<1x512xf32> to vector<1x128xf32>
    %168 = arith.negf %167 : vector<1x128xf32>
    %169 = math.exp %168 : vector<1x128xf32>
    %cst_103 = arith.constant 1.000000e+00 : f32
    %170 = vector.broadcast %cst_103 : f32 to vector<1x128xf32>
    %171 = arith.addf %170, %169 : vector<1x128xf32>
    %172 = arith.divf %170, %171 : vector<1x128xf32>
    %173 = vector.extract_strided_slice %166 {offsets = [0, 128], sizes = [1, 128], strides = [1, 1]} : vector<1x512xf32> to vector<1x128xf32>
    %174 = arith.negf %173 : vector<1x128xf32>
    %175 = math.exp %174 : vector<1x128xf32>
    %cst_104 = arith.constant 1.000000e+00 : f32
    %176 = vector.broadcast %cst_104 : f32 to vector<1x128xf32>
    %177 = arith.addf %176, %175 : vector<1x128xf32>
    %178 = arith.divf %176, %177 : vector<1x128xf32>
    %179 = vector.extract_strided_slice %166 {offsets = [0, 256], sizes = [1, 128], strides = [1, 1]} : vector<1x512xf32> to vector<1x128xf32>
    %180 = math.tanh %179 : vector<1x128xf32>
    %181 = vector.extract_strided_slice %166 {offsets = [0, 384], sizes = [1, 128], strides = [1, 1]} : vector<1x512xf32> to vector<1x128xf32>
    %182 = arith.negf %181 : vector<1x128xf32>
    %183 = math.exp %182 : vector<1x128xf32>
    %cst_105 = arith.constant 1.000000e+00 : f32
    %184 = vector.broadcast %cst_105 : f32 to vector<1x128xf32>
    %185 = arith.addf %184, %183 : vector<1x128xf32>
    %186 = arith.divf %184, %185 : vector<1x128xf32>
    %c0_106 = arith.constant 0 : index
    %c0_107 = arith.constant 0 : index
    %187 = vector.load %arg14[%c0_106, %c0_107] : memref<1x128xf32, #tpu.memory_space<vmem>>, vector<1x128xf32>
    %188 = arith.mulf %178, %187 : vector<1x128xf32>
    %189 = arith.mulf %172, %180 : vector<1x128xf32>
    %190 = arith.addf %188, %189 : vector<1x128xf32>
    %191 = math.tanh %190 : vector<1x128xf32>
    %192 = arith.mulf %186, %191 : vector<1x128xf32>
    %c0_108 = arith.constant 0 : index
    %c0_109 = arith.constant 0 : index
    %193 = vector.load %arg14[%c0_108, %c0_109] : memref<1x128xf32, #tpu.memory_space<vmem>>, vector<1x128xf32>
    tpu.vector_store %arg14[%c0_108, %c0_109], %190 {strides = array<i32>} : memref<1x128xf32, #tpu.memory_space<vmem>>, vector<1x128xf32>,
    %c0_110 = arith.constant 0 : index
    %c128_111 = arith.constant 128 : index
    %194 = vector.load %arg12[%c0_110, %c128_111] : memref<1x256xf32, #tpu.memory_space<vmem>>, vector<1x128xf32>
    tpu.vector_store %arg12[%c0_110, %c128_111], %192 {strides = array<i32>} : memref<1x256xf32, #tpu.memory_space<vmem>>, vector<1x128xf32>,
    %c4_112 = arith.constant 4 : index
    %c0_113 = arith.constant 0 : index
    %195 = vector.load %arg13[%c4_112, %c0_113] : memref<8x128xf32, #tpu.memory_space<vmem>>, vector<1x128xf32>
    tpu.vector_store %arg13[%c4_112, %c0_113], %192 {strides = array<i32>} : memref<8x128xf32, #tpu.memory_space<vmem>>, vector<1x128xf32>,
    %c5 = arith.constant 5 : index
    %196 = memref.load %arg1[%c5] : memref<8xi32, #tpu.memory_space<smem>>
    %197 = arith.index_cast %196 : i32 to index
    %c0_114 = arith.constant 0 : index
    %198 = vector.load %arg2[%197, %c0_114] : memref<32x128xf32, #tpu.memory_space<vmem>>, vector<1x128xf32>
    %c0_115 = arith.constant 0 : index
    %c0_116 = arith.constant 0 : index
    %199 = vector.load %arg12[%c0_115, %c0_116] : memref<1x256xf32, #tpu.memory_space<vmem>>, vector<1x128xf32>
    tpu.vector_store %arg12[%c0_115, %c0_116], %198 {strides = array<i32>} : memref<1x256xf32, #tpu.memory_space<vmem>>, vector<1x128xf32>,
    %c0_117 = arith.constant 0 : index
    %c0_118 = arith.constant 0 : index
    %200 = vector.load %arg12[%c0_117, %c0_118] : memref<1x256xf32, #tpu.memory_space<vmem>>, vector<1x256xf32>
    %c0_119 = arith.constant 0 : index
    %c0_120 = arith.constant 0 : index
    %201 = vector.load %arg3[%c0_119, %c0_120] : memref<256x512xf32, #tpu.memory_space<vmem>>, vector<256x512xf32>
    %cst_121 = arith.constant dense<0.000000e+00> : vector<1x512xf32>
    %202 = tpu.matmul %200, %201, %cst_121 {dimension_numbers = #tpu.dot_dimension_numbers<[1], [0], [0], [1], [0, 0, 1, 1], [], []>} : vector<1x256xf32>, vector<256x512xf32>, vector<1x512xf32> -> vector<1x512xf32>
    %c0_122 = arith.constant 0 : index
    %c0_123 = arith.constant 0 : index
    %203 = vector.load %arg4[%c0_122, %c0_123] : memref<1x512xf32, #tpu.memory_space<vmem>>, vector<1x512xf32>
    %204 = arith.addf %202, %203 : vector<1x512xf32>
    %205 = vector.extract_strided_slice %204 {offsets = [0, 0], sizes = [1, 128], strides = [1, 1]} : vector<1x512xf32> to vector<1x128xf32>
    %206 = arith.negf %205 : vector<1x128xf32>
    %207 = math.exp %206 : vector<1x128xf32>
    %cst_124 = arith.constant 1.000000e+00 : f32
    %208 = vector.broadcast %cst_124 : f32 to vector<1x128xf32>
    %209 = arith.addf %208, %207 : vector<1x128xf32>
    %210 = arith.divf %208, %209 : vector<1x128xf32>
    %211 = vector.extract_strided_slice %204 {offsets = [0, 128], sizes = [1, 128], strides = [1, 1]} : vector<1x512xf32> to vector<1x128xf32>
    %212 = arith.negf %211 : vector<1x128xf32>
    %213 = math.exp %212 : vector<1x128xf32>
    %cst_125 = arith.constant 1.000000e+00 : f32
    %214 = vector.broadcast %cst_125 : f32 to vector<1x128xf32>
    %215 = arith.addf %214, %213 : vector<1x128xf32>
    %216 = arith.divf %214, %215 : vector<1x128xf32>
    %217 = vector.extract_strided_slice %204 {offsets = [0, 256], sizes = [1, 128], strides = [1, 1]} : vector<1x512xf32> to vector<1x128xf32>
    %218 = math.tanh %217 : vector<1x128xf32>
    %219 = vector.extract_strided_slice %204 {offsets = [0, 384], sizes = [1, 128], strides = [1, 1]} : vector<1x512xf32> to vector<1x128xf32>
    %220 = arith.negf %219 : vector<1x128xf32>
    %221 = math.exp %220 : vector<1x128xf32>
    %cst_126 = arith.constant 1.000000e+00 : f32
    %222 = vector.broadcast %cst_126 : f32 to vector<1x128xf32>
    %223 = arith.addf %222, %221 : vector<1x128xf32>
    %224 = arith.divf %222, %223 : vector<1x128xf32>
    %c0_127 = arith.constant 0 : index
    %c0_128 = arith.constant 0 : index
    %225 = vector.load %arg14[%c0_127, %c0_128] : memref<1x128xf32, #tpu.memory_space<vmem>>, vector<1x128xf32>
    %226 = arith.mulf %216, %225 : vector<1x128xf32>
    %227 = arith.mulf %210, %218 : vector<1x128xf32>
    %228 = arith.addf %226, %227 : vector<1x128xf32>
    %229 = math.tanh %228 : vector<1x128xf32>
    %230 = arith.mulf %224, %229 : vector<1x128xf32>
    %c0_129 = arith.constant 0 : index
    %c0_130 = arith.constant 0 : index
    %231 = vector.load %arg14[%c0_129, %c0_130] : memref<1x128xf32, #tpu.memory_space<vmem>>, vector<1x128xf32>
    tpu.vector_store %arg14[%c0_129, %c0_130], %228 {strides = array<i32>} : memref<1x128xf32, #tpu.memory_space<vmem>>, vector<1x128xf32>,
    %c0_131 = arith.constant 0 : index
    %c128_132 = arith.constant 128 : index
    %232 = vector.load %arg12[%c0_131, %c128_132] : memref<1x256xf32, #tpu.memory_space<vmem>>, vector<1x128xf32>
    tpu.vector_store %arg12[%c0_131, %c128_132], %230 {strides = array<i32>} : memref<1x256xf32, #tpu.memory_space<vmem>>, vector<1x128xf32>,
    %c5_133 = arith.constant 5 : index
    %c0_134 = arith.constant 0 : index
    %233 = vector.load %arg13[%c5_133, %c0_134] : memref<8x128xf32, #tpu.memory_space<vmem>>, vector<1x128xf32>
    tpu.vector_store %arg13[%c5_133, %c0_134], %230 {strides = array<i32>} : memref<8x128xf32, #tpu.memory_space<vmem>>, vector<1x128xf32>,
    %c6 = arith.constant 6 : index
    %234 = memref.load %arg1[%c6] : memref<8xi32, #tpu.memory_space<smem>>
    %235 = arith.index_cast %234 : i32 to index
    %c0_135 = arith.constant 0 : index
    %236 = vector.load %arg2[%235, %c0_135] : memref<32x128xf32, #tpu.memory_space<vmem>>, vector<1x128xf32>
    %c0_136 = arith.constant 0 : index
    %c0_137 = arith.constant 0 : index
    %237 = vector.load %arg12[%c0_136, %c0_137] : memref<1x256xf32, #tpu.memory_space<vmem>>, vector<1x128xf32>
    tpu.vector_store %arg12[%c0_136, %c0_137], %236 {strides = array<i32>} : memref<1x256xf32, #tpu.memory_space<vmem>>, vector<1x128xf32>,
    %c0_138 = arith.constant 0 : index
    %c0_139 = arith.constant 0 : index
    %238 = vector.load %arg12[%c0_138, %c0_139] : memref<1x256xf32, #tpu.memory_space<vmem>>, vector<1x256xf32>
    %c0_140 = arith.constant 0 : index
    %c0_141 = arith.constant 0 : index
    %239 = vector.load %arg3[%c0_140, %c0_141] : memref<256x512xf32, #tpu.memory_space<vmem>>, vector<256x512xf32>
    %cst_142 = arith.constant dense<0.000000e+00> : vector<1x512xf32>
    %240 = tpu.matmul %238, %239, %cst_142 {dimension_numbers = #tpu.dot_dimension_numbers<[1], [0], [0], [1], [0, 0, 1, 1], [], []>} : vector<1x256xf32>, vector<256x512xf32>, vector<1x512xf32> -> vector<1x512xf32>
    %c0_143 = arith.constant 0 : index
    %c0_144 = arith.constant 0 : index
    %241 = vector.load %arg4[%c0_143, %c0_144] : memref<1x512xf32, #tpu.memory_space<vmem>>, vector<1x512xf32>
    %242 = arith.addf %240, %241 : vector<1x512xf32>
    %243 = vector.extract_strided_slice %242 {offsets = [0, 0], sizes = [1, 128], strides = [1, 1]} : vector<1x512xf32> to vector<1x128xf32>
    %244 = arith.negf %243 : vector<1x128xf32>
    %245 = math.exp %244 : vector<1x128xf32>
    %cst_145 = arith.constant 1.000000e+00 : f32
    %246 = vector.broadcast %cst_145 : f32 to vector<1x128xf32>
    %247 = arith.addf %246, %245 : vector<1x128xf32>
    %248 = arith.divf %246, %247 : vector<1x128xf32>
    %249 = vector.extract_strided_slice %242 {offsets = [0, 128], sizes = [1, 128], strides = [1, 1]} : vector<1x512xf32> to vector<1x128xf32>
    %250 = arith.negf %249 : vector<1x128xf32>
    %251 = math.exp %250 : vector<1x128xf32>
    %cst_146 = arith.constant 1.000000e+00 : f32
    %252 = vector.broadcast %cst_146 : f32 to vector<1x128xf32>
    %253 = arith.addf %252, %251 : vector<1x128xf32>
    %254 = arith.divf %252, %253 : vector<1x128xf32>
    %255 = vector.extract_strided_slice %242 {offsets = [0, 256], sizes = [1, 128], strides = [1, 1]} : vector<1x512xf32> to vector<1x128xf32>
    %256 = math.tanh %255 : vector<1x128xf32>
    %257 = vector.extract_strided_slice %242 {offsets = [0, 384], sizes = [1, 128], strides = [1, 1]} : vector<1x512xf32> to vector<1x128xf32>
    %258 = arith.negf %257 : vector<1x128xf32>
    %259 = math.exp %258 : vector<1x128xf32>
    %cst_147 = arith.constant 1.000000e+00 : f32
    %260 = vector.broadcast %cst_147 : f32 to vector<1x128xf32>
    %261 = arith.addf %260, %259 : vector<1x128xf32>
    %262 = arith.divf %260, %261 : vector<1x128xf32>
    %c0_148 = arith.constant 0 : index
    %c0_149 = arith.constant 0 : index
    %263 = vector.load %arg14[%c0_148, %c0_149] : memref<1x128xf32, #tpu.memory_space<vmem>>, vector<1x128xf32>
    %264 = arith.mulf %254, %263 : vector<1x128xf32>
    %265 = arith.mulf %248, %256 : vector<1x128xf32>
    %266 = arith.addf %264, %265 : vector<1x128xf32>
    %267 = math.tanh %266 : vector<1x128xf32>
    %268 = arith.mulf %262, %267 : vector<1x128xf32>
    %c0_150 = arith.constant 0 : index
    %c0_151 = arith.constant 0 : index
    %269 = vector.load %arg14[%c0_150, %c0_151] : memref<1x128xf32, #tpu.memory_space<vmem>>, vector<1x128xf32>
    tpu.vector_store %arg14[%c0_150, %c0_151], %266 {strides = array<i32>} : memref<1x128xf32, #tpu.memory_space<vmem>>, vector<1x128xf32>,
    %c0_152 = arith.constant 0 : index
    %c128_153 = arith.constant 128 : index
    %270 = vector.load %arg12[%c0_152, %c128_153] : memref<1x256xf32, #tpu.memory_space<vmem>>, vector<1x128xf32>
    tpu.vector_store %arg12[%c0_152, %c128_153], %268 {strides = array<i32>} : memref<1x256xf32, #tpu.memory_space<vmem>>, vector<1x128xf32>,
    %c6_154 = arith.constant 6 : index
    %c0_155 = arith.constant 0 : index
    %271 = vector.load %arg13[%c6_154, %c0_155] : memref<8x128xf32, #tpu.memory_space<vmem>>, vector<1x128xf32>
    tpu.vector_store %arg13[%c6_154, %c0_155], %268 {strides = array<i32>} : memref<8x128xf32, #tpu.memory_space<vmem>>, vector<1x128xf32>,
    %c7 = arith.constant 7 : index
    %272 = memref.load %arg1[%c7] : memref<8xi32, #tpu.memory_space<smem>>
    %273 = arith.index_cast %272 : i32 to index
    %c0_156 = arith.constant 0 : index
    %274 = vector.load %arg2[%273, %c0_156] : memref<32x128xf32, #tpu.memory_space<vmem>>, vector<1x128xf32>
    %c0_157 = arith.constant 0 : index
    %c0_158 = arith.constant 0 : index
    %275 = vector.load %arg12[%c0_157, %c0_158] : memref<1x256xf32, #tpu.memory_space<vmem>>, vector<1x128xf32>
    tpu.vector_store %arg12[%c0_157, %c0_158], %274 {strides = array<i32>} : memref<1x256xf32, #tpu.memory_space<vmem>>, vector<1x128xf32>,
    %c0_159 = arith.constant 0 : index
    %c0_160 = arith.constant 0 : index
    %276 = vector.load %arg12[%c0_159, %c0_160] : memref<1x256xf32, #tpu.memory_space<vmem>>, vector<1x256xf32>
    %c0_161 = arith.constant 0 : index
    %c0_162 = arith.constant 0 : index
    %277 = vector.load %arg3[%c0_161, %c0_162] : memref<256x512xf32, #tpu.memory_space<vmem>>, vector<256x512xf32>
    %cst_163 = arith.constant dense<0.000000e+00> : vector<1x512xf32>
    %278 = tpu.matmul %276, %277, %cst_163 {dimension_numbers = #tpu.dot_dimension_numbers<[1], [0], [0], [1], [0, 0, 1, 1], [], []>} : vector<1x256xf32>, vector<256x512xf32>, vector<1x512xf32> -> vector<1x512xf32>
    %c0_164 = arith.constant 0 : index
    %c0_165 = arith.constant 0 : index
    %279 = vector.load %arg4[%c0_164, %c0_165] : memref<1x512xf32, #tpu.memory_space<vmem>>, vector<1x512xf32>
    %280 = arith.addf %278, %279 : vector<1x512xf32>
    %281 = vector.extract_strided_slice %280 {offsets = [0, 0], sizes = [1, 128], strides = [1, 1]} : vector<1x512xf32> to vector<1x128xf32>
    %282 = arith.negf %281 : vector<1x128xf32>
    %283 = math.exp %282 : vector<1x128xf32>
    %cst_166 = arith.constant 1.000000e+00 : f32
    %284 = vector.broadcast %cst_166 : f32 to vector<1x128xf32>
    %285 = arith.addf %284, %283 : vector<1x128xf32>
    %286 = arith.divf %284, %285 : vector<1x128xf32>
    %287 = vector.extract_strided_slice %280 {offsets = [0, 128], sizes = [1, 128], strides = [1, 1]} : vector<1x512xf32> to vector<1x128xf32>
    %288 = arith.negf %287 : vector<1x128xf32>
    %289 = math.exp %288 : vector<1x128xf32>
    %cst_167 = arith.constant 1.000000e+00 : f32
    %290 = vector.broadcast %cst_167 : f32 to vector<1x128xf32>
    %291 = arith.addf %290, %289 : vector<1x128xf32>
    %292 = arith.divf %290, %291 : vector<1x128xf32>
    %293 = vector.extract_strided_slice %280 {offsets = [0, 256], sizes = [1, 128], strides = [1, 1]} : vector<1x512xf32> to vector<1x128xf32>
    %294 = math.tanh %293 : vector<1x128xf32>
    %295 = vector.extract_strided_slice %280 {offsets = [0, 384], sizes = [1, 128], strides = [1, 1]} : vector<1x512xf32> to vector<1x128xf32>
    %296 = arith.negf %295 : vector<1x128xf32>
    %297 = math.exp %296 : vector<1x128xf32>
    %cst_168 = arith.constant 1.000000e+00 : f32
    %298 = vector.broadcast %cst_168 : f32 to vector<1x128xf32>
    %299 = arith.addf %298, %297 : vector<1x128xf32>
    %300 = arith.divf %298, %299 : vector<1x128xf32>
    %c0_169 = arith.constant 0 : index
    %c0_170 = arith.constant 0 : index
    %301 = vector.load %arg14[%c0_169, %c0_170] : memref<1x128xf32, #tpu.memory_space<vmem>>, vector<1x128xf32>
    %302 = arith.mulf %292, %301 : vector<1x128xf32>
    %303 = arith.mulf %286, %294 : vector<1x128xf32>
    %304 = arith.addf %302, %303 : vector<1x128xf32>
    %305 = math.tanh %304 : vector<1x128xf32>
    %306 = arith.mulf %300, %305 : vector<1x128xf32>
    %c0_171 = arith.constant 0 : index
    %c0_172 = arith.constant 0 : index
    %307 = vector.load %arg14[%c0_171, %c0_172] : memref<1x128xf32, #tpu.memory_space<vmem>>, vector<1x128xf32>
    tpu.vector_store %arg14[%c0_171, %c0_172], %304 {strides = array<i32>} : memref<1x128xf32, #tpu.memory_space<vmem>>, vector<1x128xf32>,
    %c0_173 = arith.constant 0 : index
    %c128_174 = arith.constant 128 : index
    %308 = vector.load %arg12[%c0_173, %c128_174] : memref<1x256xf32, #tpu.memory_space<vmem>>, vector<1x128xf32>
    tpu.vector_store %arg12[%c0_173, %c128_174], %306 {strides = array<i32>} : memref<1x256xf32, #tpu.memory_space<vmem>>, vector<1x128xf32>,
    %c7_175 = arith.constant 7 : index
    %c0_176 = arith.constant 0 : index
    %309 = vector.load %arg13[%c7_175, %c0_176] : memref<8x128xf32, #tpu.memory_space<vmem>>, vector<1x128xf32>
    tpu.vector_store %arg13[%c7_175, %c0_176], %306 {strides = array<i32>} : memref<8x128xf32, #tpu.memory_space<vmem>>, vector<1x128xf32>,
    %c0_177 = arith.constant 0 : index
    %c0_178 = arith.constant 0 : index
    %310 = vector.load %arg13[%c0_177, %c0_178] : memref<8x128xf32, #tpu.memory_space<vmem>>, vector<8x128xf32>
    %c0_179 = arith.constant 0 : index
    %c0_180 = arith.constant 0 : index
    %311 = vector.load %arg5[%c0_179, %c0_180] : memref<128x128xf32, #tpu.memory_space<vmem>>, vector<128x128xf32>
    %cst_181 = arith.constant dense<0.000000e+00> : vector<8x128xf32>
    %312 = tpu.matmul %310, %311, %cst_181 {dimension_numbers = #tpu.dot_dimension_numbers<[1], [0], [0], [1], [0, 0, 1, 1], [], []>} : vector<8x128xf32>, vector<128x128xf32>, vector<8x128xf32> -> vector<8x128xf32>
    %c0_182 = arith.constant 0 : index
    %c0_183 = arith.constant 0 : index
    %313 = vector.load %arg6[%c0_182, %c0_183] : memref<1x128xf32, #tpu.memory_space<vmem>>, vector<1x128xf32>
    %314 = vector.broadcast %313 : vector<1x128xf32> to vector<8x128xf32>
    %315 = arith.addf %312, %314 : vector<8x128xf32>
    %c0_184 = arith.constant 0 : index
    %c0_185 = arith.constant 0 : index
    %316 = vector.load %arg9[%c0_184, %c0_185] : memref<8x128xf32, #tpu.memory_space<vmem>>, vector<8x128xf32>
    tpu.vector_store %arg9[%c0_184, %c0_185], %315 {strides = array<i32>} : memref<8x128xf32, #tpu.memory_space<vmem>>, vector<8x128xf32>,
    %c0_186 = arith.constant 0 : index
    %c128_187 = arith.constant 128 : index
    %317 = vector.load %arg12[%c0_186, %c128_187] : memref<1x256xf32, #tpu.memory_space<vmem>>, vector<1x128xf32>
    %c0_188 = arith.constant 0 : index
    %c0_189 = arith.constant 0 : index
    %318 = vector.load %arg10[%c0_188, %c0_189] : memref<1x128xf32, #tpu.memory_space<vmem>>, vector<1x128xf32>
    tpu.vector_store %arg10[%c0_188, %c0_189], %317 {strides = array<i32>} : memref<1x128xf32, #tpu.memory_space<vmem>>, vector<1x128xf32>,
    %c0_190 = arith.constant 0 : index
    %c0_191 = arith.constant 0 : index
    %319 = vector.load %arg14[%c0_190, %c0_191] : memref<1x128xf32, #tpu.memory_space<vmem>>, vector<1x128xf32>
    %c0_192 = arith.constant 0 : index
    %c0_193 = arith.constant 0 : index
    %320 = vector.load %arg11[%c0_192, %c0_193] : memref<1x128xf32, #tpu.memory_space<vmem>>, vector<1x128xf32>
    tpu.vector_store %arg11[%c0_192, %c0_193], %319 {strides = array<i32>} : memref<1x128xf32, #tpu.memory_space<vmem>>, vector<1x128xf32>,
    return
  }
  func.func @transform_0(%arg0: i32, %arg1: memref<8xi32, #tpu.memory_space<smem>>) -> (i32, i32) {
    %c0_i32 = arith.constant 0 : i32
    %c0_i32_0 = arith.constant 0 : i32
    %c0_i32_1 = arith.constant 0 : i32
    return %c0_i32, %c0_i32_0 : i32, i32
  }
  func.func @transform_1(%arg0: i32, %arg1: memref<8xi32, #tpu.memory_space<smem>>) -> (i32, i32) {
    %c0_i32 = arith.constant 0 : i32
    %c0_i32_0 = arith.constant 0 : i32
    %c0_i32_1 = arith.constant 0 : i32
    return %c0_i32, %c0_i32_0 : i32, i32
  }
  func.func @transform_2(%arg0: i32, %arg1: memref<8xi32, #tpu.memory_space<smem>>) -> (i32, i32) {
    %c0_i32 = arith.constant 0 : i32
    %c0_i32_0 = arith.constant 0 : i32
    %c0_i32_1 = arith.constant 0 : i32
    return %c0_i32, %c0_i32_0 : i32, i32
  }
  func.func @transform_3(%arg0: i32, %arg1: memref<8xi32, #tpu.memory_space<smem>>) -> (i32, i32) {
    %c0_i32 = arith.constant 0 : i32
    %c0_i32_0 = arith.constant 0 : i32
    %c0_i32_1 = arith.constant 0 : i32
    return %c0_i32, %c0_i32_0 : i32, i32
  }
  func.func @transform_4(%arg0: i32, %arg1: memref<8xi32, #tpu.memory_space<smem>>) -> (i32, i32) {
    %c0_i32 = arith.constant 0 : i32
    %c0_i32_0 = arith.constant 0 : i32
    %c0_i32_1 = arith.constant 0 : i32
    return %c0_i32, %c0_i32_0 : i32, i32
  }
  func.func @transform_5(%arg0: i32, %arg1: memref<8xi32, #tpu.memory_space<smem>>) -> (i32, i32) {
    %c0_i32 = arith.constant 0 : i32
    %c0_i32_0 = arith.constant 0 : i32
    %c0_i32_1 = arith.constant 0 : i32
    return %c0_i32, %c0_i32_0 : i32, i32
  }
  func.func @transform_6(%arg0: i32, %arg1: memref<8xi32, #tpu.memory_space<smem>>) -> (i32, i32) {
    %c0_i32 = arith.constant 0 : i32
    %c0_i32_0 = arith.constant 0 : i32
    %c0_i32_1 = arith.constant 0 : i32
    return %c0_i32, %c0_i32_0 : i32, i32
  }
  func.func @transform_7(%arg0: i32, %arg1: memref<8xi32, #tpu.memory_space<smem>>) -> (i32, i32) {
    %c0_i32 = arith.constant 0 : i32
    %c0_i32_0 = arith.constant 0 : i32
    %c0_i32_1 = arith.constant 0 : i32
    return %c0_i32, %c0_i32_0 : i32, i32
  }
  func.func @transform_8(%arg0: i32, %arg1: memref<8xi32, #tpu.memory_space<smem>>) -> (i32, i32) {
    %c0_i32 = arith.constant 0 : i32
    %c0_i32_0 = arith.constant 0 : i32
    %c0_i32_1 = arith.constant 0 : i32
    return %c0_i32, %c0_i32_0 : i32, i32
  }
  func.func @transform_9(%arg0: i32, %arg1: memref<8xi32, #tpu.memory_space<smem>>) -> (i32, i32) {
    %c0_i32 = arith.constant 0 : i32
    %c0_i32_0 = arith.constant 0 : i32
    %c0_i32_1 = arith.constant 0 : i32
    return %c0_i32, %c0_i32_0 : i32, i32
  }
}

</mosaic_0001>

<llo_original>
// kernel: rnnet_forward_seq.1
$region0: #{rnnet_forward_seq.1}
  #allocation0 [shape = 'u32[]', space=smem, size = 0x4, offset = 0x4, fixed_abs, tag = 'smem constant byte address 0x4 - core index']
  #allocation1 [shape = 'u32[144,128]{1,0:T(1,128)}', space=vmem, size = 0x12000, scoped, tag = 'internal scratch']
  #allocation2 [shape = 'f32[1,256]{1,0:T(1,128)}', space=vmem, size = 0x400, scoped, tag = 'scratch operand']
  #allocation3 [shape = 'f32[8,128]{1,0:T(8,128)}', space=vmem, size = 0x1000, scoped, tag = 'scratch operand']
  #allocation4 [shape = 'f32[1,128]{1,0:T(1,128)}', space=vmem, size = 0x200, scoped, tag = 'scratch operand']
  #allocation5 [shape = 's32[1]{0}', space=sflag, size = 0x4, scoped, tag = 'scoped memory for rnnet_forward_seq.1']
  #allocation6 [shape = 'u8[512]{0}', space=smem, size = 0x200, scoped, tag = 'prefetched SMEM operand 0']
  %s0 = inlined_call_operand.vmem [shape: s32[8], index: 0, kind: input, shape index: {}]
  %s1 = inlined_call_operand.vmem [shape: f32[32,128], index: 1, kind: input, shape index: {}]
  %s2 = inlined_call_operand.hbm [shape: f32[256,512], index: 2, kind: input, shape index: {}]
  %s3 = inlined_call_operand.vmem [shape: f32[1,512], index: 3, kind: input, shape index: {}]
  %s4 = inlined_call_operand.hbm [shape: f32[128,128], index: 4, kind: input, shape index: {}]
  %s5 = inlined_call_operand.vmem [shape: f32[1,128], index: 5, kind: input, shape index: {}]
  %s6 = inlined_call_operand.vmem [shape: f32[1,128], index: 6, kind: input, shape index: {}]
  %s7 = inlined_call_operand.vmem [shape: f32[1,128], index: 7, kind: input, shape index: {}]
  %s8 = inlined_call_operand.hbm [shape: f32[8,128], index: 8, kind: output, shape index: {0}]
  %s9 = inlined_call_operand.vmem [shape: f32[1,128], index: 9, kind: output, shape index: {1}]
  %s10 = inlined_call_operand.vmem [shape: f32[1,128], index: 10, kind: output, shape index: {2}]
  %11 = xla_tuple %s8, %s9, %s10
  %s12 = sld [smem:[#allocation0]]
  $region62: #{rnnet_forward_seq.1} parent=0
    _
  %s14 = ssub.s32 1, %s12
  %s15 = scalar_select 0, %s14, %s12
  %s16 = sshll.u32 %s0, 4
  %s17 = int_to_ptr.vmem [resolvable:$true] %s16
  %19 = dma.vmem_to_smem %s17, 16, [#allocation6], [#allocation5]
  %20 = dma.done [#allocation5], 16
  %21 = sfence
  $region1: #{rnnet_forward_seq.1} parent=0
    #allocation7 [shape = 'u8[524288]{0}', space=vmem, size = 0x80000, scoped, tag = 'input window, operand 2, single buffered']
    #allocation8 [shape = 's32[1]{0}', space=sflag, size = 0x4, scoped, tag = 'scoped memory for rnnet_forward_seq.1']
    #allocation9 [shape = 's32[1]{0}', space=sflag, size = 0x4, scoped, tag = 'scoped memory for rnnet_forward_seq.1']
    #allocation10 [shape = 'u8[65536]{0}', space=vmem, size = 0x10000, scoped, tag = 'input window, operand 4, single buffered']
    #allocation11 [shape = 's32[1]{0}', space=sflag, size = 0x4, scoped, tag = 'scoped memory for rnnet_forward_seq.1']
    #allocation12 [shape = 'u8[4096]{0}', space=vmem, size = 0x1000, scoped, tag = 'output window, operand 0, single buffered']
    %22 = vsyncpa [#allocation8], 0
    %23 = vsyncpa [#allocation11], 0
    %24 = vsyncpa [#allocation9], 0
    // Predicated region
    $region2: #{rnnet_forward_seq.1} parent=1 // pred_check
      _
    $region3: #{rnnet_forward_seq.1} parent=1 // pred_check_branch
      %26 = sbr.rel (0) target = $region5
    $region4: #{rnnet_forward_seq.1} parent=1 // pred_region
      _
    $region5: #{rnnet_forward_seq.1} parent=1 // pred_fallthru
      _
    // Predicated region
    $region6: #{rnnet_forward_seq.1} parent=1 // pred_check
      _
    $region7: #{rnnet_forward_seq.1} parent=1 // pred_check_branch
      %28 = sbr.rel (0) target = $region9
    $region8: #{rnnet_forward_seq.1} parent=1 // pred_region
      %s30 = ssub.s32 16384, 16384
      %31 = vsyncadd [#allocation8], %s30
      %s32 = sshll.u32 [#allocation7], 4
      %s33 = int_to_ptr.vmem [resolvable:$true] %s32
      %38 = dma.hbm_to_vmem [thread:$0]  %s2, 16384, %s33, [#allocation8], 512, 512, 32
    $region9: #{rnnet_forward_seq.1} parent=1 // pred_fallthru
      _
    // Predicated region
    $region10: #{rnnet_forward_seq.1} parent=1 // pred_check
      _
    $region11: #{rnnet_forward_seq.1} parent=1 // pred_check_branch
      %40 = sbr.rel (0) target = $region13
    $region12: #{rnnet_forward_seq.1} parent=1 // pred_region
      _
    $region13: #{rnnet_forward_seq.1} parent=1 // pred_fallthru
      _
    // Predicated region
    $region14: #{rnnet_forward_seq.1} parent=1 // pred_check
      _
    $region15: #{rnnet_forward_seq.1} parent=1 // pred_check_branch
      %42 = sbr.rel (0) target = $region17
    $region16: #{rnnet_forward_seq.1} parent=1 // pred_region
      %s44 = ssub.s32 2048, 2048
      %45 = vsyncadd [#allocation11], %s44
      %s46 = sshll.u32 [#allocation10], 4
      %s47 = int_to_ptr.vmem [resolvable:$true] %s46
      %52 = dma.hbm_to_vmem [thread:$0]  %s4, 2048, %s47, [#allocation11], 128, 128, 8
    $region17: #{rnnet_forward_seq.1} parent=1 // pred_fallthru
      _
    // Predicated region
    $region18: #{rnnet_forward_seq.1} parent=1 // pred_check
      _
    $region19: #{rnnet_forward_seq.1} parent=1 // pred_check_branch
      %54 = sbr.rel (0) target = $region21
    $region20: #{rnnet_forward_seq.1} parent=1 // pred_region
      _
    $region21: #{rnnet_forward_seq.1} parent=1 // pred_fallthru
      _
    // Predicated region
    $region22: #{rnnet_forward_seq.1} parent=1 // pred_check
      _
    $region23: #{rnnet_forward_seq.1} parent=1 // pred_check_branch
      %56 = sbr.rel (0) target = $region25
    $region24: #{rnnet_forward_seq.1} parent=1 // pred_region
      _
    $region25: #{rnnet_forward_seq.1} parent=1 // pred_fallthru
      _
    // Predicated region
    $region26: #{rnnet_forward_seq.1} parent=1 // pred_check
      _
    $region27: #{rnnet_forward_seq.1} parent=1 // pred_check_branch
      %58 = sbr.rel (0) target = $region29
    $region28: #{rnnet_forward_seq.1} parent=1 // pred_region
      _
    $region29: #{rnnet_forward_seq.1} parent=1 // pred_fallthru
      _
    // Predicated region
    $region30: #{rnnet_forward_seq.1} parent=1 // pred_check
      _
    $region31: #{rnnet_forward_seq.1} parent=1 // pred_check_branch
      %60 = sbr.rel (0) target = $region33
    $region32: #{rnnet_forward_seq.1} parent=1 // pred_region
      %61 = dma.done [#allocation8], 16384
    $region33: #{rnnet_forward_seq.1} parent=1 // pred_fallthru
      _
    // Predicated region
    $region34: #{rnnet_forward_seq.1} parent=1 // pred_check
      _
    $region35: #{rnnet_forward_seq.1} parent=1 // pred_check_branch
      %63 = sbr.rel (0) target = $region37
    $region36: #{rnnet_forward_seq.1} parent=1 // pred_region
      %64 = dma.done [#allocation11], 2048
    $region37: #{rnnet_forward_seq.1} parent=1 // pred_fallthru
      _
    %65 = vst [vmem:[#allocation3] sm:$0xff] 0.0
    %v66 = vld [vmem:[%s6] sm:$0x1]
    %v67 = vlaneseq
    %vm68 = vcmp.ge.s32.totalorder %v67, 0
    %vm69 = vcmp.lt.s32.totalorder %v67, 128
    %vm70 = vmand %vm68, %vm69
    %71 = vst.msk [vmem:[#allocation2 + $0x1] sm:$0x1] %vm70, %v66
    %v72 = vld [vmem:[%s7] sm:$0x1]
    %73 = vst [vmem:[#allocation4] sm:$0x1] %v72
    %s74 = sld [smem:[#allocation6]]
    %s75 = scalar_lea.vmem %s1, %s74
    %v76 = vld [vmem:[%s75] sm:$0x1]
    %77 = vst.msk [vmem:[#allocation2] sm:$0x1] %vm70, %v76
    %v78 = vld [vmem:[#allocation2] sm:$0x3]
    %v79 = vld [vmem:[#allocation7] sm:$0xff]
    %v80 = vld [vmem:[#allocation7 + $0x8] sm:$0xff]
    %v81 = vld [vmem:[#allocation7 + $0x10] sm:$0xff]
    %v82 = vld [vmem:[#allocation7 + $0x18] sm:$0xff]
    %v83 = vld [vmem:[#allocation7 + $0x20] sm:$0xff]
    %v84 = vld [vmem:[#allocation7 + $0x28] sm:$0xff]
    %v85 = vld [vmem:[#allocation7 + $0x30] sm:$0xff]
    %v86 = vld [vmem:[#allocation7 + $0x38] sm:$0xff]
    %v87 = vld [vmem:[#allocation7 + $0x40] sm:$0xff]
    %v88 = vld [vmem:[#allocation7 + $0x48] sm:$0xff]
    %v89 = vld [vmem:[#allocation7 + $0x50] sm:$0xff]
    %v90 = vld [vmem:[#allocation7 + $0x58] sm:$0xff]
    %v91 = vld [vmem:[#allocation7 + $0x60] sm:$0xff]
    %v92 = vld [vmem:[#allocation7 + $0x68] sm:$0xff]
    %v93 = vld [vmem:[#allocation7 + $0x70] sm:$0xff]
    %v94 = vld [vmem:[#allocation7 + $0x78] sm:$0xff]
    %v95 = vld [vmem:[#allocation7 + $0x80] sm:$0xff]
    %v96 = vld [vmem:[#allocation7 + $0x88] sm:$0xff]
    %v97 = vld [vmem:[#allocation7 + $0x90] sm:$0xff]
    %v98 = vld [vmem:[#allocation7 + $0x98] sm:$0xff]
    %v99 = vld [vmem:[#allocation7 + $0xa0] sm:$0xff]
    %v100 = vld [vmem:[#allocation7 + $0xa8] sm:$0xff]
    %v101 = vld [vmem:[#allocation7 + $0xb0] sm:$0xff]
    %v102 = vld [vmem:[#allocation7 + $0xb8] sm:$0xff]
    %v103 = vld [vmem:[#allocation7 + $0xc0] sm:$0xff]
    %v104 = vld [vmem:[#allocation7 + $0xc8] sm:$0xff]
    %v105 = vld [vmem:[#allocation7 + $0xd0] sm:$0xff]
    %v106 = vld [vmem:[#allocation7 + $0xd8] sm:$0xff]
    %v107 = vld [vmem:[#allocation7 + $0xe0] sm:$0xff]
    %v108 = vld [vmem:[#allocation7 + $0xe8] sm:$0xff]
    %v109 = vld [vmem:[#allocation7 + $0xf0] sm:$0xff]
    %v110 = vld [vmem:[#allocation7 + $0xf8] sm:$0xff]
    %v111 = vld [vmem:[#allocation7 + $0x100] sm:$0xff]
    %v112 = vld [vmem:[#allocation7 + $0x108] sm:$0xff]
    %v113 = vld [vmem:[#allocation7 + $0x110] sm:$0xff]
    %v114 = vld [vmem:[#allocation7 + $0x118] sm:$0xff]
    %v115 = vld [vmem:[#allocation7 + $0x120] sm:$0xff]
    %v116 = vld [vmem:[#allocation7 + $0x128] sm:$0xff]
    %v117 = vld [vmem:[#allocation7 + $0x130] sm:$0xff]
    %v118 = vld [vmem:[#allocation7 + $0x138] sm:$0xff]
    %v119 = vld [vmem:[#allocation7 + $0x140] sm:$0xff]
    %v120 = vld [vmem:[#allocation7 + $0x148] sm:$0xff]
    %v121 = vld [vmem:[#allocation7 + $0x150] sm:$0xff]
    %v122 = vld [vmem:[#allocation7 + $0x158] sm:$0xff]
    %v123 = vld [vmem:[#allocation7 + $0x160] sm:$0xff]
    %v124 = vld [vmem:[#allocation7 + $0x168] sm:$0xff]
    %v125 = vld [vmem:[#allocation7 + $0x170] sm:$0xff]
    %v126 = vld [vmem:[#allocation7 + $0x178] sm:$0xff]
    %v127 = vld [vmem:[#allocation7 + $0x180] sm:$0xff]
    %v128 = vld [vmem:[#allocation7 + $0x188] sm:$0xff]
    %v129 = vld [vmem:[#allocation7 + $0x190] sm:$0xff]
    %v130 = vld [vmem:[#allocation7 + $0x198] sm:$0xff]
    %v131 = vld [vmem:[#allocation7 + $0x1a0] sm:$0xff]
    %v132 = vld [vmem:[#allocation7 + $0x1a8] sm:$0xff]
    %v133 = vld [vmem:[#allocation7 + $0x1b0] sm:$0xff]
    %v134 = vld [vmem:[#allocation7 + $0x1b8] sm:$0xff]
    %v135 = vld [vmem:[#allocation7 + $0x1c0] sm:$0xff]
    %v136 = vld [vmem:[#allocation7 + $0x1c8] sm:$0xff]
    %v137 = vld [vmem:[#allocation7 + $0x1d0] sm:$0xff]
    %v138 = vld [vmem:[#allocation7 + $0x1d8] sm:$0xff]
    %v139 = vld [vmem:[#allocation7 + $0x1e0] sm:$0xff]
    %v140 = vld [vmem:[#allocation7 + $0x1e8] sm:$0xff]
    %v141 = vld [vmem:[#allocation7 + $0x1f0] sm:$0xff]
    %v142 = vld [vmem:[#allocation7 + $0x1f8] sm:$0xff]
    %v143 = vld [vmem:[#allocation7 + $0x200] sm:$0xff]
    %v144 = vld [vmem:[#allocation7 + $0x208] sm:$0xff]
    %v145 = vld [vmem:[#allocation7 + $0x210] sm:$0xff]
    %v146 = vld [vmem:[#allocation7 + $0x218] sm:$0xff]
    %v147 = vld [vmem:[#allocation7 + $0x220] sm:$0xff]
    %v148 = vld [vmem:[#allocation7 + $0x228] sm:$0xff]
    %v149 = vld [vmem:[#allocation7 + $0x230] sm:$0xff]
    %v150 = vld [vmem:[#allocation7 + $0x238] sm:$0xff]
    %v151 = vld [vmem:[#allocation7 + $0x240] sm:$0xff]
    %v152 = vld [vmem:[#allocation7 + $0x248] sm:$0xff]
    %v153 = vld [vmem:[#allocation7 + $0x250] sm:$0xff]
    %v154 = vld [vmem:[#allocation7 + $0x258] sm:$0xff]
    %v155 = vld [vmem:[#allocation7 + $0x260] sm:$0xff]
    %v156 = vld [vmem:[#allocation7 + $0x268] sm:$0xff]
    %v157 = vld [vmem:[#allocation7 + $0x270] sm:$0xff]
    %v158 = vld [vmem:[#allocation7 + $0x278] sm:$0xff]
    %v159 = vld [vmem:[#allocation7 + $0x280] sm:$0xff]
    %v160 = vld [vmem:[#allocation7 + $0x288] sm:$0xff]
    %v161 = vld [vmem:[#allocation7 + $0x290] sm:$0xff]
    %v162 = vld [vmem:[#allocation7 + $0x298] sm:$0xff]
    %v163 = vld [vmem:[#allocation7 + $0x2a0] sm:$0xff]
    %v164 = vld [vmem:[#allocation7 + $0x2a8] sm:$0xff]
    %v165 = vld [vmem:[#allocation7 + $0x2b0] sm:$0xff]
    %v166 = vld [vmem:[#allocation7 + $0x2b8] sm:$0xff]
    %v167 = vld [vmem:[#allocation7 + $0x2c0] sm:$0xff]
    %v168 = vld [vmem:[#allocation7 + $0x2c8] sm:$0xff]
    %v169 = vld [vmem:[#allocation7 + $0x2d0] sm:$0xff]
    %v170 = vld [vmem:[#allocation7 + $0x2d8] sm:$0xff]
    %v171 = vld [vmem:[#allocation7 + $0x2e0] sm:$0xff]
    %v172 = vld [vmem:[#allocation7 + $0x2e8] sm:$0xff]
    %v173 = vld [vmem:[#allocation7 + $0x2f0] sm:$0xff]
    %v174 = vld [vmem:[#allocation7 + $0x2f8] sm:$0xff]
    %v175 = vld [vmem:[#allocation7 + $0x300] sm:$0xff]
    %v176 = vld [vmem:[#allocation7 + $0x308] sm:$0xff]
    %v177 = vld [vmem:[#allocation7 + $0x310] sm:$0xff]
    %v178 = vld [vmem:[#allocation7 + $0x318] sm:$0xff]
    %v179 = vld [vmem:[#allocation7 + $0x320] sm:$0xff]
    %v180 = vld [vmem:[#allocation7 + $0x328] sm:$0xff]
    %v181 = vld [vmem:[#allocation7 + $0x330] sm:$0xff]
    %v182 = vld [vmem:[#allocation7 + $0x338] sm:$0xff]
    %v183 = vld [vmem:[#allocation7 + $0x340] sm:$0xff]
    %v184 = vld [vmem:[#allocation7 + $0x348] sm:$0xff]
    %v185 = vld [vmem:[#allocation7 + $0x350] sm:$0xff]
    %v186 = vld [vmem:[#allocation7 + $0x358] sm:$0xff]
    %v187 = vld [vmem:[#allocation7 + $0x360] sm:$0xff]
    %v188 = vld [vmem:[#allocation7 + $0x368] sm:$0xff]
    %v189 = vld [vmem:[#allocation7 + $0x370] sm:$0xff]
    %v190 = vld [vmem:[#allocation7 + $0x378] sm:$0xff]
    %v191 = vld [vmem:[#allocation7 + $0x380] sm:$0xff]
    %v192 = vld [vmem:[#allocation7 + $0x388] sm:$0xff]
    %v193 = vld [vmem:[#allocation7 + $0x390] sm:$0xff]
    %v194 = vld [vmem:[#allocation7 + $0x398] sm:$0xff]
    %v195 = vld [vmem:[#allocation7 + $0x3a0] sm:$0xff]
    %v196 = vld [vmem:[#allocation7 + $0x3a8] sm:$0xff]
    %v197 = vld [vmem:[#allocation7 + $0x3b0] sm:$0xff]
    %v198 = vld [vmem:[#allocation7 + $0x3b8] sm:$0xff]
    %v199 = vld [vmem:[#allocation7 + $0x3c0] sm:$0xff]
    %v200 = vld [vmem:[#allocation7 + $0x3c8] sm:$0xff]
    %v201 = vld [vmem:[#allocation7 + $0x3d0] sm:$0xff]
    %v202 = vld [vmem:[#allocation7 + $0x3d8] sm:$0xff]
    %v203 = vld [vmem:[#allocation7 + $0x3e0] sm:$0xff]
    %v204 = vld [vmem:[#allocation7 + $0x3e8] sm:$0xff]
    %v205 = vld [vmem:[#allocation7 + $0x3f0] sm:$0xff]
    %v206 = vld [vmem:[#allocation7 + $0x3f8] sm:$0xff]
    %v207 = vld [vmem:[%s3] sm:$0xf]
    %v209 = vlaneseq
    %v210 = vshrl.u32 %v209, 7
    %v211 = vsub.s32 0, %v210
    %v212 = vrot.slane %v78, %v211
    %v213 = vlaneseq
    %v214 = vshrl.u32 %v213, 7
    %v215 = vsub.s32 1, %v214
    %v216 = vrot.slane %v78, %v215
    %v220 = vlaneseq
    %v221 = vshrl.u32 %v220, 7
    %v222 = vsub.s32 0, %v221
    %v223 = vrot.slane %v207, %v222
    %v224 = vlaneseq
    %v225 = vshrl.u32 %v224, 7
    %v226 = vsub.s32 1, %v225
    %v227 = vrot.slane %v207, %v226
    %v228 = vlaneseq
    %v229 = vshrl.u32 %v228, 7
    %v230 = vsub.s32 2, %v229
    %v231 = vrot.slane %v207, %v230
    %v232 = vlaneseq
    %v233 = vshrl.u32 %v232, 7
    %v234 = vsub.s32 3, %v233
    %v235 = vrot.slane %v207, %v234
    %240 = vmatprep.subr.mxu0 %v80
    %241 = vmatpush1.msra.mxu0 %v79
    %242 = vmatprep.subr.mxu0 %v84
    %243 = vmatpush1.msra.mxu0 %v83
    %244 = vmatprep.subr.mxu0 %v88
    %245 = vmatpush1.msra.mxu0 %v87
    %246 = vmatprep.subr.mxu0 %v92
    %247 = vmatpush1.msra.mxu0 %v91
    %248 = vmatprep.subr.mxu0 %v96
    %249 = vmatpush1.msra.mxu0 %v95
    %250 = vmatprep.subr.mxu0 %v100
    %251 = vmatpush1.msra.mxu0 %v99
    %252 = vmatprep.subr.mxu0 %v104
    %253 = vmatpush1.msra.mxu0 %v103
    %254 = vmatprep.subr.mxu0 %v108
    %255 = vmatpush1.msra.mxu0 %v107
    %256 = vmatprep.subr.mxu0 %v112
    %257 = vmatpush1.msra.mxu0 %v111
    %258 = vmatprep.subr.mxu0 %v116
    %259 = vmatpush1.msra.mxu0 %v115
    %260 = vmatprep.subr.mxu0 %v120
    %261 = vmatpush1.msra.mxu0 %v119
    %262 = vmatprep.subr.mxu0 %v124
    %263 = vmatpush1.msra.mxu0 %v123
    %264 = vmatprep.subr.mxu0 %v128
    %265 = vmatpush1.msra.mxu0 %v127
    %266 = vmatprep.subr.mxu0 %v132
    %267 = vmatpush1.msra.mxu0 %v131
    %268 = vmatprep.subr.mxu0 %v136
    %269 = vmatpush1.msra.mxu0 %v135
    %270 = vmatprep.subr.mxu0 %v140
    %271 = vmatpush1.msra.mxu0 %v139
    %272 = vmatprep.subr.mxu0 %v144
    %273 = vmatpush1.msra.mxu0 %v143
    %274 = vmatprep.subr.mxu0 %v148
    %275 = vmatpush1.msra.mxu0 %v147
    %276 = vmatprep.subr.mxu0 %v152
    %277 = vmatpush1.msra.mxu0 %v151
    %278 = vmatprep.subr.mxu0 %v156
    %279 = vmatpush1.msra.mxu0 %v155
    %280 = vmatprep.subr.mxu0 %v160
    %281 = vmatpush1.msra.mxu0 %v159
    %282 = vmatprep.subr.mxu0 %v164
    %283 = vmatpush1.msra.mxu0 %v163
    %284 = vmatprep.subr.mxu0 %v168
    %285 = vmatpush1.msra.mxu0 %v167
    %286 = vmatprep.subr.mxu0 %v172
    %287 = vmatpush1.msra.mxu0 %v171
    %288 = vmatprep.subr.mxu0 %v176
    %289 = vmatpush1.msra.mxu0 %v175
    %290 = vmatprep.subr.mxu0 %v180
    %291 = vmatpush1.msra.mxu0 %v179
    %292 = vmatprep.subr.mxu0 %v184
    %293 = vmatpush1.msra.mxu0 %v183
    %294 = vmatprep.subr.mxu0 %v188
    %295 = vmatpush1.msra.mxu0 %v187
    %296 = vmatprep.subr.mxu0 %v192
    %297 = vmatpush1.msra.mxu0 %v191
    %298 = vmatprep.subr.mxu0 %v196
    %299 = vmatpush1.msra.mxu0 %v195
    %300 = vmatprep.subr.mxu0 %v200
    %301 = vmatpush1.msra.mxu0 %v199
    %302 = vmatprep.subr.mxu0 %v204
    %303 = vmatpush1.msra.mxu0 %v203
    %304 = vmatprep.mubr.f32.mxu0 %v216
    %305 = vmatmul.mubr.f32.gmra.mrb[0].mxu0 %v212
    %v306 = vpop.f32.mrb[0].mxu0
    %v307 = vadd.f32 %v223, %v306
    %v308 = vpop.f32.mrb[0].mxu0
    %v309 = vadd.f32 %v227, %v308
    %310 = vdwg.mxu0
    %311 = vmatprep.subr.mxu0 %v82
    %312 = vmatpush1.msra.mxu0 %v81
    %313 = vmatprep.subr.mxu0 %v86
    %314 = vmatpush1.msra.mxu0 %v85
    %315 = vmatprep.subr.mxu0 %v90
    %316 = vmatpush1.msra.mxu0 %v89
    %317 = vmatprep.subr.mxu0 %v94
    %318 = vmatpush1.msra.mxu0 %v93
    %319 = vmatprep.subr.mxu0 %v98
    %320 = vmatpush1.msra.mxu0 %v97
    %321 = vmatprep.subr.mxu0 %v102
    %322 = vmatpush1.msra.mxu0 %v101
    %323 = vmatprep.subr.mxu0 %v106
    %324 = vmatpush1.msra.mxu0 %v105
    %325 = vmatprep.subr.mxu0 %v110
    %326 = vmatpush1.msra.mxu0 %v109
    %327 = vmatprep.subr.mxu0 %v114
    %328 = vmatpush1.msra.mxu0 %v113
    %329 = vmatprep.subr.mxu0 %v118
    %330 = vmatpush1.msra.mxu0 %v117
    %331 = vmatprep.subr.mxu0 %v122
    %332 = vmatpush1.msra.mxu0 %v121
    %333 = vmatprep.subr.mxu0 %v126
    %334 = vmatpush1.msra.mxu0 %v125
    %335 = vmatprep.subr.mxu0 %v130
    %336 = vmatpush1.msra.mxu0 %v129
    %337 = vmatprep.subr.mxu0 %v134
    %338 = vmatpush1.msra.mxu0 %v133
    %339 = vmatprep.subr.mxu0 %v138
    %340 = vmatpush1.msra.mxu0 %v137
    %341 = vmatprep.subr.mxu0 %v142
    %342 = vmatpush1.msra.mxu0 %v141
    %343 = vmatprep.subr.mxu0 %v146
    %344 = vmatpush1.msra.mxu0 %v145
    %345 = vmatprep.subr.mxu0 %v150
    %346 = vmatpush1.msra.mxu0 %v149
    %347 = vmatprep.subr.mxu0 %v154
    %348 = vmatpush1.msra.mxu0 %v153
    %349 = vmatprep.subr.mxu0 %v158
    %350 = vmatpush1.msra.mxu0 %v157
    %351 = vmatprep.subr.mxu0 %v162
    %352 = vmatpush1.msra.mxu0 %v161
    %353 = vmatprep.subr.mxu0 %v166
    %354 = vmatpush1.msra.mxu0 %v165
    %355 = vmatprep.subr.mxu0 %v170
    %356 = vmatpush1.msra.mxu0 %v169
    %357 = vmatprep.subr.mxu0 %v174
    %358 = vmatpush1.msra.mxu0 %v173
    %359 = vmatprep.subr.mxu0 %v178
    %360 = vmatpush1.msra.mxu0 %v177
    %361 = vmatprep.subr.mxu0 %v182
    %362 = vmatpush1.msra.mxu0 %v181
    %363 = vmatprep.subr.mxu0 %v186
    %364 = vmatpush1.msra.mxu0 %v185
    %365 = vmatprep.subr.mxu0 %v190
    %366 = vmatpush1.msra.mxu0 %v189
    %367 = vmatprep.subr.mxu0 %v194
    %368 = vmatpush1.msra.mxu0 %v193
    %369 = vmatprep.subr.mxu0 %v198
    %370 = vmatpush1.msra.mxu0 %v197
    %371 = vmatprep.subr.mxu0 %v202
    %372 = vmatpush1.msra.mxu0 %v201
    %373 = vmatprep.subr.mxu0 %v206
    %374 = vmatpush1.msra.mxu0 %v205
    %375 = vmatprep.mubr.f32.mxu0 %v216
    %376 = vmatmul.mubr.f32.gmra.mrb[0].mxu0 %v212
    %v377 = vpop.f32.mrb[0].mxu0
    %v378 = vadd.f32 %v231, %v377
    %v379 = vpop.f32.mrb[0].mxu0
    %v380 = vadd.f32 %v235, %v379
    %381 = vdwg.mxu0
    %v382 = vxor.u32 %v307, 2147483648
    %v383 = vmul.f32 %v382, 1.442695
    %v384 = vpow.pop %v383
    %v385 = vadd.f32 %v384, 1.0
    %v386 = vrcp.pop %v385
    %v387 = vmul.f32 1.0, %v386
    %v388 = vxor.u32 %v309, 2147483648
    %v389 = vmul.f32 %v388, 1.442695
    %v390 = vpow.pop %v389
    %v391 = vadd.f32 %v390, 1.0
    %v392 = vrcp.pop %v391
    %v393 = vmul.f32 1.0, %v392
    %v394 = vtanh.pop %v378
    %v395 = vxor.u32 %v380, 2147483648
    %v396 = vmul.f32 %v395, 1.442695
    %v397 = vpow.pop %v396
    %v398 = vadd.f32 %v397, 1.0
    %v399 = vrcp.pop %v398
    %v400 = vmul.f32 1.0, %v399
    %v401 = vld [vmem:[#allocation4] sm:$0x1]
    %v402 = vmul.f32 %v393, %v401
    %v403 = vmul.f32 %v387, %v394
    %v404 = vadd.f32 %v402, %v403
    %v405 = vtanh.pop %v404
    %v406 = vmul.f32 %v400, %v405
    %407 = vst [vmem:[#allocation4] sm:$0x1] %v404
    %408 = vst.msk [vmem:[#allocation2 + $0x1] sm:$0x1] %vm70, %v406
    %409 = vst [vmem:[#allocation3] sm:$0x1] %v406
    %s410 = sld [smem:[#allocation6 + $0x1]]
    %s411 = scalar_lea.vmem %s1, %s410
    %v412 = vld [vmem:[%s411] sm:$0x1]
    %413 = vst.msk [vmem:[#allocation2] sm:$0x1] %vm70, %v412
    %v414 = vld [vmem:[#allocation2] sm:$0x3]
    %v415 = vld [vmem:[#allocation7] sm:$0xff]
    %v416 = vld [vmem:[#allocation7 + $0x8] sm:$0xff]
    %v417 = vld [vmem:[#allocation7 + $0x10] sm:$0xff]
    %v418 = vld [vmem:[#allocation7 + $0x18] sm:$0xff]
    %v419 = vld [vmem:[#allocation7 + $0x20] sm:$0xff]
    %v420 = vld [vmem:[#allocation7 + $0x28] sm:$0xff]
    %v421 = vld [vmem:[#allocation7 + $0x30] sm:$0xff]
    %v422 = vld [vmem:[#allocation7 + $0x38] sm:$0xff]
    %v423 = vld [vmem:[#allocation7 + $0x40] sm:$0xff]
    %v424 = vld [vmem:[#allocation7 + $0x48] sm:$0xff]
    %v425 = vld [vmem:[#allocation7 + $0x50] sm:$0xff]
    %v426 = vld [vmem:[#allocation7 + $0x58] sm:$0xff]
    %v427 = vld [vmem:[#allocation7 + $0x60] sm:$0xff]
    %v428 = vld [vmem:[#allocation7 + $0x68] sm:$0xff]
    %v429 = vld [vmem:[#allocation7 + $0x70] sm:$0xff]
    %v430 = vld [vmem:[#allocation7 + $0x78] sm:$0xff]
    %v431 = vld [vmem:[#allocation7 + $0x80] sm:$0xff]
    %v432 = vld [vmem:[#allocation7 + $0x88] sm:$0xff]
    %v433 = vld [vmem:[#allocation7 + $0x90] sm:$0xff]
    %v434 = vld [vmem:[#allocation7 + $0x98] sm:$0xff]
    %v435 = vld [vmem:[#allocation7 + $0xa0] sm:$0xff]
    %v436 = vld [vmem:[#allocation7 + $0xa8] sm:$0xff]
    %v437 = vld [vmem:[#allocation7 + $0xb0] sm:$0xff]
    %v438 = vld [vmem:[#allocation7 + $0xb8] sm:$0xff]
    %v439 = vld [vmem:[#allocation7 + $0xc0] sm:$0xff]
    %v440 = vld [vmem:[#allocation7 + $0xc8] sm:$0xff]
    %v441 = vld [vmem:[#allocation7 + $0xd0] sm:$0xff]
    %v442 = vld [vmem:[#allocation7 + $0xd8] sm:$0xff]
    %v443 = vld [vmem:[#allocation7 + $0xe0] sm:$0xff]
    %v444 = vld [vmem:[#allocation7 + $0xe8] sm:$0xff]
    %v445 = vld [vmem:[#allocation7 + $0xf0] sm:$0xff]
    %v446 = vld [vmem:[#allocation7 + $0xf8] sm:$0xff]
    %v447 = vld [vmem:[#allocation7 + $0x100] sm:$0xff]
    %v448 = vld [vmem:[#allocation7 + $0x108] sm:$0xff]
    %v449 = vld [vmem:[#allocation7 + $0x110] sm:$0xff]
    %v450 = vld [vmem:[#allocation7 + $0x118] sm:$0xff]
    %v451 = vld [vmem:[#allocation7 + $0x120] sm:$0xff]
    %v452 = vld [vmem:[#allocation7 + $0x128] sm:$0xff]
    %v453 = vld [vmem:[#allocation7 + $0x130] sm:$0xff]
    %v454 = vld [vmem:[#allocation7 + $0x138] sm:$0xff]
    %v455 = vld [vmem:[#allocation7 + $0x140] sm:$0xff]
    %v456 = vld [vmem:[#allocation7 + $0x148] sm:$0xff]
    %v457 = vld [vmem:[#allocation7 + $0x150] sm:$0xff]
    %v458 = vld [vmem:[#allocation7 + $0x158] sm:$0xff]
    %v459 = vld [vmem:[#allocation7 + $0x160] sm:$0xff]
    %v460 = vld [vmem:[#allocation7 + $0x168] sm:$0xff]
    %v461 = vld [vmem:[#allocation7 + $0x170] sm:$0xff]
    %v462 = vld [vmem:[#allocation7 + $0x178] sm:$0xff]
    %v463 = vld [vmem:[#allocation7 + $0x180] sm:$0xff]
    %v464 = vld [vmem:[#allocation7 + $0x188] sm:$0xff]
    %v465 = vld [vmem:[#allocation7 + $0x190] sm:$0xff]
    %v466 = vld [vmem:[#allocation7 + $0x198] sm:$0xff]
    %v467 = vld [vmem:[#allocation7 + $0x1a0] sm:$0xff]
    %v468 = vld [vmem:[#allocation7 + $0x1a8] sm:$0xff]
    %v469 = vld [vmem:[#allocation7 + $0x1b0] sm:$0xff]
    %v470 = vld [vmem:[#allocation7 + $0x1b8] sm:$0xff]
    %v471 = vld [vmem:[#allocation7 + $0x1c0] sm:$0xff]
    %v472 = vld [vmem:[#allocation7 + $0x1c8] sm:$0xff]
    %v473 = vld [vmem:[#allocation7 + $0x1d0] sm:$0xff]
    %v474 = vld [vmem:[#allocation7 + $0x1d8] sm:$0xff]
    %v475 = vld [vmem:[#allocation7 + $0x1e0] sm:$0xff]
    %v476 = vld [vmem:[#allocation7 + $0x1e8] sm:$0xff]
    %v477 = vld [vmem:[#allocation7 + $0x1f0] sm:$0xff]
    %v478 = vld [vmem:[#allocation7 + $0x1f8] sm:$0xff]
    %v479 = vld [vmem:[#allocation7 + $0x200] sm:$0xff]
    %v480 = vld [vmem:[#allocation7 + $0x208] sm:$0xff]
    %v481 = vld [vmem:[#allocation7 + $0x210] sm:$0xff]
    %v482 = vld [vmem:[#allocation7 + $0x218] sm:$0xff]
    %v483 = vld [vmem:[#allocation7 + $0x220] sm:$0xff]
    %v484 = vld [vmem:[#allocation7 + $0x228] sm:$0xff]
    %v485 = vld [vmem:[#allocation7 + $0x230] sm:$0xff]
    %v486 = vld [vmem:[#allocation7 + $0x238] sm:$0xff]
    %v487 = vld [vmem:[#allocation7 + $0x240] sm:$0xff]
    %v488 = vld [vmem:[#allocation7 + $0x248] sm:$0xff]
    %v489 = vld [vmem:[#allocation7 + $0x250] sm:$0xff]
    %v490 = vld [vmem:[#allocation7 + $0x258] sm:$0xff]
    %v491 = vld [vmem:[#allocation7 + $0x260] sm:$0xff]
    %v492 = vld [vmem:[#allocation7 + $0x268] sm:$0xff]
    %v493 = vld [vmem:[#allocation7 + $0x270] sm:$0xff]
    %v494 = vld [vmem:[#allocation7 + $0x278] sm:$0xff]
    %v495 = vld [vmem:[#allocation7 + $0x280] sm:$0xff]
    %v496 = vld [vmem:[#allocation7 + $0x288] sm:$0xff]
    %v497 = vld [vmem:[#allocation7 + $0x290] sm:$0xff]
    %v498 = vld [vmem:[#allocation7 + $0x298] sm:$0xff]
    %v499 = vld [vmem:[#allocation7 + $0x2a0] sm:$0xff]
    %v500 = vld [vmem:[#allocation7 + $0x2a8] sm:$0xff]
    %v501 = vld [vmem:[#allocation7 + $0x2b0] sm:$0xff]
    %v502 = vld [vmem:[#allocation7 + $0x2b8] sm:$0xff]
    %v503 = vld [vmem:[#allocation7 + $0x2c0] sm:$0xff]
    %v504 = vld [vmem:[#allocation7 + $0x2c8] sm:$0xff]
    %v505 = vld [vmem:[#allocation7 + $0x2d0] sm:$0xff]
    %v506 = vld [vmem:[#allocation7 + $0x2d8] sm:$0xff]
    %v507 = vld [vmem:[#allocation7 + $0x2e0] sm:$0xff]
    %v508 = vld [vmem:[#allocation7 + $0x2e8] sm:$0xff]
    %v509 = vld [vmem:[#allocation7 + $0x2f0] sm:$0xff]
    %v510 = vld [vmem:[#allocation7 + $0x2f8] sm:$0xff]
    %v511 = vld [vmem:[#allocation7 + $0x300] sm:$0xff]
    %v512 = vld [vmem:[#allocation7 + $0x308] sm:$0xff]
    %v513 = vld [vmem:[#allocation7 + $0x310] sm:$0xff]
    %v514 = vld [vmem:[#allocation7 + $0x318] sm:$0xff]
    %v515 = vld [vmem:[#allocation7 + $0x320] sm:$0xff]
    %v516 = vld [vmem:[#allocation7 + $0x328] sm:$0xff]
    %v517 = vld [vmem:[#allocation7 + $0x330] sm:$0xff]
    %v518 = vld [vmem:[#allocation7 + $0x338] sm:$0xff]
    %v519 = vld [vmem:[#allocation7 + $0x340] sm:$0xff]
    %v520 = vld [vmem:[#allocation7 + $0x348] sm:$0xff]
    %v521 = vld [vmem:[#allocation7 + $0x350] sm:$0xff]
    %v522 = vld [vmem:[#allocation7 + $0x358] sm:$0xff]
    %v523 = vld [vmem:[#allocation7 + $0x360] sm:$0xff]
    %v524 = vld [vmem:[#allocation7 + $0x368] sm:$0xff]
    %v525 = vld [vmem:[#allocation7 + $0x370] sm:$0xff]
    %v526 = vld [vmem:[#allocation7 + $0x378] sm:$0xff]
    %v527 = vld [vmem:[#allocation7 + $0x380] sm:$0xff]
    %v528 = vld [vmem:[#allocation7 + $0x388] sm:$0xff]
    %v529 = vld [vmem:[#allocation7 + $0x390] sm:$0xff]
    %v530 = vld [vmem:[#allocation7 + $0x398] sm:$0xff]
    %v531 = vld [vmem:[#allocation7 + $0x3a0] sm:$0xff]
    %v532 = vld [vmem:[#allocation7 + $0x3a8] sm:$0xff]
    %v533 = vld [vmem:[#allocation7 + $0x3b0] sm:$0xff]
    %v534 = vld [vmem:[#allocation7 + $0x3b8] sm:$0xff]
    %v535 = vld [vmem:[#allocation7 + $0x3c0] sm:$0xff]
    %v536 = vld [vmem:[#allocation7 + $0x3c8] sm:$0xff]
    %v537 = vld [vmem:[#allocation7 + $0x3d0] sm:$0xff]
    %v538 = vld [vmem:[#allocation7 + $0x3d8] sm:$0xff]
    %v539 = vld [vmem:[#allocation7 + $0x3e0] sm:$0xff]
    %v540 = vld [vmem:[#allocation7 + $0x3e8] sm:$0xff]
    %v541 = vld [vmem:[#allocation7 + $0x3f0] sm:$0xff]
    %v542 = vld [vmem:[#allocation7 + $0x3f8] sm:$0xff]
    %v543 = vld [vmem:[%s3] sm:$0xf]
    %v545 = vlaneseq
    %v546 = vshrl.u32 %v545, 7
    %v547 = vsub.s32 0, %v546
    %v548 = vrot.slane %v414, %v547
    %v549 = vlaneseq
    %v550 = vshrl.u32 %v549, 7
    %v551 = vsub.s32 1, %v550
    %v552 = vrot.slane %v414, %v551
    %v556 = vlaneseq
    %v557 = vshrl.u32 %v556, 7
    %v558 = vsub.s32 0, %v557
    %v559 = vrot.slane %v543, %v558
    %v560 = vlaneseq
    %v561 = vshrl.u32 %v560, 7
    %v562 = vsub.s32 1, %v561
    %v563 = vrot.slane %v543, %v562
    %v564 = vlaneseq
    %v565 = vshrl.u32 %v564, 7
    %v566 = vsub.s32 2, %v565
    %v567 = vrot.slane %v543, %v566
    %v568 = vlaneseq
    %v569 = vshrl.u32 %v568, 7
    %v570 = vsub.s32 3, %v569
    %v571 = vrot.slane %v543, %v570
    %576 = vmatprep.subr.mxu0 %v416
    %577 = vmatpush1.msra.mxu0 %v415
    %578 = vmatprep.subr.mxu0 %v420
    %579 = vmatpush1.msra.mxu0 %v419
    %580 = vmatprep.subr.mxu0 %v424
    %581 = vmatpush1.msra.mxu0 %v423
    %582 = vmatprep.subr.mxu0 %v428
    %583 = vmatpush1.msra.mxu0 %v427
    %584 = vmatprep.subr.mxu0 %v432
    %585 = vmatpush1.msra.mxu0 %v431
    %586 = vmatprep.subr.mxu0 %v436
    %587 = vmatpush1.msra.mxu0 %v435
    %588 = vmatprep.subr.mxu0 %v440
    %589 = vmatpush1.msra.mxu0 %v439
    %590 = vmatprep.subr.mxu0 %v444
    %591 = vmatpush1.msra.mxu0 %v443
    %592 = vmatprep.subr.mxu0 %v448
    %593 = vmatpush1.msra.mxu0 %v447
    %594 = vmatprep.subr.mxu0 %v452
    %595 = vmatpush1.msra.mxu0 %v451
    %596 = vmatprep.subr.mxu0 %v456
    %597 = vmatpush1.msra.mxu0 %v455
    %598 = vmatprep.subr.mxu0 %v460
    %599 = vmatpush1.msra.mxu0 %v459
    %600 = vmatprep.subr.mxu0 %v464
    %601 = vmatpush1.msra.mxu0 %v463
    %602 = vmatprep.subr.mxu0 %v468
    %603 = vmatpush1.msra.mxu0 %v467
    %604 = vmatprep.subr.mxu0 %v472
    %605 = vmatpush1.msra.mxu0 %v471
    %606 = vmatprep.subr.mxu0 %v476
    %607 = vmatpush1.msra.mxu0 %v475
    %608 = vmatprep.subr.mxu0 %v480
    %609 = vmatpush1.msra.mxu0 %v479
    %610 = vmatprep.subr.mxu0 %v484
    %611 = vmatpush1.msra.mxu0 %v483
    %612 = vmatprep.subr.mxu0 %v488
    %613 = vmatpush1.msra.mxu0 %v487
    %614 = vmatprep.subr.mxu0 %v492
    %615 = vmatpush1.msra.mxu0 %v491
    %616 = vmatprep.subr.mxu0 %v496
    %617 = vmatpush1.msra.mxu0 %v495
    %618 = vmatprep.subr.mxu0 %v500
    %619 = vmatpush1.msra.mxu0 %v499
    %620 = vmatprep.subr.mxu0 %v504
    %621 = vmatpush1.msra.mxu0 %v503
    %622 = vmatprep.subr.mxu0 %v508
    %623 = vmatpush1.msra.mxu0 %v507
    %624 = vmatprep.subr.mxu0 %v512
    %625 = vmatpush1.msra.mxu0 %v511
    %626 = vmatprep.subr.mxu0 %v516
    %627 = vmatpush1.msra.mxu0 %v515
    %628 = vmatprep.subr.mxu0 %v520
    %629 = vmatpush1.msra.mxu0 %v519
    %630 = vmatprep.subr.mxu0 %v524
    %631 = vmatpush1.msra.mxu0 %v523
    %632 = vmatprep.subr.mxu0 %v528
    %633 = vmatpush1.msra.mxu0 %v527
    %634 = vmatprep.subr.mxu0 %v532
    %635 = vmatpush1.msra.mxu0 %v531
    %636 = vmatprep.subr.mxu0 %v536
    %637 = vmatpush1.msra.mxu0 %v535
    %638 = vmatprep.subr.mxu0 %v540
    %639 = vmatpush1.msra.mxu0 %v539
    %640 = vmatprep.mubr.f32.mxu0 %v552
    %641 = vmatmul.mubr.f32.gmra.mrb[0].mxu0 %v548
    %v642 = vpop.f32.mrb[0].mxu0
    %v643 = vadd.f32 %v559, %v642
    %v644 = vpop.f32.mrb[0].mxu0
    %v645 = vadd.f32 %v563, %v644
    %646 = vdwg.mxu0
    %647 = vmatprep.subr.mxu0 %v418
    %648 = vmatpush1.msra.mxu0 %v417
    %649 = vmatprep.subr.mxu0 %v422
    %650 = vmatpush1.msra.mxu0 %v421
    %651 = vmatprep.subr.mxu0 %v426
    %652 = vmatpush1.msra.mxu0 %v425
    %653 = vmatprep.subr.mxu0 %v430
    %654 = vmatpush1.msra.mxu0 %v429
    %655 = vmatprep.subr.mxu0 %v434
    %656 = vmatpush1.msra.mxu0 %v433
    %657 = vmatprep.subr.mxu0 %v438
    %658 = vmatpush1.msra.mxu0 %v437
    %659 = vmatprep.subr.mxu0 %v442
    %660 = vmatpush1.msra.mxu0 %v441
    %661 = vmatprep.subr.mxu0 %v446
    %662 = vmatpush1.msra.mxu0 %v445
    %663 = vmatprep.subr.mxu0 %v450
    %664 = vmatpush1.msra.mxu0 %v449
    %665 = vmatprep.subr.mxu0 %v454
    %666 = vmatpush1.msra.mxu0 %v453
    %667 = vmatprep.subr.mxu0 %v458
    %668 = vmatpush1.msra.mxu0 %v457
    %669 = vmatprep.subr.mxu0 %v462
    %670 = vmatpush1.msra.mxu0 %v461
    %671 = vmatprep.subr.mxu0 %v466
    %672 = vmatpush1.msra.mxu0 %v465
    %673 = vmatprep.subr.mxu0 %v470
    %674 = vmatpush1.msra.mxu0 %v469
    %675 = vmatprep.subr.mxu0 %v474
    %676 = vmatpush1.msra.mxu0 %v473
    %677 = vmatprep.subr.mxu0 %v478
    %678 = vmatpush1.msra.mxu0 %v477
    %679 = vmatprep.subr.mxu0 %v482
    %680 = vmatpush1.msra.mxu0 %v481
    %681 = vmatprep.subr.mxu0 %v486
    %682 = vmatpush1.msra.mxu0 %v485
    %683 = vmatprep.subr.mxu0 %v490
    %684 = vmatpush1.msra.mxu0 %v489
    %685 = vmatprep.subr.mxu0 %v494
    %686 = vmatpush1.msra.mxu0 %v493
    %687 = vmatprep.subr.mxu0 %v498
    %688 = vmatpush1.msra.mxu0 %v497
    %689 = vmatprep.subr.mxu0 %v502
    %690 = vmatpush1.msra.mxu0 %v501
    %691 = vmatprep.subr.mxu0 %v506
    %692 = vmatpush1.msra.mxu0 %v505
    %693 = vmatprep.subr.mxu0 %v510
    %694 = vmatpush1.msra.mxu0 %v509
    %695 = vmatprep.subr.mxu0 %v514
    %696 = vmatpush1.msra.mxu0 %v513
    %697 = vmatprep.subr.mxu0 %v518
    %698 = vmatpush1.msra.mxu0 %v517
    %699 = vmatprep.subr.mxu0 %v522
    %700 = vmatpush1.msra.mxu0 %v521
    %701 = vmatprep.subr.mxu0 %v526
    %702 = vmatpush1.msra.mxu0 %v525
    %703 = vmatprep.subr.mxu0 %v530
    %704 = vmatpush1.msra.mxu0 %v529
    %705 = vmatprep.subr.mxu0 %v534
    %706 = vmatpush1.msra.mxu0 %v533
    %707 = vmatprep.subr.mxu0 %v538
    %708 = vmatpush1.msra.mxu0 %v537
    %709 = vmatprep.subr.mxu0 %v542
    %710 = vmatpush1.msra.mxu0 %v541
    %711 = vmatprep.mubr.f32.mxu0 %v552
    %712 = vmatmul.mubr.f32.gmra.mrb[0].mxu0 %v548
    %v713 = vpop.f32.mrb[0].mxu0
    %v714 = vadd.f32 %v567, %v713
    %v715 = vpop.f32.mrb[0].mxu0
    %v716 = vadd.f32 %v571, %v715
    %717 = vdwg.mxu0
    %v718 = vxor.u32 %v643, 2147483648
    %v719 = vmul.f32 %v718, 1.442695
    %v720 = vpow.pop %v719
    %v721 = vadd.f32 %v720, 1.0
    %v722 = vrcp.pop %v721
    %v723 = vmul.f32 1.0, %v722
    %v724 = vxor.u32 %v645, 2147483648
    %v725 = vmul.f32 %v724, 1.442695
    %v726 = vpow.pop %v725
    %v727 = vadd.f32 %v726, 1.0
    %v728 = vrcp.pop %v727
    %v729 = vmul.f32 1.0, %v728
    %v730 = vtanh.pop %v714
    %v731 = vxor.u32 %v716, 2147483648
    %v732 = vmul.f32 %v731, 1.442695
    %v733 = vpow.pop %v732
    %v734 = vadd.f32 %v733, 1.0
    %v735 = vrcp.pop %v734
    %v736 = vmul.f32 1.0, %v735
    %v737 = vld [vmem:[#allocation4] sm:$0x1]
    %v738 = vmul.f32 %v729, %v737
    %v739 = vmul.f32 %v723, %v730
    %v740 = vadd.f32 %v738, %v739
    %v741 = vtanh.pop %v740
    %v742 = vmul.f32 %v736, %v741
    %743 = vst [vmem:[#allocation4] sm:$0x1] %v740
    %744 = vst.msk [vmem:[#allocation2 + $0x1] sm:$0x1] %vm70, %v742
    %745 = vst [vmem:[#allocation3 + $0x1] sm:$0x1] %v742
    %s746 = sld [smem:[#allocation6 + $0x2]]
    %s747 = scalar_lea.vmem %s1, %s746
    %v748 = vld [vmem:[%s747] sm:$0x1]
    %749 = vst.msk [vmem:[#allocation2] sm:$0x1] %vm70, %v748
    %v750 = vld [vmem:[#allocation2] sm:$0x3]
    %v751 = vld [vmem:[#allocation7] sm:$0xff]
    %v752 = vld [vmem:[#allocation7 + $0x8] sm:$0xff]
    %v753 = vld [vmem:[#allocation7 + $0x10] sm:$0xff]
    %v754 = vld [vmem:[#allocation7 + $0x18] sm:$0xff]
    %v755 = vld [vmem:[#allocation7 + $0x20] sm:$0xff]
    %v756 = vld [vmem:[#allocation7 + $0x28] sm:$0xff]
    %v757 = vld [vmem:[#allocation7 + $0x30] sm:$0xff]
    %v758 = vld [vmem:[#allocation7 + $0x38] sm:$0xff]
    %v759 = vld [vmem:[#allocation7 + $0x40] sm:$0xff]
    %v760 = vld [vmem:[#allocation7 + $0x48] sm:$0xff]
    %v761 = vld [vmem:[#allocation7 + $0x50] sm:$0xff]
    %v762 = vld [vmem:[#allocation7 + $0x58] sm:$0xff]
    %v763 = vld [vmem:[#allocation7 + $0x60] sm:$0xff]
    %v764 = vld [vmem:[#allocation7 + $0x68] sm:$0xff]
    %v765 = vld [vmem:[#allocation7 + $0x70] sm:$0xff]
    %v766 = vld [vmem:[#allocation7 + $0x78] sm:$0xff]
    %v767 = vld [vmem:[#allocation7 + $0x80] sm:$0xff]
    %v768 = vld [vmem:[#allocation7 + $0x88] sm:$0xff]
    %v769 = vld [vmem:[#allocation7 + $0x90] sm:$0xff]
    %v770 = vld [vmem:[#allocation7 + $0x98] sm:$0xff]
    %v771 = vld [vmem:[#allocation7 + $0xa0] sm:$0xff]
    %v772 = vld [vmem:[#allocation7 + $0xa8] sm:$0xff]
    %v773 = vld [vmem:[#allocation7 + $0xb0] sm:$0xff]
    %v774 = vld [vmem:[#allocation7 + $0xb8] sm:$0xff]
    %v775 = vld [vmem:[#allocation7 + $0xc0] sm:$0xff]
    %v776 = vld [vmem:[#allocation7 + $0xc8] sm:$0xff]
    %v777 = vld [vmem:[#allocation7 + $0xd0] sm:$0xff]
    %v778 = vld [vmem:[#allocation7 + $0xd8] sm:$0xff]
    %v779 = vld [vmem:[#allocation7 + $0xe0] sm:$0xff]
    %v780 = vld [vmem:[#allocation7 + $0xe8] sm:$0xff]
    %v781 = vld [vmem:[#allocation7 + $0xf0] sm:$0xff]
    %v782 = vld [vmem:[#allocation7 + $0xf8] sm:$0xff]
    %v783 = vld [vmem:[#allocation7 + $0x100] sm:$0xff]
    %v784 = vld [vmem:[#allocation7 + $0x108] sm:$0xff]
    %v785 = vld [vmem:[#allocation7 + $0x110] sm:$0xff]
    %v786 = vld [vmem:[#allocation7 + $0x118] sm:$0xff]
    %v787 = vld [vmem:[#allocation7 + $0x120] sm:$0xff]
    %v788 = vld [vmem:[#allocation7 + $0x128] sm:$0xff]
    %v789 = vld [vmem:[#allocation7 + $0x130] sm:$0xff]
    %v790 = vld [vmem:[#allocation7 + $0x138] sm:$0xff]
    %v791 = vld [vmem:[#allocation7 + $0x140] sm:$0xff]
    %v792 = vld [vmem:[#allocation7 + $0x148] sm:$0xff]
    %v793 = vld [vmem:[#allocation7 + $0x150] sm:$0xff]
    %v794 = vld [vmem:[#allocation7 + $0x158] sm:$0xff]
    %v795 = vld [vmem:[#allocation7 + $0x160] sm:$0xff]
    %v796 = vld [vmem:[#allocation7 + $0x168] sm:$0xff]
    %v797 = vld [vmem:[#allocation7 + $0x170] sm:$0xff]
    %v798 = vld [vmem:[#allocation7 + $0x178] sm:$0xff]
    %v799 = vld [vmem:[#allocation7 + $0x180] sm:$0xff]
    %v800 = vld [vmem:[#allocation7 + $0x188] sm:$0xff]
    %v801 = vld [vmem:[#allocation7 + $0x190] sm:$0xff]
    %v802 = vld [vmem:[#allocation7 + $0x198] sm:$0xff]
    %v803 = vld [vmem:[#allocation7 + $0x1a0] sm:$0xff]
    %v804 = vld [vmem:[#allocation7 + $0x1a8] sm:$0xff]
    %v805 = vld [vmem:[#allocation7 + $0x1b0] sm:$0xff]
    %v806 = vld [vmem:[#allocation7 + $0x1b8] sm:$0xff]
    %v807 = vld [vmem:[#allocation7 + $0x1c0] sm:$0xff]
    %v808 = vld [vmem:[#allocation7 + $0x1c8] sm:$0xff]
    %v809 = vld [vmem:[#allocation7 + $0x1d0] sm:$0xff]
    %v810 = vld [vmem:[#allocation7 + $0x1d8] sm:$0xff]
    %v811 = vld [vmem:[#allocation7 + $0x1e0] sm:$0xff]
    %v812 = vld [vmem:[#allocation7 + $0x1e8] sm:$0xff]
    %v813 = vld [vmem:[#allocation7 + $0x1f0] sm:$0xff]
    %v814 = vld [vmem:[#allocation7 + $0x1f8] sm:$0xff]
    %v815 = vld [vmem:[#allocation7 + $0x200] sm:$0xff]
    %v816 = vld [vmem:[#allocation7 + $0x208] sm:$0xff]
    %v817 = vld [vmem:[#allocation7 + $0x210] sm:$0xff]
    %v818 = vld [vmem:[#allocation7 + $0x218] sm:$0xff]
    %v819 = vld [vmem:[#allocation7 + $0x220] sm:$0xff]
    %v820 = vld [vmem:[#allocation7 + $0x228] sm:$0xff]
    %v821 = vld [vmem:[#allocation7 + $0x230] sm:$0xff]
    %v822 = vld [vmem:[#allocation7 + $0x238] sm:$0xff]
    %v823 = vld [vmem:[#allocation7 + $0x240] sm:$0xff]
    %v824 = vld [vmem:[#allocation7 + $0x248] sm:$0xff]
    %v825 = vld [vmem:[#allocation7 + $0x250] sm:$0xff]
    %v826 = vld [vmem:[#allocation7 + $0x258] sm:$0xff]
    %v827 = vld [vmem:[#allocation7 + $0x260] sm:$0xff]
    %v828 = vld [vmem:[#allocation7 + $0x268] sm:$0xff]
    %v829 = vld [vmem:[#allocation7 + $0x270] sm:$0xff]
    %v830 = vld [vmem:[#allocation7 + $0x278] sm:$0xff]
    %v831 = vld [vmem:[#allocation7 + $0x280] sm:$0xff]
    %v832 = vld [vmem:[#allocation7 + $0x288] sm:$0xff]
    %v833 = vld [vmem:[#allocation7 + $0x290] sm:$0xff]
    %v834 = vld [vmem:[#allocation7 + $0x298] sm:$0xff]
    %v835 = vld [vmem:[#allocation7 + $0x2a0] sm:$0xff]
    %v836 = vld [vmem:[#allocation7 + $0x2a8] sm:$0xff]
    %v837 = vld [vmem:[#allocation7 + $0x2b0] sm:$0xff]
    %v838 = vld [vmem:[#allocation7 + $0x2b8] sm:$0xff]
    %v839 = vld [vmem:[#allocation7 + $0x2c0] sm:$0xff]
    %v840 = vld [vmem:[#allocation7 + $0x2c8] sm:$0xff]
    %v841 = vld [vmem:[#allocation7 + $0x2d0] sm:$0xff]
    %v842 = vld [vmem:[#allocation7 + $0x2d8] sm:$0xff]
    %v843 = vld [vmem:[#allocation7 + $0x2e0] sm:$0xff]
    %v844 = vld [vmem:[#allocation7 + $0x2e8] sm:$0xff]
    %v845 = vld [vmem:[#allocation7 + $0x2f0] sm:$0xff]
    %v846 = vld [vmem:[#allocation7 + $0x2f8] sm:$0xff]
    %v847 = vld [vmem:[#allocation7 + $0x300] sm:$0xff]
    %v848 = vld [vmem:[#allocation7 + $0x308] sm:$0xff]
    %v849 = vld [vmem:[#allocation7 + $0x310] sm:$0xff]
    %v850 = vld [vmem:[#allocation7 + $0x318] sm:$0xff]
    %v851 = vld [vmem:[#allocation7 + $0x320] sm:$0xff]
    %v852 = vld [vmem:[#allocation7 + $0x328] sm:$0xff]
    %v853 = vld [vmem:[#allocation7 + $0x330] sm:$0xff]
    %v854 = vld [vmem:[#allocation7 + $0x338] sm:$0xff]
    %v855 = vld [vmem:[#allocation7 + $0x340] sm:$0xff]
    %v856 = vld [vmem:[#allocation7 + $0x348] sm:$0xff]
    %v857 = vld [vmem:[#allocation7 + $0x350] sm:$0xff]
    %v858 = vld [vmem:[#allocation7 + $0x358] sm:$0xff]
    %v859 = vld [vmem:[#allocation7 + $0x360] sm:$0xff]
    %v860 = vld [vmem:[#allocation7 + $0x368] sm:$0xff]
    %v861 = vld [vmem:[#allocation7 + $0x370] sm:$0xff]
    %v862 = vld [vmem:[#allocation7 + $0x378] sm:$0xff]
    %v863 = vld [vmem:[#allocation7 + $0x380] sm:$0xff]
    %v864 = vld [vmem:[#allocation7 + $0x388] sm:$0xff]
    %v865 = vld [vmem:[#allocation7 + $0x390] sm:$0xff]
    %v866 = vld [vmem:[#allocation7 + $0x398] sm:$0xff]
    %v867 = vld [vmem:[#allocation7 + $0x3a0] sm:$0xff]
    %v868 = vld [vmem:[#allocation7 + $0x3a8] sm:$0xff]
    %v869 = vld [vmem:[#allocation7 + $0x3b0] sm:$0xff]
    %v870 = vld [vmem:[#allocation7 + $0x3b8] sm:$0xff]
    %v871 = vld [vmem:[#allocation7 + $0x3c0] sm:$0xff]
    %v872 = vld [vmem:[#allocation7 + $0x3c8] sm:$0xff]
    %v873 = vld [vmem:[#allocation7 + $0x3d0] sm:$0xff]
    %v874 = vld [vmem:[#allocation7 + $0x3d8] sm:$0xff]
    %v875 = vld [vmem:[#allocation7 + $0x3e0] sm:$0xff]
    %v876 = vld [vmem:[#allocation7 + $0x3e8] sm:$0xff]
    %v877 = vld [vmem:[#allocation7 + $0x3f0] sm:$0xff]
    %v878 = vld [vmem:[#allocation7 + $0x3f8] sm:$0xff]
    %v879 = vld [vmem:[%s3] sm:$0xf]
    %v881 = vlaneseq
    %v882 = vshrl.u32 %v881, 7
    %v883 = vsub.s32 0, %v882
    %v884 = vrot.slane %v750, %v883
    %v885 = vlaneseq
    %v886 = vshrl.u32 %v885, 7
    %v887 = vsub.s32 1, %v886
    %v888 = vrot.slane %v750, %v887
    %v892 = vlaneseq
    %v893 = vshrl.u32 %v892, 7
    %v894 = vsub.s32 0, %v893
    %v895 = vrot.slane %v879, %v894
    %v896 = vlaneseq
    %v897 = vshrl.u32 %v896, 7
    %v898 = vsub.s32 1, %v897
    %v899 = vrot.slane %v879, %v898
    %v900 = vlaneseq
    %v901 = vshrl.u32 %v900, 7
    %v902 = vsub.s32 2, %v901
    %v903 = vrot.slane %v879, %v902
    %v904 = vlaneseq
    %v905 = vshrl.u32 %v904, 7
    %v906 = vsub.s32 3, %v905
    %v907 = vrot.slane %v879, %v906
    %912 = vmatprep.subr.mxu0 %v752
    %913 = vmatpush1.msra.mxu0 %v751
    %914 = vmatprep.subr.mxu0 %v756
    %915 = vmatpush1.msra.mxu0 %v755
    %916 = vmatprep.subr.mxu0 %v760
    %917 = vmatpush1.msra.mxu0 %v759
    %918 = vmatprep.subr.mxu0 %v764
    %919 = vmatpush1.msra.mxu0 %v763
    %920 = vmatprep.subr.mxu0 %v768
    %921 = vmatpush1.msra.mxu0 %v767
    %922 = vmatprep.subr.mxu0 %v772
    %923 = vmatpush1.msra.mxu0 %v771
    %924 = vmatprep.subr.mxu0 %v776
    %925 = vmatpush1.msra.mxu0 %v775
    %926 = vmatprep.subr.mxu0 %v780
    %927 = vmatpush1.msra.mxu0 %v779
    %928 = vmatprep.subr.mxu0 %v784
    %929 = vmatpush1.msra.mxu0 %v783
    %930 = vmatprep.subr.mxu0 %v788
    %931 = vmatpush1.msra.mxu0 %v787
    %932 = vmatprep.subr.mxu0 %v792
    %933 = vmatpush1.msra.mxu0 %v791
    %934 = vmatprep.subr.mxu0 %v796
    %935 = vmatpush1.msra.mxu0 %v795
    %936 = vmatprep.subr.mxu0 %v800
    %937 = vmatpush1.msra.mxu0 %v799
    %938 = vmatprep.subr.mxu0 %v804
    %939 = vmatpush1.msra.mxu0 %v803
    %940 = vmatprep.subr.mxu0 %v808
    %941 = vmatpush1.msra.mxu0 %v807
    %942 = vmatprep.subr.mxu0 %v812
    %943 = vmatpush1.msra.mxu0 %v811
    %944 = vmatprep.subr.mxu0 %v816
    %945 = vmatpush1.msra.mxu0 %v815
    %946 = vmatprep.subr.mxu0 %v820
    %947 = vmatpush1.msra.mxu0 %v819
    %948 = vmatprep.subr.mxu0 %v824
    %949 = vmatpush1.msra.mxu0 %v823
    %950 = vmatprep.subr.mxu0 %v828
    %951 = vmatpush1.msra.mxu0 %v827
    %952 = vmatprep.subr.mxu0 %v832
    %953 = vmatpush1.msra.mxu0 %v831
    %954 = vmatprep.subr.mxu0 %v836
    %955 = vmatpush1.msra.mxu0 %v835
    %956 = vmatprep.subr.mxu0 %v840
    %957 = vmatpush1.msra.mxu0 %v839
    %958 = vmatprep.subr.mxu0 %v844
    %959 = vmatpush1.msra.mxu0 %v843
    %960 = vmatprep.subr.mxu0 %v848
    %961 = vmatpush1.msra.mxu0 %v847
    %962 = vmatprep.subr.mxu0 %v852
    %963 = vmatpush1.msra.mxu0 %v851
    %964 = vmatprep.subr.mxu0 %v856
    %965 = vmatpush1.msra.mxu0 %v855
    %966 = vmatprep.subr.mxu0 %v860
    %967 = vmatpush1.msra.mxu0 %v859
    %968 = vmatprep.subr.mxu0 %v864
    %969 = vmatpush1.msra.mxu0 %v863
    %970 = vmatprep.subr.mxu0 %v868
    %971 = vmatpush1.msra.mxu0 %v867
    %972 = vmatprep.subr.mxu0 %v872
    %973 = vmatpush1.msra.mxu0 %v871
    %974 = vmatprep.subr.mxu0 %v876
    %975 = vmatpush1.msra.mxu0 %v875
    %976 = vmatprep.mubr.f32.mxu0 %v888
    %977 = vmatmul.mubr.f32.gmra.mrb[0].mxu0 %v884
    %v978 = vpop.f32.mrb[0].mxu0
    %v979 = vadd.f32 %v895, %v978
    %v980 = vpop.f32.mrb[0].mxu0
    %v981 = vadd.f32 %v899, %v980
    %982 = vdwg.mxu0
    %983 = vmatprep.subr.mxu0 %v754
    %984 = vmatpush1.msra.mxu0 %v753
    %985 = vmatprep.subr.mxu0 %v758
    %986 = vmatpush1.msra.mxu0 %v757
    %987 = vmatprep.subr.mxu0 %v762
    %988 = vmatpush1.msra.mxu0 %v761
    %989 = vmatprep.subr.mxu0 %v766
    %990 = vmatpush1.msra.mxu0 %v765
    %991 = vmatprep.subr.mxu0 %v770
    %992 = vmatpush1.msra.mxu0 %v769
    %993 = vmatprep.subr.mxu0 %v774
    %994 = vmatpush1.msra.mxu0 %v773
    %995 = vmatprep.subr.mxu0 %v778
    %996 = vmatpush1.msra.mxu0 %v777
    %997 = vmatprep.subr.mxu0 %v782
    %998 = vmatpush1.msra.mxu0 %v781
    %999 = vmatprep.subr.mxu0 %v786
    %1000 = vmatpush1.msra.mxu0 %v785
    %1001 = vmatprep.subr.mxu0 %v790
    %1002 = vmatpush1.msra.mxu0 %v789
    %1003 = vmatprep.subr.mxu0 %v794
    %1004 = vmatpush1.msra.mxu0 %v793
    %1005 = vmatprep.subr.mxu0 %v798
    %1006 = vmatpush1.msra.mxu0 %v797
    %1007 = vmatprep.subr.mxu0 %v802
    %1008 = vmatpush1.msra.mxu0 %v801
    %1009 = vmatprep.subr.mxu0 %v806
    %1010 = vmatpush1.msra.mxu0 %v805
    %1011 = vmatprep.subr.mxu0 %v810
    %1012 = vmatpush1.msra.mxu0 %v809
    %1013 = vmatprep.subr.mxu0 %v814
    %1014 = vmatpush1.msra.mxu0 %v813
    %1015 = vmatprep.subr.mxu0 %v818
    %1016 = vmatpush1.msra.mxu0 %v817
    %1017 = vmatprep.subr.mxu0 %v822
    %1018 = vmatpush1.msra.mxu0 %v821
    %1019 = vmatprep.subr.mxu0 %v826
    %1020 = vmatpush1.msra.mxu0 %v825
    %1021 = vmatprep.subr.mxu0 %v830
    %1022 = vmatpush1.msra.mxu0 %v829
    %1023 = vmatprep.subr.mxu0 %v834
    %1024 = vmatpush1.msra.mxu0 %v833
    %1025 = vmatprep.subr.mxu0 %v838
    %1026 = vmatpush1.msra.mxu0 %v837
    %1027 = vmatprep.subr.mxu0 %v842
    %1028 = vmatpush1.msra.mxu0 %v841
    %1029 = vmatprep.subr.mxu0 %v846
    %1030 = vmatpush1.msra.mxu0 %v845
    %1031 = vmatprep.subr.mxu0 %v850
    %1032 = vmatpush1.msra.mxu0 %v849
    %1033 = vmatprep.subr.mxu0 %v854
    %1034 = vmatpush1.msra.mxu0 %v853
    %1035 = vmatprep.subr.mxu0 %v858
    %1036 = vmatpush1.msra.mxu0 %v857
    %1037 = vmatprep.subr.mxu0 %v862
    %1038 = vmatpush1.msra.mxu0 %v861
    %1039 = vmatprep.subr.mxu0 %v866
    %1040 = vmatpush1.msra.mxu0 %v865
    %1041 = vmatprep.subr.mxu0 %v870
    %1042 = vmatpush1.msra.mxu0 %v869
    %1043 = vmatprep.subr.mxu0 %v874
    %1044 = vmatpush1.msra.mxu0 %v873
    %1045 = vmatprep.subr.mxu0 %v878
    %1046 = vmatpush1.msra.mxu0 %v877
    %1047 = vmatprep.mubr.f32.mxu0 %v888
    %1048 = vmatmul.mubr.f32.gmra.mrb[0].mxu0 %v884
    %v1049 = vpop.f32.mrb[0].mxu0
    %v1050 = vadd.f32 %v903, %v1049
    %v1051 = vpop.f32.mrb[0].mxu0
    %v1052 = vadd.f32 %v907, %v1051
    %1053 = vdwg.mxu0
    %v1054 = vxor.u32 %v979, 2147483648
    %v1055 = vmul.f32 %v1054, 1.442695
    %v1056 = vpow.pop %v1055
    %v1057 = vadd.f32 %v1056, 1.0
    %v1058 = vrcp.pop %v1057
    %v1059 = vmul.f32 1.0, %v1058
    %v1060 = vxor.u32 %v981, 2147483648
    %v1061 = vmul.f32 %v1060, 1.442695
    %v1062 = vpow.pop %v1061
    %v1063 = vadd.f32 %v1062, 1.0
    %v1064 = vrcp.pop %v1063
    %v1065 = vmul.f32 1.0, %v1064
    %v1066 = vtanh.pop %v1050
    %v1067 = vxor.u32 %v1052, 2147483648
    %v1068 = vmul.f32 %v1067, 1.442695
    %v1069 = vpow.pop %v1068
    %v1070 = vadd.f32 %v1069, 1.0
    %v1071 = vrcp.pop %v1070
    %v1072 = vmul.f32 1.0, %v1071
    %v1073 = vld [vmem:[#allocation4] sm:$0x1]
    %v1074 = vmul.f32 %v1065, %v1073
    %v1075 = vmul.f32 %v1059, %v1066
    %v1076 = vadd.f32 %v1074, %v1075
    %v1077 = vtanh.pop %v1076
    %v1078 = vmul.f32 %v1072, %v1077
    %1079 = vst [vmem:[#allocation4] sm:$0x1] %v1076
    %1080 = vst.msk [vmem:[#allocation2 + $0x1] sm:$0x1] %vm70, %v1078
    %1081 = vst [vmem:[#allocation3 + $0x2] sm:$0x1] %v1078
    %s1082 = sld [smem:[#allocation6 + $0x3]]
    %s1083 = scalar_lea.vmem %s1, %s1082
    %v1084 = vld [vmem:[%s1083] sm:$0x1]
    %1085 = vst.msk [vmem:[#allocation2] sm:$0x1] %vm70, %v1084
    %v1086 = vld [vmem:[#allocation2] sm:$0x3]
    %v1087 = vld [vmem:[#allocation7] sm:$0xff]
    %v1088 = vld [vmem:[#allocation7 + $0x8] sm:$0xff]
    %v1089 = vld [vmem:[#allocation7 + $0x10] sm:$0xff]
    %v1090 = vld [vmem:[#allocation7 + $0x18] sm:$0xff]
    %v1091 = vld [vmem:[#allocation7 + $0x20] sm:$0xff]
    %v1092 = vld [vmem:[#allocation7 + $0x28] sm:$0xff]
    %v1093 = vld [vmem:[#allocation7 + $0x30] sm:$0xff]
    %v1094 = vld [vmem:[#allocation7 + $0x38] sm:$0xff]
    %v1095 = vld [vmem:[#allocation7 + $0x40] sm:$0xff]
    %v1096 = vld [vmem:[#allocation7 + $0x48] sm:$0xff]
    %v1097 = vld [vmem:[#allocation7 + $0x50] sm:$0xff]
    %v1098 = vld [vmem:[#allocation7 + $0x58] sm:$0xff]
    %v1099 = vld [vmem:[#allocation7 + $0x60] sm:$0xff]
    %v1100 = vld [vmem:[#allocation7 + $0x68] sm:$0xff]
    %v1101 = vld [vmem:[#allocation7 + $0x70] sm:$0xff]
    %v1102 = vld [vmem:[#allocation7 + $0x78] sm:$0xff]
    %v1103 = vld [vmem:[#allocation7 + $0x80] sm:$0xff]
    %v1104 = vld [vmem:[#allocation7 + $0x88] sm:$0xff]
    %v1105 = vld [vmem:[#allocation7 + $0x90] sm:$0xff]
    %v1106 = vld [vmem:[#allocation7 + $0x98] sm:$0xff]
    %v1107 = vld [vmem:[#allocation7 + $0xa0] sm:$0xff]
    %v1108 = vld [vmem:[#allocation7 + $0xa8] sm:$0xff]
    %v1109 = vld [vmem:[#allocation7 + $0xb0] sm:$0xff]
    %v1110 = vld [vmem:[#allocation7 + $0xb8] sm:$0xff]
    %v1111 = vld [vmem:[#allocation7 + $0xc0] sm:$0xff]
    %v1112 = vld [vmem:[#allocation7 + $0xc8] sm:$0xff]
    %v1113 = vld [vmem:[#allocation7 + $0xd0] sm:$0xff]
    %v1114 = vld [vmem:[#allocation7 + $0xd8] sm:$0xff]
    %v1115 = vld [vmem:[#allocation7 + $0xe0] sm:$0xff]
    %v1116 = vld [vmem:[#allocation7 + $0xe8] sm:$0xff]
    %v1117 = vld [vmem:[#allocation7 + $0xf0] sm:$0xff]
    %v1118 = vld [vmem:[#allocation7 + $0xf8] sm:$0xff]
    %v1119 = vld [vmem:[#allocation7 + $0x100] sm:$0xff]
    %v1120 = vld [vmem:[#allocation7 + $0x108] sm:$0xff]
    %v1121 = vld [vmem:[#allocation7 + $0x110] sm:$0xff]
    %v1122 = vld [vmem:[#allocation7 + $0x118] sm:$0xff]
    %v1123 = vld [vmem:[#allocation7 + $0x120] sm:$0xff]
    %v1124 = vld [vmem:[#allocation7 + $0x128] sm:$0xff]
    %v1125 = vld [vmem:[#allocation7 + $0x130] sm:$0xff]
    %v1126 = vld [vmem:[#allocation7 + $0x138] sm:$0xff]
    %v1127 = vld [vmem:[#allocation7 + $0x140] sm:$0xff]
    %v1128 = vld [vmem:[#allocation7 + $0x148] sm:$0xff]
    %v1129 = vld [vmem:[#allocation7 + $0x150] sm:$0xff]
    %v1130 = vld [vmem:[#allocation7 + $0x158] sm:$0xff]
    %v1131 = vld [vmem:[#allocation7 + $0x160] sm:$0xff]
    %v1132 = vld [vmem:[#allocation7 + $0x168] sm:$0xff]
    %v1133 = vld [vmem:[#allocation7 + $0x170] sm:$0xff]
    %v1134 = vld [vmem:[#allocation7 + $0x178] sm:$0xff]
    %v1135 = vld [vmem:[#allocation7 + $0x180] sm:$0xff]
    %v1136 = vld [vmem:[#allocation7 + $0x188] sm:$0xff]
    %v1137 = vld [vmem:[#allocation7 + $0x190] sm:$0xff]
    %v1138 = vld [vmem:[#allocation7 + $0x198] sm:$0xff]
    %v1139 = vld [vmem:[#allocation7 + $0x1a0] sm:$0xff]
    %v1140 = vld [vmem:[#allocation7 + $0x1a8] sm:$0xff]
    %v1141 = vld [vmem:[#allocation7 + $0x1b0] sm:$0xff]
    %v1142 = vld [vmem:[#allocation7 + $0x1b8] sm:$0xff]
    %v1143 = vld [vmem:[#allocation7 + $0x1c0] sm:$0xff]
    %v1144 = vld [vmem:[#allocation7 + $0x1c8] sm:$0xff]
    %v1145 = vld [vmem:[#allocation7 + $0x1d0] sm:$0xff]
    %v1146 = vld [vmem:[#allocation7 + $0x1d8] sm:$0xff]
    %v1147 = vld [vmem:[#allocation7 + $0x1e0] sm:$0xff]
    %v1148 = vld [vmem:[#allocation7 + $0x1e8] sm:$0xff]
    %v1149 = vld [vmem:[#allocation7 + $0x1f0] sm:$0xff]
    %v1150 = vld [vmem:[#allocation7 + $0x1f8] sm:$0xff]
    %v1151 = vld [vmem:[#allocation7 + $0x200] sm:$0xff]
    %v1152 = vld [vmem:[#allocation7 + $0x208] sm:$0xff]
    %v1153 = vld [vmem:[#allocation7 + $0x210] sm:$0xff]
    %v1154 = vld [vmem:[#allocation7 + $0x218] sm:$0xff]
    %v1155 = vld [vmem:[#allocation7 + $0x220] sm:$0xff]
    %v1156 = vld [vmem:[#allocation7 + $0x228] sm:$0xff]
    %v1157 = vld [vmem:[#allocation7 + $0x230] sm:$0xff]
    %v1158 = vld [vmem:[#allocation7 + $0x238] sm:$0xff]
    %v1159 = vld [vmem:[#allocation7 + $0x240] sm:$0xff]
    %v1160 = vld [vmem:[#allocation7 + $0x248] sm:$0xff]
    %v1161 = vld [vmem:[#allocation7 + $0x250] sm:$0xff]
    %v1162 = vld [vmem:[#allocation7 + $0x258] sm:$0xff]
    %v1163 = vld [vmem:[#allocation7 + $0x260] sm:$0xff]
    %v1164 = vld [vmem:[#allocation7 + $0x268] sm:$0xff]
    %v1165 = vld [vmem:[#allocation7 + $0x270] sm:$0xff]
    %v1166 = vld [vmem:[#allocation7 + $0x278] sm:$0xff]
    %v1167 = vld [vmem:[#allocation7 + $0x280] sm:$0xff]
    %v1168 = vld [vmem:[#allocation7 + $0x288] sm:$0xff]
    %v1169 = vld [vmem:[#allocation7 + $0x290] sm:$0xff]
    %v1170 = vld [vmem:[#allocation7 + $0x298] sm:$0xff]
    %v1171 = vld [vmem:[#allocation7 + $0x2a0] sm:$0xff]
    %v1172 = vld [vmem:[#allocation7 + $0x2a8] sm:$0xff]
    %v1173 = vld [vmem:[#allocation7 + $0x2b0] sm:$0xff]
    %v1174 = vld [vmem:[#allocation7 + $0x2b8] sm:$0xff]
    %v1175 = vld [vmem:[#allocation7 + $0x2c0] sm:$0xff]
    %v1176 = vld [vmem:[#allocation7 + $0x2c8] sm:$0xff]
    %v1177 = vld [vmem:[#allocation7 + $0x2d0] sm:$0xff]
    %v1178 = vld [vmem:[#allocation7 + $0x2d8] sm:$0xff]
    %v1179 = vld [vmem:[#allocation7 + $0x2e0] sm:$0xff]
    %v1180 = vld [vmem:[#allocation7 + $0x2e8] sm:$0xff]
    %v1181 = vld [vmem:[#allocation7 + $0x2f0] sm:$0xff]
    %v1182 = vld [vmem:[#allocation7 + $0x2f8] sm:$0xff]
    %v1183 = vld [vmem:[#allocation7 + $0x300] sm:$0xff]
    %v1184 = vld [vmem:[#allocation7 + $0x308] sm:$0xff]
    %v1185 = vld [vmem:[#allocation7 + $0x310] sm:$0xff]
    %v1186 = vld [vmem:[#allocation7 + $0x318] sm:$0xff]
    %v1187 = vld [vmem:[#allocation7 + $0x320] sm:$0xff]
    %v1188 = vld [vmem:[#allocation7 + $0x328] sm:$0xff]
    %v1189 = vld [vmem:[#allocation7 + $0x330] sm:$0xff]
    %v1190 = vld [vmem:[#allocation7 + $0x338] sm:$0xff]
    %v1191 = vld [vmem:[#allocation7 + $0x340] sm:$0xff]
    %v1192 = vld [vmem:[#allocation7 + $0x348] sm:$0xff]
    %v1193 = vld [vmem:[#allocation7 + $0x350] sm:$0xff]
    %v1194 = vld [vmem:[#allocation7 + $0x358] sm:$0xff]
    %v1195 = vld [vmem:[#allocation7 + $0x360] sm:$0xff]
    %v1196 = vld [vmem:[#allocation7 + $0x368] sm:$0xff]
    %v1197 = vld [vmem:[#allocation7 + $0x370] sm:$0xff]
    %v1198 = vld [vmem:[#allocation7 + $0x378] sm:$0xff]
    %v1199 = vld [vmem:[#allocation7 + $0x380] sm:$0xff]
    %v1200 = vld [vmem:[#allocation7 + $0x388] sm:$0xff]
    %v1201 = vld [vmem:[#allocation7 + $0x390] sm:$0xff]
    %v1202 = vld [vmem:[#allocation7 + $0x398] sm:$0xff]
    %v1203 = vld [vmem:[#allocation7 + $0x3a0] sm:$0xff]
    %v1204 = vld [vmem:[#allocation7 + $0x3a8] sm:$0xff]
    %v1205 = vld [vmem:[#allocation7 + $0x3b0] sm:$0xff]
    %v1206 = vld [vmem:[#allocation7 + $0x3b8] sm:$0xff]
    %v1207 = vld [vmem:[#allocation7 + $0x3c0] sm:$0xff]
    %v1208 = vld [vmem:[#allocation7 + $0x3c8] sm:$0xff]
    %v1209 = vld [vmem:[#allocation7 + $0x3d0] sm:$0xff]
    %v1210 = vld [vmem:[#allocation7 + $0x3d8] sm:$0xff]
    %v1211 = vld [vmem:[#allocation7 + $0x3e0] sm:$0xff]
    %v1212 = vld [vmem:[#allocation7 + $0x3e8] sm:$0xff]
    %v1213 = vld [vmem:[#allocation7 + $0x3f0] sm:$0xff]
    %v1214 = vld [vmem:[#allocation7 + $0x3f8] sm:$0xff]
    %v1215 = vld [vmem:[%s3] sm:$0xf]
    %v1217 = vlaneseq
    %v1218 = vshrl.u32 %v1217, 7
    %v1219 = vsub.s32 0, %v1218
    %v1220 = vrot.slane %v1086, %v1219
    %v1221 = vlaneseq
    %v1222 = vshrl.u32 %v1221, 7
    %v1223 = vsub.s32 1, %v1222
    %v1224 = vrot.slane %v1086, %v1223
    %v1228 = vlaneseq
    %v1229 = vshrl.u32 %v1228, 7
    %v1230 = vsub.s32 0, %v1229
    %v1231 = vrot.slane %v1215, %v1230
    %v1232 = vlaneseq
    %v1233 = vshrl.u32 %v1232, 7
    %v1234 = vsub.s32 1, %v1233
    %v1235 = vrot.slane %v1215, %v1234
    %v1236 = vlaneseq
    %v1237 = vshrl.u32 %v1236, 7
    %v1238 = vsub.s32 2, %v1237
    %v1239 = vrot.slane %v1215, %v1238
    %v1240 = vlaneseq
    %v1241 = vshrl.u32 %v1240, 7
    %v1242 = vsub.s32 3, %v1241
    %v1243 = vrot.slane %v1215, %v1242
    %1248 = vmatprep.subr.mxu0 %v1088
    %1249 = vmatpush1.msra.mxu0 %v1087
    %1250 = vmatprep.subr.mxu0 %v1092
    %1251 = vmatpush1.msra.mxu0 %v1091
    %1252 = vmatprep.subr.mxu0 %v1096
    %1253 = vmatpush1.msra.mxu0 %v1095
    %1254 = vmatprep.subr.mxu0 %v1100
    %1255 = vmatpush1.msra.mxu0 %v1099
    %1256 = vmatprep.subr.mxu0 %v1104
    %1257 = vmatpush1.msra.mxu0 %v1103
    %1258 = vmatprep.subr.mxu0 %v1108
    %1259 = vmatpush1.msra.mxu0 %v1107
    %1260 = vmatprep.subr.mxu0 %v1112
    %1261 = vmatpush1.msra.mxu0 %v1111
    %1262 = vmatprep.subr.mxu0 %v1116
    %1263 = vmatpush1.msra.mxu0 %v1115
    %1264 = vmatprep.subr.mxu0 %v1120
    %1265 = vmatpush1.msra.mxu0 %v1119
    %1266 = vmatprep.subr.mxu0 %v1124
    %1267 = vmatpush1.msra.mxu0 %v1123
    %1268 = vmatprep.subr.mxu0 %v1128
    %1269 = vmatpush1.msra.mxu0 %v1127
    %1270 = vmatprep.subr.mxu0 %v1132
    %1271 = vmatpush1.msra.mxu0 %v1131
    %1272 = vmatprep.subr.mxu0 %v1136
    %1273 = vmatpush1.msra.mxu0 %v1135
    %1274 = vmatprep.subr.mxu0 %v1140
    %1275 = vmatpush1.msra.mxu0 %v1139
    %1276 = vmatprep.subr.mxu0 %v1144
    %1277 = vmatpush1.msra.mxu0 %v1143
    %1278 = vmatprep.subr.mxu0 %v1148
    %1279 = vmatpush1.msra.mxu0 %v1147
    %1280 = vmatprep.subr.mxu0 %v1152
    %1281 = vmatpush1.msra.mxu0 %v1151
    %1282 = vmatprep.subr.mxu0 %v1156
    %1283 = vmatpush1.msra.mxu0 %v1155
    %1284 = vmatprep.subr.mxu0 %v1160
    %1285 = vmatpush1.msra.mxu0 %v1159
    %1286 = vmatprep.subr.mxu0 %v1164
    %1287 = vmatpush1.msra.mxu0 %v1163
    %1288 = vmatprep.subr.mxu0 %v1168
    %1289 = vmatpush1.msra.mxu0 %v1167
    %1290 = vmatprep.subr.mxu0 %v1172
    %1291 = vmatpush1.msra.mxu0 %v1171
    %1292 = vmatprep.subr.mxu0 %v1176
    %1293 = vmatpush1.msra.mxu0 %v1175
    %1294 = vmatprep.subr.mxu0 %v1180
    %1295 = vmatpush1.msra.mxu0 %v1179
    %1296 = vmatprep.subr.mxu0 %v1184
    %1297 = vmatpush1.msra.mxu0 %v1183
    %1298 = vmatprep.subr.mxu0 %v1188
    %1299 = vmatpush1.msra.mxu0 %v1187
    %1300 = vmatprep.subr.mxu0 %v1192
    %1301 = vmatpush1.msra.mxu0 %v1191
    %1302 = vmatprep.subr.mxu0 %v1196
    %1303 = vmatpush1.msra.mxu0 %v1195
    %1304 = vmatprep.subr.mxu0 %v1200
    %1305 = vmatpush1.msra.mxu0 %v1199
    %1306 = vmatprep.subr.mxu0 %v1204
    %1307 = vmatpush1.msra.mxu0 %v1203
    %1308 = vmatprep.subr.mxu0 %v1208
    %1309 = vmatpush1.msra.mxu0 %v1207
    %1310 = vmatprep.subr.mxu0 %v1212
    %1311 = vmatpush1.msra.mxu0 %v1211
    %1312 = vmatprep.mubr.f32.mxu0 %v1224
    %1313 = vmatmul.mubr.f32.gmra.mrb[0].mxu0 %v1220
    %v1314 = vpop.f32.mrb[0].mxu0
    %v1315 = vadd.f32 %v1231, %v1314
    %v1316 = vpop.f32.mrb[0].mxu0
    %v1317 = vadd.f32 %v1235, %v1316
    %1318 = vdwg.mxu0
    %1319 = vmatprep.subr.mxu0 %v1090
    %1320 = vmatpush1.msra.mxu0 %v1089
    %1321 = vmatprep.subr.mxu0 %v1094
    %1322 = vmatpush1.msra.mxu0 %v1093
    %1323 = vmatprep.subr.mxu0 %v1098
    %1324 = vmatpush1.msra.mxu0 %v1097
    %1325 = vmatprep.subr.mxu0 %v1102
    %1326 = vmatpush1.msra.mxu0 %v1101
    %1327 = vmatprep.subr.mxu0 %v1106
    %1328 = vmatpush1.msra.mxu0 %v1105
    %1329 = vmatprep.subr.mxu0 %v1110
    %1330 = vmatpush1.msra.mxu0 %v1109
    %1331 = vmatprep.subr.mxu0 %v1114
    %1332 = vmatpush1.msra.mxu0 %v1113
    %1333 = vmatprep.subr.mxu0 %v1118
    %1334 = vmatpush1.msra.mxu0 %v1117
    %1335 = vmatprep.subr.mxu0 %v1122
    %1336 = vmatpush1.msra.mxu0 %v1121
    %1337 = vmatprep.subr.mxu0 %v1126
    %1338 = vmatpush1.msra.mxu0 %v1125
    %1339 = vmatprep.subr.mxu0 %v1130
    %1340 = vmatpush1.msra.mxu0 %v1129
    %1341 = vmatprep.subr.mxu0 %v1134
    %1342 = vmatpush1.msra.mxu0 %v1133
    %1343 = vmatprep.subr.mxu0 %v1138
    %1344 = vmatpush1.msra.mxu0 %v1137
    %1345 = vmatprep.subr.mxu0 %v1142
    %1346 = vmatpush1.msra.mxu0 %v1141
    %1347 = vmatprep.subr.mxu0 %v1146
    %1348 = vmatpush1.msra.mxu0 %v1145
    %1349 = vmatprep.subr.mxu0 %v1150
    %1350 = vmatpush1.msra.mxu0 %v1149
    %1351 = vmatprep.subr.mxu0 %v1154
    %1352 = vmatpush1.msra.mxu0 %v1153
    %1353 = vmatprep.subr.mxu0 %v1158
    %1354 = vmatpush1.msra.mxu0 %v1157
    %1355 = vmatprep.subr.mxu0 %v1162
    %1356 = vmatpush1.msra.mxu0 %v1161
    %1357 = vmatprep.subr.mxu0 %v1166
    %1358 = vmatpush1.msra.mxu0 %v1165
    %1359 = vmatprep.subr.mxu0 %v1170
    %1360 = vmatpush1.msra.mxu0 %v1169
    %1361 = vmatprep.subr.mxu0 %v1174
    %1362 = vmatpush1.msra.mxu0 %v1173
    %1363 = vmatprep.subr.mxu0 %v1178
    %1364 = vmatpush1.msra.mxu0 %v1177
    %1365 = vmatprep.subr.mxu0 %v1182
    %1366 = vmatpush1.msra.mxu0 %v1181
    %1367 = vmatprep.subr.mxu0 %v1186
    %1368 = vmatpush1.msra.mxu0 %v1185
    %1369 = vmatprep.subr.mxu0 %v1190
    %1370 = vmatpush1.msra.mxu0 %v1189
    %1371 = vmatprep.subr.mxu0 %v1194
    %1372 = vmatpush1.msra.mxu0 %v1193
    %1373 = vmatprep.subr.mxu0 %v1198
    %1374 = vmatpush1.msra.mxu0 %v1197
    %1375 = vmatprep.subr.mxu0 %v1202
    %1376 = vmatpush1.msra.mxu0 %v1201
    %1377 = vmatprep.subr.mxu0 %v1206
    %1378 = vmatpush1.msra.mxu0 %v1205
    %1379 = vmatprep.subr.mxu0 %v1210
    %1380 = vmatpush1.msra.mxu0 %v1209
    %1381 = vmatprep.subr.mxu0 %v1214
    %1382 = vmatpush1.msra.mxu0 %v1213
    %1383 = vmatprep.mubr.f32.mxu0 %v1224
    %1384 = vmatmul.mubr.f32.gmra.mrb[0].mxu0 %v1220
    %v1385 = vpop.f32.mrb[0].mxu0
    %v1386 = vadd.f32 %v1239, %v1385
    %v1387 = vpop.f32.mrb[0].mxu0
    %v1388 = vadd.f32 %v1243, %v1387
    %1389 = vdwg.mxu0
    %v1390 = vxor.u32 %v1315, 2147483648
    %v1391 = vmul.f32 %v1390, 1.442695
    %v1392 = vpow.pop %v1391
    %v1393 = vadd.f32 %v1392, 1.0
    %v1394 = vrcp.pop %v1393
    %v1395 = vmul.f32 1.0, %v1394
    %v1396 = vxor.u32 %v1317, 2147483648
    %v1397 = vmul.f32 %v1396, 1.442695
    %v1398 = vpow.pop %v1397
    %v1399 = vadd.f32 %v1398, 1.0
    %v1400 = vrcp.pop %v1399
    %v1401 = vmul.f32 1.0, %v1400
    %v1402 = vtanh.pop %v1386
    %v1403 = vxor.u32 %v1388, 2147483648
    %v1404 = vmul.f32 %v1403, 1.442695
    %v1405 = vpow.pop %v1404
    %v1406 = vadd.f32 %v1405, 1.0
    %v1407 = vrcp.pop %v1406
    %v1408 = vmul.f32 1.0, %v1407
    %v1409 = vld [vmem:[#allocation4] sm:$0x1]
    %v1410 = vmul.f32 %v1401, %v1409
    %v1411 = vmul.f32 %v1395, %v1402
    %v1412 = vadd.f32 %v1410, %v1411
    %v1413 = vtanh.pop %v1412
    %v1414 = vmul.f32 %v1408, %v1413
    %1415 = vst [vmem:[#allocation4] sm:$0x1] %v1412
    %1416 = vst.msk [vmem:[#allocation2 + $0x1] sm:$0x1] %vm70, %v1414
    %1417 = vst [vmem:[#allocation3 + $0x3] sm:$0x1] %v1414
    %s1418 = sld [smem:[#allocation6 + $0x4]]
    %s1419 = scalar_lea.vmem %s1, %s1418
    %v1420 = vld [vmem:[%s1419] sm:$0x1]
    %1421 = vst.msk [vmem:[#allocation2] sm:$0x1] %vm70, %v1420
    %v1422 = vld [vmem:[#allocation2] sm:$0x3]
    %v1423 = vld [vmem:[#allocation7] sm:$0xff]
    %v1424 = vld [vmem:[#allocation7 + $0x8] sm:$0xff]
    %v1425 = vld [vmem:[#allocation7 + $0x10] sm:$0xff]
    %v1426 = vld [vmem:[#allocation7 + $0x18] sm:$0xff]
    %v1427 = vld [vmem:[#allocation7 + $0x20] sm:$0xff]
    %v1428 = vld [vmem:[#allocation7 + $0x28] sm:$0xff]
    %v1429 = vld [vmem:[#allocation7 + $0x30] sm:$0xff]
    %v1430 = vld [vmem:[#allocation7 + $0x38] sm:$0xff]
    %v1431 = vld [vmem:[#allocation7 + $0x40] sm:$0xff]
    %v1432 = vld [vmem:[#allocation7 + $0x48] sm:$0xff]
    %v1433 = vld [vmem:[#allocation7 + $0x50] sm:$0xff]
    %v1434 = vld [vmem:[#allocation7 + $0x58] sm:$0xff]
    %v1435 = vld [vmem:[#allocation7 + $0x60] sm:$0xff]
    %v1436 = vld [vmem:[#allocation7 + $0x68] sm:$0xff]
    %v1437 = vld [vmem:[#allocation7 + $0x70] sm:$0xff]
    %v1438 = vld [vmem:[#allocation7 + $0x78] sm:$0xff]
    %v1439 = vld [vmem:[#allocation7 + $0x80] sm:$0xff]
    %v1440 = vld [vmem:[#allocation7 + $0x88] sm:$0xff]
    %v1441 = vld [vmem:[#allocation7 + $0x90] sm:$0xff]
    %v1442 = vld [vmem:[#allocation7 + $0x98] sm:$0xff]
    %v1443 = vld [vmem:[#allocation7 + $0xa0] sm:$0xff]
    %v1444 = vld [vmem:[#allocation7 + $0xa8] sm:$0xff]
    %v1445 = vld [vmem:[#allocation7 + $0xb0] sm:$0xff]
    %v1446 = vld [vmem:[#allocation7 + $0xb8] sm:$0xff]
    %v1447 = vld [vmem:[#allocation7 + $0xc0] sm:$0xff]
    %v1448 = vld [vmem:[#allocation7 + $0xc8] sm:$0xff]
    %v1449 = vld [vmem:[#allocation7 + $0xd0] sm:$0xff]
    %v1450 = vld [vmem:[#allocation7 + $0xd8] sm:$0xff]
    %v1451 = vld [vmem:[#allocation7 + $0xe0] sm:$0xff]
    %v1452 = vld [vmem:[#allocation7 + $0xe8] sm:$0xff]
    %v1453 = vld [vmem:[#allocation7 + $0xf0] sm:$0xff]
    %v1454 = vld [vmem:[#allocation7 + $0xf8] sm:$0xff]
    %v1455 = vld [vmem:[#allocation7 + $0x100] sm:$0xff]
    %v1456 = vld [vmem:[#allocation7 + $0x108] sm:$0xff]
    %v1457 = vld [vmem:[#allocation7 + $0x110] sm:$0xff]
    %v1458 = vld [vmem:[#allocation7 + $0x118] sm:$0xff]
    %v1459 = vld [vmem:[#allocation7 + $0x120] sm:$0xff]
    %v1460 = vld [vmem:[#allocation7 + $0x128] sm:$0xff]
    %v1461 = vld [vmem:[#allocation7 + $0x130] sm:$0xff]
    %v1462 = vld [vmem:[#allocation7 + $0x138] sm:$0xff]
    %v1463 = vld [vmem:[#allocation7 + $0x140] sm:$0xff]
    %v1464 = vld [vmem:[#allocation7 + $0x148] sm:$0xff]
    %v1465 = vld [vmem:[#allocation7 + $0x150] sm:$0xff]
    %v1466 = vld [vmem:[#allocation7 + $0x158] sm:$0xff]
    %v1467 = vld [vmem:[#allocation7 + $0x160] sm:$0xff]
    %v1468 = vld [vmem:[#allocation7 + $0x168] sm:$0xff]
    %v1469 = vld [vmem:[#allocation7 + $0x170] sm:$0xff]
    %v1470 = vld [vmem:[#allocation7 + $0x178] sm:$0xff]
    %v1471 = vld [vmem:[#allocation7 + $0x180] sm:$0xff]
    %v1472 = vld [vmem:[#allocation7 + $0x188] sm:$0xff]
    %v1473 = vld [vmem:[#allocation7 + $0x190] sm:$0xff]
    %v1474 = vld [vmem:[#allocation7 + $0x198] sm:$0xff]
    %v1475 = vld [vmem:[#allocation7 + $0x1a0] sm:$0xff]
    %v1476 = vld [vmem:[#allocation7 + $0x1a8] sm:$0xff]
    %v1477 = vld [vmem:[#allocation7 + $0x1b0] sm:$0xff]
    %v1478 = vld [vmem:[#allocation7 + $0x1b8] sm:$0xff]
    %v1479 = vld [vmem:[#allocation7 + $0x1c0] sm:$0xff]
    %v1480 = vld [vmem:[#allocation7 + $0x1c8] sm:$0xff]
    %v1481 = vld [vmem:[#allocation7 + $0x1d0] sm:$0xff]
    %v1482 = vld [vmem:[#allocation7 + $0x1d8] sm:$0xff]
    %v1483 = vld [vmem:[#allocation7 + $0x1e0] sm:$0xff]
    %v1484 = vld [vmem:[#allocation7 + $0x1e8] sm:$0xff]
    %v1485 = vld [vmem:[#allocation7 + $0x1f0] sm:$0xff]
    %v1486 = vld [vmem:[#allocation7 + $0x1f8] sm:$0xff]
    %v1487 = vld [vmem:[#allocation7 + $0x200] sm:$0xff]
    %v1488 = vld [vmem:[#allocation7 + $0x208] sm:$0xff]
    %v1489 = vld [vmem:[#allocation7 + $0x210] sm:$0xff]
    %v1490 = vld [vmem:[#allocation7 + $0x218] sm:$0xff]
    %v1491 = vld [vmem:[#allocation7 + $0x220] sm:$0xff]
    %v1492 = vld [vmem:[#allocation7 + $0x228] sm:$0xff]
    %v1493 = vld [vmem:[#allocation7 + $0x230] sm:$0xff]
    %v1494 = vld [vmem:[#allocation7 + $0x238] sm:$0xff]
    %v1495 = vld [vmem:[#allocation7 + $0x240] sm:$0xff]
    %v1496 = vld [vmem:[#allocation7 + $0x248] sm:$0xff]
    %v1497 = vld [vmem:[#allocation7 + $0x250] sm:$0xff]
    %v1498 = vld [vmem:[#allocation7 + $0x258] sm:$0xff]
    %v1499 = vld [vmem:[#allocation7 + $0x260] sm:$0xff]
    %v1500 = vld [vmem:[#allocation7 + $0x268] sm:$0xff]
    %v1501 = vld [vmem:[#allocation7 + $0x270] sm:$0xff]
    %v1502 = vld [vmem:[#allocation7 + $0x278] sm:$0xff]
    %v1503 = vld [vmem:[#allocation7 + $0x280] sm:$0xff]
    %v1504 = vld [vmem:[#allocation7 + $0x288] sm:$0xff]
    %v1505 = vld [vmem:[#allocation7 + $0x290] sm:$0xff]
    %v1506 = vld [vmem:[#allocation7 + $0x298] sm:$0xff]
    %v1507 = vld [vmem:[#allocation7 + $0x2a0] sm:$0xff]
    %v1508 = vld [vmem:[#allocation7 + $0x2a8] sm:$0xff]
    %v1509 = vld [vmem:[#allocation7 + $0x2b0] sm:$0xff]
    %v1510 = vld [vmem:[#allocation7 + $0x2b8] sm:$0xff]
    %v1511 = vld [vmem:[#allocation7 + $0x2c0] sm:$0xff]
    %v1512 = vld [vmem:[#allocation7 + $0x2c8] sm:$0xff]
    %v1513 = vld [vmem:[#allocation7 + $0x2d0] sm:$0xff]
    %v1514 = vld [vmem:[#allocation7 + $0x2d8] sm:$0xff]
    %v1515 = vld [vmem:[#allocation7 + $0x2e0] sm:$0xff]
    %v1516 = vld [vmem:[#allocation7 + $0x2e8] sm:$0xff]
    %v1517 = vld [vmem:[#allocation7 + $0x2f0] sm:$0xff]
    %v1518 = vld [vmem:[#allocation7 + $0x2f8] sm:$0xff]
    %v1519 = vld [vmem:[#allocation7 + $0x300] sm:$0xff]
    %v1520 = vld [vmem:[#allocation7 + $0x308] sm:$0xff]
    %v1521 = vld [vmem:[#allocation7 + $0x310] sm:$0xff]
    %v1522 = vld [vmem:[#allocation7 + $0x318] sm:$0xff]
    %v1523 = vld [vmem:[#allocation7 + $0x320] sm:$0xff]
    %v1524 = vld [vmem:[#allocation7 + $0x328] sm:$0xff]
    %v1525 = vld [vmem:[#allocation7 + $0x330] sm:$0xff]
    %v1526 = vld [vmem:[#allocation7 + $0x338] sm:$0xff]
    %v1527 = vld [vmem:[#allocation7 + $0x340] sm:$0xff]
    %v1528 = vld [vmem:[#allocation7 + $0x348] sm:$0xff]
    %v1529 = vld [vmem:[#allocation7 + $0x350] sm:$0xff]
    %v1530 = vld [vmem:[#allocation7 + $0x358] sm:$0xff]
    %v1531 = vld [vmem:[#allocation7 + $0x360] sm:$0xff]
    %v1532 = vld [vmem:[#allocation7 + $0x368] sm:$0xff]
    %v1533 = vld [vmem:[#allocation7 + $0x370] sm:$0xff]
    %v1534 = vld [vmem:[#allocation7 + $0x378] sm:$0xff]
    %v1535 = vld [vmem:[#allocation7 + $0x380] sm:$0xff]
    %v1536 = vld [vmem:[#allocation7 + $0x388] sm:$0xff]
    %v1537 = vld [vmem:[#allocation7 + $0x390] sm:$0xff]
    %v1538 = vld [vmem:[#allocation7 + $0x398] sm:$0xff]
    %v1539 = vld [vmem:[#allocation7 + $0x3a0] sm:$0xff]
    %v1540 = vld [vmem:[#allocation7 + $0x3a8] sm:$0xff]
    %v1541 = vld [vmem:[#allocation7 + $0x3b0] sm:$0xff]
    %v1542 = vld [vmem:[#allocation7 + $0x3b8] sm:$0xff]
    %v1543 = vld [vmem:[#allocation7 + $0x3c0] sm:$0xff]
    %v1544 = vld [vmem:[#allocation7 + $0x3c8] sm:$0xff]
    %v1545 = vld [vmem:[#allocation7 + $0x3d0] sm:$0xff]
    %v1546 = vld [vmem:[#allocation7 + $0x3d8] sm:$0xff]
    %v1547 = vld [vmem:[#allocation7 + $0x3e0] sm:$0xff]
    %v1548 = vld [vmem:[#allocation7 + $0x3e8] sm:$0xff]
    %v1549 = vld [vmem:[#allocation7 + $0x3f0] sm:$0xff]
    %v1550 = vld [vmem:[#allocation7 + $0x3f8] sm:$0xff]
    %v1551 = vld [vmem:[%s3] sm:$0xf]
    %v1553 = vlaneseq
    %v1554 = vshrl.u32 %v1553, 7
    %v1555 = vsub.s32 0, %v1554
    %v1556 = vrot.slane %v1422, %v1555
    %v1557 = vlaneseq
    %v1558 = vshrl.u32 %v1557, 7
    %v1559 = vsub.s32 1, %v1558
    %v1560 = vrot.slane %v1422, %v1559
    %v1564 = vlaneseq
    %v1565 = vshrl.u32 %v1564, 7
    %v1566 = vsub.s32 0, %v1565
    %v1567 = vrot.slane %v1551, %v1566
    %v1568 = vlaneseq
    %v1569 = vshrl.u32 %v1568, 7
    %v1570 = vsub.s32 1, %v1569
    %v1571 = vrot.slane %v1551, %v1570
    %v1572 = vlaneseq
    %v1573 = vshrl.u32 %v1572, 7
    %v1574 = vsub.s32 2, %v1573
    %v1575 = vrot.slane %v1551, %v1574
    %v1576 = vlaneseq
    %v1577 = vshrl.u32 %v1576, 7
    %v1578 = vsub.s32 3, %v1577
    %v1579 = vrot.slane %v1551, %v1578
    %1584 = vmatprep.subr.mxu0 %v1424
    %1585 = vmatpush1.msra.mxu0 %v1423
    %1586 = vmatprep.subr.mxu0 %v1428
    %1587 = vmatpush1.msra.mxu0 %v1427
    %1588 = vmatprep.subr.mxu0 %v1432
    %1589 = vmatpush1.msra.mxu0 %v1431
    %1590 = vmatprep.subr.mxu0 %v1436
    %1591 = vmatpush1.msra.mxu0 %v1435
    %1592 = vmatprep.subr.mxu0 %v1440
    %1593 = vmatpush1.msra.mxu0 %v1439
    %1594 = vmatprep.subr.mxu0 %v1444
    %1595 = vmatpush1.msra.mxu0 %v1443
    %1596 = vmatprep.subr.mxu0 %v1448
    %1597 = vmatpush1.msra.mxu0 %v1447
    %1598 = vmatprep.subr.mxu0 %v1452
    %1599 = vmatpush1.msra.mxu0 %v1451
    %1600 = vmatprep.subr.mxu0 %v1456
    %1601 = vmatpush1.msra.mxu0 %v1455
    %1602 = vmatprep.subr.mxu0 %v1460
    %1603 = vmatpush1.msra.mxu0 %v1459
    %1604 = vmatprep.subr.mxu0 %v1464
    %1605 = vmatpush1.msra.mxu0 %v1463
    %1606 = vmatprep.subr.mxu0 %v1468
    %1607 = vmatpush1.msra.mxu0 %v1467
    %1608 = vmatprep.subr.mxu0 %v1472
    %1609 = vmatpush1.msra.mxu0 %v1471
    %1610 = vmatprep.subr.mxu0 %v1476
    %1611 = vmatpush1.msra.mxu0 %v1475
    %1612 = vmatprep.subr.mxu0 %v1480
    %1613 = vmatpush1.msra.mxu0 %v1479
    %1614 = vmatprep.subr.mxu0 %v1484
    %1615 = vmatpush1.msra.mxu0 %v1483
    %1616 = vmatprep.subr.mxu0 %v1488
    %1617 = vmatpush1.msra.mxu0 %v1487
    %1618 = vmatprep.subr.mxu0 %v1492
    %1619 = vmatpush1.msra.mxu0 %v1491
    %1620 = vmatprep.subr.mxu0 %v1496
    %1621 = vmatpush1.msra.mxu0 %v1495
    %1622 = vmatprep.subr.mxu0 %v1500
    %1623 = vmatpush1.msra.mxu0 %v1499
    %1624 = vmatprep.subr.mxu0 %v1504
    %1625 = vmatpush1.msra.mxu0 %v1503
    %1626 = vmatprep.subr.mxu0 %v1508
    %1627 = vmatpush1.msra.mxu0 %v1507
    %1628 = vmatprep.subr.mxu0 %v1512
    %1629 = vmatpush1.msra.mxu0 %v1511
    %1630 = vmatprep.subr.mxu0 %v1516
    %1631 = vmatpush1.msra.mxu0 %v1515
    %1632 = vmatprep.subr.mxu0 %v1520
    %1633 = vmatpush1.msra.mxu0 %v1519
    %1634 = vmatprep.subr.mxu0 %v1524
    %1635 = vmatpush1.msra.mxu0 %v1523
    %1636 = vmatprep.subr.mxu0 %v1528
    %1637 = vmatpush1.msra.mxu0 %v1527
    %1638 = vmatprep.subr.mxu0 %v1532
    %1639 = vmatpush1.msra.mxu0 %v1531
    %1640 = vmatprep.subr.mxu0 %v1536
    %1641 = vmatpush1.msra.mxu0 %v1535
    %1642 = vmatprep.subr.mxu0 %v1540
    %1643 = vmatpush1.msra.mxu0 %v1539
    %1644 = vmatprep.subr.mxu0 %v1544
    %1645 = vmatpush1.msra.mxu0 %v1543
    %1646 = vmatprep.subr.mxu0 %v1548
    %1647 = vmatpush1.msra.mxu0 %v1547
    %1648 = vmatprep.mubr.f32.mxu0 %v1560
    %1649 = vmatmul.mubr.f32.gmra.mrb[0].mxu0 %v1556
    %v1650 = vpop.f32.mrb[0].mxu0
    %v1651 = vadd.f32 %v1567, %v1650
    %v1652 = vpop.f32.mrb[0].mxu0
    %v1653 = vadd.f32 %v1571, %v1652
    %1654 = vdwg.mxu0
    %1655 = vmatprep.subr.mxu0 %v1426
    %1656 = vmatpush1.msra.mxu0 %v1425
    %1657 = vmatprep.subr.mxu0 %v1430
    %1658 = vmatpush1.msra.mxu0 %v1429
    %1659 = vmatprep.subr.mxu0 %v1434
    %1660 = vmatpush1.msra.mxu0 %v1433
    %1661 = vmatprep.subr.mxu0 %v1438
    %1662 = vmatpush1.msra.mxu0 %v1437
    %1663 = vmatprep.subr.mxu0 %v1442
    %1664 = vmatpush1.msra.mxu0 %v1441
    %1665 = vmatprep.subr.mxu0 %v1446
    %1666 = vmatpush1.msra.mxu0 %v1445
    %1667 = vmatprep.subr.mxu0 %v1450
    %1668 = vmatpush1.msra.mxu0 %v1449
    %1669 = vmatprep.subr.mxu0 %v1454
    %1670 = vmatpush1.msra.mxu0 %v1453
    %1671 = vmatprep.subr.mxu0 %v1458
    %1672 = vmatpush1.msra.mxu0 %v1457
    %1673 = vmatprep.subr.mxu0 %v1462
    %1674 = vmatpush1.msra.mxu0 %v1461
    %1675 = vmatprep.subr.mxu0 %v1466
    %1676 = vmatpush1.msra.mxu0 %v1465
    %1677 = vmatprep.subr.mxu0 %v1470
    %1678 = vmatpush1.msra.mxu0 %v1469
    %1679 = vmatprep.subr.mxu0 %v1474
    %1680 = vmatpush1.msra.mxu0 %v1473
    %1681 = vmatprep.subr.mxu0 %v1478
    %1682 = vmatpush1.msra.mxu0 %v1477
    %1683 = vmatprep.subr.mxu0 %v1482
    %1684 = vmatpush1.msra.mxu0 %v1481
    %1685 = vmatprep.subr.mxu0 %v1486
    %1686 = vmatpush1.msra.mxu0 %v1485
    %1687 = vmatprep.subr.mxu0 %v1490
    %1688 = vmatpush1.msra.mxu0 %v1489
    %1689 = vmatprep.subr.mxu0 %v1494
    %1690 = vmatpush1.msra.mxu0 %v1493
    %1691 = vmatprep.subr.mxu0 %v1498
    %1692 = vmatpush1.msra.mxu0 %v1497
    %1693 = vmatprep.subr.mxu0 %v1502
    %1694 = vmatpush1.msra.mxu0 %v1501
    %1695 = vmatprep.subr.mxu0 %v1506
    %1696 = vmatpush1.msra.mxu0 %v1505
    %1697 = vmatprep.subr.mxu0 %v1510
    %1698 = vmatpush1.msra.mxu0 %v1509
    %1699 = vmatprep.subr.mxu0 %v1514
    %1700 = vmatpush1.msra.mxu0 %v1513
    %1701 = vmatprep.subr.mxu0 %v1518
    %1702 = vmatpush1.msra.mxu0 %v1517
    %1703 = vmatprep.subr.mxu0 %v1522
    %1704 = vmatpush1.msra.mxu0 %v1521
    %1705 = vmatprep.subr.mxu0 %v1526
    %1706 = vmatpush1.msra.mxu0 %v1525
    %1707 = vmatprep.subr.mxu0 %v1530
    %1708 = vmatpush1.msra.mxu0 %v1529
    %1709 = vmatprep.subr.mxu0 %v1534
    %1710 = vmatpush1.msra.mxu0 %v1533
    %1711 = vmatprep.subr.mxu0 %v1538
    %1712 = vmatpush1.msra.mxu0 %v1537
    %1713 = vmatprep.subr.mxu0 %v1542
    %1714 = vmatpush1.msra.mxu0 %v1541
    %1715 = vmatprep.subr.mxu0 %v1546
    %1716 = vmatpush1.msra.mxu0 %v1545
    %1717 = vmatprep.subr.mxu0 %v1550
    %1718 = vmatpush1.msra.mxu0 %v1549
    %1719 = vmatprep.mubr.f32.mxu0 %v1560
    %1720 = vmatmul.mubr.f32.gmra.mrb[0].mxu0 %v1556
    %v1721 = vpop.f32.mrb[0].mxu0
    %v1722 = vadd.f32 %v1575, %v1721
    %v1723 = vpop.f32.mrb[0].mxu0
    %v1724 = vadd.f32 %v1579, %v1723
    %1725 = vdwg.mxu0
    %v1726 = vxor.u32 %v1651, 2147483648
    %v1727 = vmul.f32 %v1726, 1.442695
    %v1728 = vpow.pop %v1727
    %v1729 = vadd.f32 %v1728, 1.0
    %v1730 = vrcp.pop %v1729
    %v1731 = vmul.f32 1.0, %v1730
    %v1732 = vxor.u32 %v1653, 2147483648
    %v1733 = vmul.f32 %v1732, 1.442695
    %v1734 = vpow.pop %v1733
    %v1735 = vadd.f32 %v1734, 1.0
    %v1736 = vrcp.pop %v1735
    %v1737 = vmul.f32 1.0, %v1736
    %v1738 = vtanh.pop %v1722
    %v1739 = vxor.u32 %v1724, 2147483648
    %v1740 = vmul.f32 %v1739, 1.442695
    %v1741 = vpow.pop %v1740
    %v1742 = vadd.f32 %v1741, 1.0
    %v1743 = vrcp.pop %v1742
    %v1744 = vmul.f32 1.0, %v1743
    %v1745 = vld [vmem:[#allocation4] sm:$0x1]
    %v1746 = vmul.f32 %v1737, %v1745
    %v1747 = vmul.f32 %v1731, %v1738
    %v1748 = vadd.f32 %v1746, %v1747
    %v1749 = vtanh.pop %v1748
    %v1750 = vmul.f32 %v1744, %v1749
    %1751 = vst [vmem:[#allocation4] sm:$0x1] %v1748
    %1752 = vst.msk [vmem:[#allocation2 + $0x1] sm:$0x1] %vm70, %v1750
    %1753 = vst [vmem:[#allocation3 + $0x4] sm:$0x1] %v1750
    %s1754 = sld [smem:[#allocation6 + $0x5]]
    %s1755 = scalar_lea.vmem %s1, %s1754
    %v1756 = vld [vmem:[%s1755] sm:$0x1]
    %1757 = vst.msk [vmem:[#allocation2] sm:$0x1] %vm70, %v1756
    %v1758 = vld [vmem:[#allocation2] sm:$0x3]
    %v1759 = vld [vmem:[#allocation7] sm:$0xff]
    %v1760 = vld [vmem:[#allocation7 + $0x8] sm:$0xff]
    %v1761 = vld [vmem:[#allocation7 + $0x10] sm:$0xff]
    %v1762 = vld [vmem:[#allocation7 + $0x18] sm:$0xff]
    %v1763 = vld [vmem:[#allocation7 + $0x20] sm:$0xff]
    %v1764 = vld [vmem:[#allocation7 + $0x28] sm:$0xff]
    %v1765 = vld [vmem:[#allocation7 + $0x30] sm:$0xff]
    %v1766 = vld [vmem:[#allocation7 + $0x38] sm:$0xff]
    %v1767 = vld [vmem:[#allocation7 + $0x40] sm:$0xff]
    %v1768 = vld [vmem:[#allocation7 + $0x48] sm:$0xff]
    %v1769 = vld [vmem:[#allocation7 + $0x50] sm:$0xff]
    %v1770 = vld [vmem:[#allocation7 + $0x58] sm:$0xff]
    %v1771 = vld [vmem:[#allocation7 + $0x60] sm:$0xff]
    %v1772 = vld [vmem:[#allocation7 + $0x68] sm:$0xff]
    %v1773 = vld [vmem:[#allocation7 + $0x70] sm:$0xff]
    %v1774 = vld [vmem:[#allocation7 + $0x78] sm:$0xff]
    %v1775 = vld [vmem:[#allocation7 + $0x80] sm:$0xff]
    %v1776 = vld [vmem:[#allocation7 + $0x88] sm:$0xff]
    %v1777 = vld [vmem:[#allocation7 + $0x90] sm:$0xff]
    %v1778 = vld [vmem:[#allocation7 + $0x98] sm:$0xff]
    %v1779 = vld [vmem:[#allocation7 + $0xa0] sm:$0xff]
    %v1780 = vld [vmem:[#allocation7 + $0xa8] sm:$0xff]
    %v1781 = vld [vmem:[#allocation7 + $0xb0] sm:$0xff]
    %v1782 = vld [vmem:[#allocation7 + $0xb8] sm:$0xff]
    %v1783 = vld [vmem:[#allocation7 + $0xc0] sm:$0xff]
    %v1784 = vld [vmem:[#allocation7 + $0xc8] sm:$0xff]
    %v1785 = vld [vmem:[#allocation7 + $0xd0] sm:$0xff]
    %v1786 = vld [vmem:[#allocation7 + $0xd8] sm:$0xff]
    %v1787 = vld [vmem:[#allocation7 + $0xe0] sm:$0xff]
    %v1788 = vld [vmem:[#allocation7 + $0xe8] sm:$0xff]
    %v1789 = vld [vmem:[#allocation7 + $0xf0] sm:$0xff]
    %v1790 = vld [vmem:[#allocation7 + $0xf8] sm:$0xff]
    %v1791 = vld [vmem:[#allocation7 + $0x100] sm:$0xff]
    %v1792 = vld [vmem:[#allocation7 + $0x108] sm:$0xff]
    %v1793 = vld [vmem:[#allocation7 + $0x110] sm:$0xff]
    %v1794 = vld [vmem:[#allocation7 + $0x118] sm:$0xff]
    %v1795 = vld [vmem:[#allocation7 + $0x120] sm:$0xff]
    %v1796 = vld [vmem:[#allocation7 + $0x128] sm:$0xff]
    %v1797 = vld [vmem:[#allocation7 + $0x130] sm:$0xff]
    %v1798 = vld [vmem:[#allocation7 + $0x138] sm:$0xff]
    %v1799 = vld [vmem:[#allocation7 + $0x140] sm:$0xff]
    %v1800 = vld [vmem:[#allocation7 + $0x148] sm:$0xff]
    %v1801 = vld [vmem:[#allocation7 + $0x150] sm:$0xff]
    %v1802 = vld [vmem:[#allocation7 + $0x158] sm:$0xff]
    %v1803 = vld [vmem:[#allocation7 + $0x160] sm:$0xff]
    %v1804 = vld [vmem:[#allocation7 + $0x168] sm:$0xff]
    %v1805 = vld [vmem:[#allocation7 + $0x170] sm:$0xff]
    %v1806 = vld [vmem:[#allocation7 + $0x178] sm:$0xff]
    %v1807 = vld [vmem:[#allocation7 + $0x180] sm:$0xff]
    %v1808 = vld [vmem:[#allocation7 + $0x188] sm:$0xff]
    %v1809 = vld [vmem:[#allocation7 + $0x190] sm:$0xff]
    %v1810 = vld [vmem:[#allocation7 + $0x198] sm:$0xff]
    %v1811 = vld [vmem:[#allocation7 + $0x1a0] sm:$0xff]
    %v1812 = vld [vmem:[#allocation7 + $0x1a8] sm:$0xff]
    %v1813 = vld [vmem:[#allocation7 + $0x1b0] sm:$0xff]
    %v1814 = vld [vmem:[#allocation7 + $0x1b8] sm:$0xff]
    %v1815 = vld [vmem:[#allocation7 + $0x1c0] sm:$0xff]
    %v1816 = vld [vmem:[#allocation7 + $0x1c8] sm:$0xff]
    %v1817 = vld [vmem:[#allocation7 + $0x1d0] sm:$0xff]
    %v1818 = vld [vmem:[#allocation7 + $0x1d8] sm:$0xff]
    %v1819 = vld [vmem:[#allocation7 + $0x1e0] sm:$0xff]
    %v1820 = vld [vmem:[#allocation7 + $0x1e8] sm:$0xff]
    %v1821 = vld [vmem:[#allocation7 + $0x1f0] sm:$0xff]
    %v1822 = vld [vmem:[#allocation7 + $0x1f8] sm:$0xff]
    %v1823 = vld [vmem:[#allocation7 + $0x200] sm:$0xff]
    %v1824 = vld [vmem:[#allocation7 + $0x208] sm:$0xff]
    %v1825 = vld [vmem:[#allocation7 + $0x210] sm:$0xff]
    %v1826 = vld [vmem:[#allocation7 + $0x218] sm:$0xff]
    %v1827 = vld [vmem:[#allocation7 + $0x220] sm:$0xff]
    %v1828 = vld [vmem:[#allocation7 + $0x228] sm:$0xff]
    %v1829 = vld [vmem:[#allocation7 + $0x230] sm:$0xff]
    %v1830 = vld [vmem:[#allocation7 + $0x238] sm:$0xff]
    %v1831 = vld [vmem:[#allocation7 + $0x240] sm:$0xff]
    %v1832 = vld [vmem:[#allocation7 + $0x248] sm:$0xff]
    %v1833 = vld [vmem:[#allocation7 + $0x250] sm:$0xff]
    %v1834 = vld [vmem:[#allocation7 + $0x258] sm:$0xff]
    %v1835 = vld [vmem:[#allocation7 + $0x260] sm:$0xff]
    %v1836 = vld [vmem:[#allocation7 + $0x268] sm:$0xff]
    %v1837 = vld [vmem:[#allocation7 + $0x270] sm:$0xff]
    %v1838 = vld [vmem:[#allocation7 + $0x278] sm:$0xff]
    %v1839 = vld [vmem:[#allocation7 + $0x280] sm:$0xff]
    %v1840 = vld [vmem:[#allocation7 + $0x288] sm:$0xff]
    %v1841 = vld [vmem:[#allocation7 + $0x290] sm:$0xff]
    %v1842 = vld [vmem:[#allocation7 + $0x298] sm:$0xff]
    %v1843 = vld [vmem:[#allocation7 + $0x2a0] sm:$0xff]
    %v1844 = vld [vmem:[#allocation7 + $0x2a8] sm:$0xff]
    %v1845 = vld [vmem:[#allocation7 + $0x2b0] sm:$0xff]
    %v1846 = vld [vmem:[#allocation7 + $0x2b8] sm:$0xff]
    %v1847 = vld [vmem:[#allocation7 + $0x2c0] sm:$0xff]
    %v1848 = vld [vmem:[#allocation7 + $0x2c8] sm:$0xff]
    %v1849 = vld [vmem:[#allocation7 + $0x2d0] sm:$0xff]
    %v1850 = vld [vmem:[#allocation7 + $0x2d8] sm:$0xff]
    %v1851 = vld [vmem:[#allocation7 + $0x2e0] sm:$0xff]
    %v1852 = vld [vmem:[#allocation7 + $0x2e8] sm:$0xff]
    %v1853 = vld [vmem:[#allocation7 + $0x2f0] sm:$0xff]
    %v1854 = vld [vmem:[#allocation7 + $0x2f8] sm:$0xff]
    %v1855 = vld [vmem:[#allocation7 + $0x300] sm:$0xff]
    %v1856 = vld [vmem:[#allocation7 + $0x308] sm:$0xff]
    %v1857 = vld [vmem:[#allocation7 + $0x310] sm:$0xff]
    %v1858 = vld [vmem:[#allocation7 + $0x318] sm:$0xff]
    %v1859 = vld [vmem:[#allocation7 + $0x320] sm:$0xff]
    %v1860 = vld [vmem:[#allocation7 + $0x328] sm:$0xff]
    %v1861 = vld [vmem:[#allocation7 + $0x330] sm:$0xff]
    %v1862 = vld [vmem:[#allocation7 + $0x338] sm:$0xff]
    %v1863 = vld [vmem:[#allocation7 + $0x340] sm:$0xff]
    %v1864 = vld [vmem:[#allocation7 + $0x348] sm:$0xff]
    %v1865 = vld [vmem:[#allocation7 + $0x350] sm:$0xff]
    %v1866 = vld [vmem:[#allocation7 + $0x358] sm:$0xff]
    %v1867 = vld [vmem:[#allocation7 + $0x360] sm:$0xff]
    %v1868 = vld [vmem:[#allocation7 + $0x368] sm:$0xff]
    %v1869 = vld [vmem:[#allocation7 + $0x370] sm:$0xff]
    %v1870 = vld [vmem:[#allocation7 + $0x378] sm:$0xff]
    %v1871 = vld [vmem:[#allocation7 + $0x380] sm:$0xff]
    %v1872 = vld [vmem:[#allocation7 + $0x388] sm:$0xff]
    %v1873 = vld [vmem:[#allocation7 + $0x390] sm:$0xff]
    %v1874 = vld [vmem:[#allocation7 + $0x398] sm:$0xff]
    %v1875 = vld [vmem:[#allocation7 + $0x3a0] sm:$0xff]
    %v1876 = vld [vmem:[#allocation7 + $0x3a8] sm:$0xff]
    %v1877 = vld [vmem:[#allocation7 + $0x3b0] sm:$0xff]
    %v1878 = vld [vmem:[#allocation7 + $0x3b8] sm:$0xff]
    %v1879 = vld [vmem:[#allocation7 + $0x3c0] sm:$0xff]
    %v1880 = vld [vmem:[#allocation7 + $0x3c8] sm:$0xff]
    %v1881 = vld [vmem:[#allocation7 + $0x3d0] sm:$0xff]
    %v1882 = vld [vmem:[#allocation7 + $0x3d8] sm:$0xff]
    %v1883 = vld [vmem:[#allocation7 + $0x3e0] sm:$0xff]
    %v1884 = vld [vmem:[#allocation7 + $0x3e8] sm:$0xff]
    %v1885 = vld [vmem:[#allocation7 + $0x3f0] sm:$0xff]
    %v1886 = vld [vmem:[#allocation7 + $0x3f8] sm:$0xff]
    %v1887 = vld [vmem:[%s3] sm:$0xf]
    %v1889 = vlaneseq
    %v1890 = vshrl.u32 %v1889, 7
    %v1891 = vsub.s32 0, %v1890
    %v1892 = vrot.slane %v1758, %v1891
    %v1893 = vlaneseq
    %v1894 = vshrl.u32 %v1893, 7
    %v1895 = vsub.s32 1, %v1894
    %v1896 = vrot.slane %v1758, %v1895
    %v1900 = vlaneseq
    %v1901 = vshrl.u32 %v1900, 7
    %v1902 = vsub.s32 0, %v1901
    %v1903 = vrot.slane %v1887, %v1902
    %v1904 = vlaneseq
    %v1905 = vshrl.u32 %v1904, 7
    %v1906 = vsub.s32 1, %v1905
    %v1907 = vrot.slane %v1887, %v1906
    %v1908 = vlaneseq
    %v1909 = vshrl.u32 %v1908, 7
    %v1910 = vsub.s32 2, %v1909
    %v1911 = vrot.slane %v1887, %v1910
    %v1912 = vlaneseq
    %v1913 = vshrl.u32 %v1912, 7
    %v1914 = vsub.s32 3, %v1913
    %v1915 = vrot.slane %v1887, %v1914
    %1920 = vmatprep.subr.mxu0 %v1760
    %1921 = vmatpush1.msra.mxu0 %v1759
    %1922 = vmatprep.subr.mxu0 %v1764
    %1923 = vmatpush1.msra.mxu0 %v1763
    %1924 = vmatprep.subr.mxu0 %v1768
    %1925 = vmatpush1.msra.mxu0 %v1767
    %1926 = vmatprep.subr.mxu0 %v1772
    %1927 = vmatpush1.msra.mxu0 %v1771
    %1928 = vmatprep.subr.mxu0 %v1776
    %1929 = vmatpush1.msra.mxu0 %v1775
    %1930 = vmatprep.subr.mxu0 %v1780
    %1931 = vmatpush1.msra.mxu0 %v1779
    %1932 = vmatprep.subr.mxu0 %v1784
    %1933 = vmatpush1.msra.mxu0 %v1783
    %1934 = vmatprep.subr.mxu0 %v1788
    %1935 = vmatpush1.msra.mxu0 %v1787
    %1936 = vmatprep.subr.mxu0 %v1792
    %1937 = vmatpush1.msra.mxu0 %v1791
    %1938 = vmatprep.subr.mxu0 %v1796
    %1939 = vmatpush1.msra.mxu0 %v1795
    %1940 = vmatprep.subr.mxu0 %v1800
    %1941 = vmatpush1.msra.mxu0 %v1799
    %1942 = vmatprep.subr.mxu0 %v1804
    %1943 = vmatpush1.msra.mxu0 %v1803
    %1944 = vmatprep.subr.mxu0 %v1808
    %1945 = vmatpush1.msra.mxu0 %v1807
    %1946 = vmatprep.subr.mxu0 %v1812
    %1947 = vmatpush1.msra.mxu0 %v1811
    %1948 = vmatprep.subr.mxu0 %v1816
    %1949 = vmatpush1.msra.mxu0 %v1815
    %1950 = vmatprep.subr.mxu0 %v1820
    %1951 = vmatpush1.msra.mxu0 %v1819
    %1952 = vmatprep.subr.mxu0 %v1824
    %1953 = vmatpush1.msra.mxu0 %v1823
    %1954 = vmatprep.subr.mxu0 %v1828
    %1955 = vmatpush1.msra.mxu0 %v1827
    %1956 = vmatprep.subr.mxu0 %v1832
    %1957 = vmatpush1.msra.mxu0 %v1831
    %1958 = vmatprep.subr.mxu0 %v1836
    %1959 = vmatpush1.msra.mxu0 %v1835
    %1960 = vmatprep.subr.mxu0 %v1840
    %1961 = vmatpush1.msra.mxu0 %v1839
    %1962 = vmatprep.subr.mxu0 %v1844
    %1963 = vmatpush1.msra.mxu0 %v1843
    %1964 = vmatprep.subr.mxu0 %v1848
    %1965 = vmatpush1.msra.mxu0 %v1847
    %1966 = vmatprep.subr.mxu0 %v1852
    %1967 = vmatpush1.msra.mxu0 %v1851
    %1968 = vmatprep.subr.mxu0 %v1856
    %1969 = vmatpush1.msra.mxu0 %v1855
    %1970 = vmatprep.subr.mxu0 %v1860
    %1971 = vmatpush1.msra.mxu0 %v1859
    %1972 = vmatprep.subr.mxu0 %v1864
    %1973 = vmatpush1.msra.mxu0 %v1863
    %1974 = vmatprep.subr.mxu0 %v1868
    %1975 = vmatpush1.msra.mxu0 %v1867
    %1976 = vmatprep.subr.mxu0 %v1872
    %1977 = vmatpush1.msra.mxu0 %v1871
    %1978 = vmatprep.subr.mxu0 %v1876
    %1979 = vmatpush1.msra.mxu0 %v1875
    %1980 = vmatprep.subr.mxu0 %v1880
    %1981 = vmatpush1.msra.mxu0 %v1879
    %1982 = vmatprep.subr.mxu0 %v1884
    %1983 = vmatpush1.msra.mxu0 %v1883
    %1984 = vmatprep.mubr.f32.mxu0 %v1896
    %1985 = vmatmul.mubr.f32.gmra.mrb[0].mxu0 %v1892
    %v1986 = vpop.f32.mrb[0].mxu0
    %v1987 = vadd.f32 %v1903, %v1986
    %v1988 = vpop.f32.mrb[0].mxu0
    %v1989 = vadd.f32 %v1907, %v1988
    %1990 = vdwg.mxu0
    %1991 = vmatprep.subr.mxu0 %v1762
    %1992 = vmatpush1.msra.mxu0 %v1761
    %1993 = vmatprep.subr.mxu0 %v1766
    %1994 = vmatpush1.msra.mxu0 %v1765
    %1995 = vmatprep.subr.mxu0 %v1770
    %1996 = vmatpush1.msra.mxu0 %v1769
    %1997 = vmatprep.subr.mxu0 %v1774
    %1998 = vmatpush1.msra.mxu0 %v1773
    %1999 = vmatprep.subr.mxu0 %v1778
    %2000 = vmatpush1.msra.mxu0 %v1777
    %2001 = vmatprep.subr.mxu0 %v1782
    %2002 = vmatpush1.msra.mxu0 %v1781
    %2003 = vmatprep.subr.mxu0 %v1786
    %2004 = vmatpush1.msra.mxu0 %v1785
    %2005 = vmatprep.subr.mxu0 %v1790
    %2006 = vmatpush1.msra.mxu0 %v1789
    %2007 = vmatprep.subr.mxu0 %v1794
    %2008 = vmatpush1.msra.mxu0 %v1793
    %2009 = vmatprep.subr.mxu0 %v1798
    %2010 = vmatpush1.msra.mxu0 %v1797
    %2011 = vmatprep.subr.mxu0 %v1802
    %2012 = vmatpush1.msra.mxu0 %v1801
    %2013 = vmatprep.subr.mxu0 %v1806
    %2014 = vmatpush1.msra.mxu0 %v1805
    %2015 = vmatprep.subr.mxu0 %v1810
    %2016 = vmatpush1.msra.mxu0 %v1809
    %2017 = vmatprep.subr.mxu0 %v1814
    %2018 = vmatpush1.msra.mxu0 %v1813
    %2019 = vmatprep.subr.mxu0 %v1818
    %2020 = vmatpush1.msra.mxu0 %v1817
    %2021 = vmatprep.subr.mxu0 %v1822
    %2022 = vmatpush1.msra.mxu0 %v1821
    %2023 = vmatprep.subr.mxu0 %v1826
    %2024 = vmatpush1.msra.mxu0 %v1825
    %2025 = vmatprep.subr.mxu0 %v1830
    %2026 = vmatpush1.msra.mxu0 %v1829
    %2027 = vmatprep.subr.mxu0 %v1834
    %2028 = vmatpush1.msra.mxu0 %v1833
    %2029 = vmatprep.subr.mxu0 %v1838
    %2030 = vmatpush1.msra.mxu0 %v1837
    %2031 = vmatprep.subr.mxu0 %v1842
    %2032 = vmatpush1.msra.mxu0 %v1841
    %2033 = vmatprep.subr.mxu0 %v1846
    %2034 = vmatpush1.msra.mxu0 %v1845
    %2035 = vmatprep.subr.mxu0 %v1850
    %2036 = vmatpush1.msra.mxu0 %v1849
    %2037 = vmatprep.subr.mxu0 %v1854
    %2038 = vmatpush1.msra.mxu0 %v1853
    %2039 = vmatprep.subr.mxu0 %v1858
    %2040 = vmatpush1.msra.mxu0 %v1857
    %2041 = vmatprep.subr.mxu0 %v1862
    %2042 = vmatpush1.msra.mxu0 %v1861
    %2043 = vmatprep.subr.mxu0 %v1866
    %2044 = vmatpush1.msra.mxu0 %v1865
    %2045 = vmatprep.subr.mxu0 %v1870
    %2046 = vmatpush1.msra.mxu0 %v1869
    %2047 = vmatprep.subr.mxu0 %v1874
    %2048 = vmatpush1.msra.mxu0 %v1873
    %2049 = vmatprep.subr.mxu0 %v1878
    %2050 = vmatpush1.msra.mxu0 %v1877
    %2051 = vmatprep.subr.mxu0 %v1882
    %2052 = vmatpush1.msra.mxu0 %v1881
    %2053 = vmatprep.subr.mxu0 %v1886
    %2054 = vmatpush1.msra.mxu0 %v1885
    %2055 = vmatprep.mubr.f32.mxu0 %v1896
    %2056 = vmatmul.mubr.f32.gmra.mrb[0].mxu0 %v1892
    %v2057 = vpop.f32.mrb[0].mxu0
    %v2058 = vadd.f32 %v1911, %v2057
    %v2059 = vpop.f32.mrb[0].mxu0
    %v2060 = vadd.f32 %v1915, %v2059
    %2061 = vdwg.mxu0
    %v2062 = vxor.u32 %v1987, 2147483648
    %v2063 = vmul.f32 %v2062, 1.442695
    %v2064 = vpow.pop %v2063
    %v2065 = vadd.f32 %v2064, 1.0
    %v2066 = vrcp.pop %v2065
    %v2067 = vmul.f32 1.0, %v2066
    %v2068 = vxor.u32 %v1989, 2147483648
    %v2069 = vmul.f32 %v2068, 1.442695
    %v2070 = vpow.pop %v2069
    %v2071 = vadd.f32 %v2070, 1.0
    %v2072 = vrcp.pop %v2071
    %v2073 = vmul.f32 1.0, %v2072
    %v2074 = vtanh.pop %v2058
    %v2075 = vxor.u32 %v2060, 2147483648
    %v2076 = vmul.f32 %v2075, 1.442695
    %v2077 = vpow.pop %v2076
    %v2078 = vadd.f32 %v2077, 1.0
    %v2079 = vrcp.pop %v2078
    %v2080 = vmul.f32 1.0, %v2079
    %v2081 = vld [vmem:[#allocation4] sm:$0x1]
    %v2082 = vmul.f32 %v2073, %v2081
    %v2083 = vmul.f32 %v2067, %v2074
    %v2084 = vadd.f32 %v2082, %v2083
    %v2085 = vtanh.pop %v2084
    %v2086 = vmul.f32 %v2080, %v2085
    %2087 = vst [vmem:[#allocation4] sm:$0x1] %v2084
    %2088 = vst.msk [vmem:[#allocation2 + $0x1] sm:$0x1] %vm70, %v2086
    %2089 = vst [vmem:[#allocation3 + $0x5] sm:$0x1] %v2086
    %s2090 = sld [smem:[#allocation6 + $0x6]]
    %s2091 = scalar_lea.vmem %s1, %s2090
    %v2092 = vld [vmem:[%s2091] sm:$0x1]
    %2093 = vst.msk [vmem:[#allocation2] sm:$0x1] %vm70, %v2092
    %v2094 = vld [vmem:[#allocation2] sm:$0x3]
    %v2095 = vld [vmem:[#allocation7] sm:$0xff]
    %v2096 = vld [vmem:[#allocation7 + $0x8] sm:$0xff]
    %v2097 = vld [vmem:[#allocation7 + $0x10] sm:$0xff]
    %v2098 = vld [vmem:[#allocation7 + $0x18] sm:$0xff]
    %v2099 = vld [vmem:[#allocation7 + $0x20] sm:$0xff]
    %v2100 = vld [vmem:[#allocation7 + $0x28] sm:$0xff]
    %v2101 = vld [vmem:[#allocation7 + $0x30] sm:$0xff]
    %v2102 = vld [vmem:[#allocation7 + $0x38] sm:$0xff]
    %v2103 = vld [vmem:[#allocation7 + $0x40] sm:$0xff]
    %v2104 = vld [vmem:[#allocation7 + $0x48] sm:$0xff]
    %v2105 = vld [vmem:[#allocation7 + $0x50] sm:$0xff]
    %v2106 = vld [vmem:[#allocation7 + $0x58] sm:$0xff]
    %v2107 = vld [vmem:[#allocation7 + $0x60] sm:$0xff]
    %v2108 = vld [vmem:[#allocation7 + $0x68] sm:$0xff]
    %v2109 = vld [vmem:[#allocation7 + $0x70] sm:$0xff]
    %v2110 = vld [vmem:[#allocation7 + $0x78] sm:$0xff]
    %v2111 = vld [vmem:[#allocation7 + $0x80] sm:$0xff]
    %v2112 = vld [vmem:[#allocation7 + $0x88] sm:$0xff]
    %v2113 = vld [vmem:[#allocation7 + $0x90] sm:$0xff]
    %v2114 = vld [vmem:[#allocation7 + $0x98] sm:$0xff]
    %v2115 = vld [vmem:[#allocation7 + $0xa0] sm:$0xff]
    %v2116 = vld [vmem:[#allocation7 + $0xa8] sm:$0xff]
    %v2117 = vld [vmem:[#allocation7 + $0xb0] sm:$0xff]
    %v2118 = vld [vmem:[#allocation7 + $0xb8] sm:$0xff]
    %v2119 = vld [vmem:[#allocation7 + $0xc0] sm:$0xff]
    %v2120 = vld [vmem:[#allocation7 + $0xc8] sm:$0xff]
    %v2121 = vld [vmem:[#allocation7 + $0xd0] sm:$0xff]
    %v2122 = vld [vmem:[#allocation7 + $0xd8] sm:$0xff]
    %v2123 = vld [vmem:[#allocation7 + $0xe0] sm:$0xff]
    %v2124 = vld [vmem:[#allocation7 + $0xe8] sm:$0xff]
    %v2125 = vld [vmem:[#allocation7 + $0xf0] sm:$0xff]
    %v2126 = vld [vmem:[#allocation7 + $0xf8] sm:$0xff]
    %v2127 = vld [vmem:[#allocation7 + $0x100] sm:$0xff]
    %v2128 = vld [vmem:[#allocation7 + $0x108] sm:$0xff]
    %v2129 = vld [vmem:[#allocation7 + $0x110] sm:$0xff]
    %v2130 = vld [vmem:[#allocation7 + $0x118] sm:$0xff]
    %v2131 = vld [vmem:[#allocation7 + $0x120] sm:$0xff]
    %v2132 = vld [vmem:[#allocation7 + $0x128] sm:$0xff]
    %v2133 = vld [vmem:[#allocation7 + $0x130] sm:$0xff]
    %v2134 = vld [vmem:[#allocation7 + $0x138] sm:$0xff]
    %v2135 = vld [vmem:[#allocation7 + $0x140] sm:$0xff]
    %v2136 = vld [vmem:[#allocation7 + $0x148] sm:$0xff]
    %v2137 = vld [vmem:[#allocation7 + $0x150] sm:$0xff]
    %v2138 = vld [vmem:[#allocation7 + $0x158] sm:$0xff]
    %v2139 = vld [vmem:[#allocation7 + $0x160] sm:$0xff]
    %v2140 = vld [vmem:[#allocation7 + $0x168] sm:$0xff]
    %v2141 = vld [vmem:[#allocation7 + $0x170] sm:$0xff]
    %v2142 = vld [vmem:[#allocation7 + $0x178] sm:$0xff]
    %v2143 = vld [vmem:[#allocation7 + $0x180] sm:$0xff]
    %v2144 = vld [vmem:[#allocation7 + $0x188] sm:$0xff]
    %v2145 = vld [vmem:[#allocation7 + $0x190] sm:$0xff]
    %v2146 = vld [vmem:[#allocation7 + $0x198] sm:$0xff]
    %v2147 = vld [vmem:[#allocation7 + $0x1a0] sm:$0xff]
    %v2148 = vld [vmem:[#allocation7 + $0x1a8] sm:$0xff]
    %v2149 = vld [vmem:[#allocation7 + $0x1b0] sm:$0xff]
    %v2150 = vld [vmem:[#allocation7 + $0x1b8] sm:$0xff]
    %v2151 = vld [vmem:[#allocation7 + $0x1c0] sm:$0xff]
    %v2152 = vld [vmem:[#allocation7 + $0x1c8] sm:$0xff]
    %v2153 = vld [vmem:[#allocation7 + $0x1d0] sm:$0xff]
    %v2154 = vld [vmem:[#allocation7 + $0x1d8] sm:$0xff]
    %v2155 = vld [vmem:[#allocation7 + $0x1e0] sm:$0xff]
    %v2156 = vld [vmem:[#allocation7 + $0x1e8] sm:$0xff]
    %v2157 = vld [vmem:[#allocation7 + $0x1f0] sm:$0xff]
    %v2158 = vld [vmem:[#allocation7 + $0x1f8] sm:$0xff]
    %v2159 = vld [vmem:[#allocation7 + $0x200] sm:$0xff]
    %v2160 = vld [vmem:[#allocation7 + $0x208] sm:$0xff]
    %v2161 = vld [vmem:[#allocation7 + $0x210] sm:$0xff]
    %v2162 = vld [vmem:[#allocation7 + $0x218] sm:$0xff]
    %v2163 = vld [vmem:[#allocation7 + $0x220] sm:$0xff]
    %v2164 = vld [vmem:[#allocation7 + $0x228] sm:$0xff]
    %v2165 = vld [vmem:[#allocation7 + $0x230] sm:$0xff]
    %v2166 = vld [vmem:[#allocation7 + $0x238] sm:$0xff]
    %v2167 = vld [vmem:[#allocation7 + $0x240] sm:$0xff]
    %v2168 = vld [vmem:[#allocation7 + $0x248] sm:$0xff]
    %v2169 = vld [vmem:[#allocation7 + $0x250] sm:$0xff]
    %v2170 = vld [vmem:[#allocation7 + $0x258] sm:$0xff]
    %v2171 = vld [vmem:[#allocation7 + $0x260] sm:$0xff]
    %v2172 = vld [vmem:[#allocation7 + $0x268] sm:$0xff]
    %v2173 = vld [vmem:[#allocation7 + $0x270] sm:$0xff]
    %v2174 = vld [vmem:[#allocation7 + $0x278] sm:$0xff]
    %v2175 = vld [vmem:[#allocation7 + $0x280] sm:$0xff]
    %v2176 = vld [vmem:[#allocation7 + $0x288] sm:$0xff]
    %v2177 = vld [vmem:[#allocation7 + $0x290] sm:$0xff]
    %v2178 = vld [vmem:[#allocation7 + $0x298] sm:$0xff]
    %v2179 = vld [vmem:[#allocation7 + $0x2a0] sm:$0xff]
    %v2180 = vld [vmem:[#allocation7 + $0x2a8] sm:$0xff]
    %v2181 = vld [vmem:[#allocation7 + $0x2b0] sm:$0xff]
    %v2182 = vld [vmem:[#allocation7 + $0x2b8] sm:$0xff]
    %v2183 = vld [vmem:[#allocation7 + $0x2c0] sm:$0xff]
    %v2184 = vld [vmem:[#allocation7 + $0x2c8] sm:$0xff]
    %v2185 = vld [vmem:[#allocation7 + $0x2d0] sm:$0xff]
    %v2186 = vld [vmem:[#allocation7 + $0x2d8] sm:$0xff]
    %v2187 = vld [vmem:[#allocation7 + $0x2e0] sm:$0xff]
    %v2188 = vld [vmem:[#allocation7 + $0x2e8] sm:$0xff]
    %v2189 = vld [vmem:[#allocation7 + $0x2f0] sm:$0xff]
    %v2190 = vld [vmem:[#allocation7 + $0x2f8] sm:$0xff]
    %v2191 = vld [vmem:[#allocation7 + $0x300] sm:$0xff]
    %v2192 = vld [vmem:[#allocation7 + $0x308] sm:$0xff]
    %v2193 = vld [vmem:[#allocation7 + $0x310] sm:$0xff]
    %v2194 = vld [vmem:[#allocation7 + $0x318] sm:$0xff]
    %v2195 = vld [vmem:[#allocation7 + $0x320] sm:$0xff]
    %v2196 = vld [vmem:[#allocation7 + $0x328] sm:$0xff]
    %v2197 = vld [vmem:[#allocation7 + $0x330] sm:$0xff]
    %v2198 = vld [vmem:[#allocation7 + $0x338] sm:$0xff]
    %v2199 = vld [vmem:[#allocation7 + $0x340] sm:$0xff]
    %v2200 = vld [vmem:[#allocation7 + $0x348] sm:$0xff]
    %v2201 = vld [vmem:[#allocation7 + $0x350] sm:$0xff]
    %v2202 = vld [vmem:[#allocation7 + $0x358] sm:$0xff]
    %v2203 = vld [vmem:[#allocation7 + $0x360] sm:$0xff]
    %v2204 = vld [vmem:[#allocation7 + $0x368] sm:$0xff]
    %v2205 = vld [vmem:[#allocation7 + $0x370] sm:$0xff]
    %v2206 = vld [vmem:[#allocation7 + $0x378] sm:$0xff]
    %v2207 = vld [vmem:[#allocation7 + $0x380] sm:$0xff]
    %v2208 = vld [vmem:[#allocation7 + $0x388] sm:$0xff]
    %v2209 = vld [vmem:[#allocation7 + $0x390] sm:$0xff]
    %v2210 = vld [vmem:[#allocation7 + $0x398] sm:$0xff]
    %v2211 = vld [vmem:[#allocation7 + $0x3a0] sm:$0xff]
    %v2212 = vld [vmem:[#allocation7 + $0x3a8] sm:$0xff]
    %v2213 = vld [vmem:[#allocation7 + $0x3b0] sm:$0xff]
    %v2214 = vld [vmem:[#allocation7 + $0x3b8] sm:$0xff]
    %v2215 = vld [vmem:[#allocation7 + $0x3c0] sm:$0xff]
    %v2216 = vld [vmem:[#allocation7 + $0x3c8] sm:$0xff]
    %v2217 = vld [vmem:[#allocation7 + $0x3d0] sm:$0xff]
    %v2218 = vld [vmem:[#allocation7 + $0x3d8] sm:$0xff]
    %v2219 = vld [vmem:[#allocation7 + $0x3e0] sm:$0xff]
    %v2220 = vld [vmem:[#allocation7 + $0x3e8] sm:$0xff]
    %v2221 = vld [vmem:[#allocation7 + $0x3f0] sm:$0xff]
    %v2222 = vld [vmem:[#allocation7 + $0x3f8] sm:$0xff]
    %v2223 = vld [vmem:[%s3] sm:$0xf]
    %v2225 = vlaneseq
    %v2226 = vshrl.u32 %v2225, 7
    %v2227 = vsub.s32 0, %v2226
    %v2228 = vrot.slane %v2094, %v2227
    %v2229 = vlaneseq
    %v2230 = vshrl.u32 %v2229, 7
    %v2231 = vsub.s32 1, %v2230
    %v2232 = vrot.slane %v2094, %v2231
    %v2236 = vlaneseq
    %v2237 = vshrl.u32 %v2236, 7
    %v2238 = vsub.s32 0, %v2237
    %v2239 = vrot.slane %v2223, %v2238
    %v2240 = vlaneseq
    %v2241 = vshrl.u32 %v2240, 7
    %v2242 = vsub.s32 1, %v2241
    %v2243 = vrot.slane %v2223, %v2242
    %v2244 = vlaneseq
    %v2245 = vshrl.u32 %v2244, 7
    %v2246 = vsub.s32 2, %v2245
    %v2247 = vrot.slane %v2223, %v2246
    %v2248 = vlaneseq
    %v2249 = vshrl.u32 %v2248, 7
    %v2250 = vsub.s32 3, %v2249
    %v2251 = vrot.slane %v2223, %v2250
    %2256 = vmatprep.subr.mxu0 %v2096
    %2257 = vmatpush1.msra.mxu0 %v2095
    %2258 = vmatprep.subr.mxu0 %v2100
    %2259 = vmatpush1.msra.mxu0 %v2099
    %2260 = vmatprep.subr.mxu0 %v2104
    %2261 = vmatpush1.msra.mxu0 %v2103
    %2262 = vmatprep.subr.mxu0 %v2108
    %2263 = vmatpush1.msra.mxu0 %v2107
    %2264 = vmatprep.subr.mxu0 %v2112
    %2265 = vmatpush1.msra.mxu0 %v2111
    %2266 = vmatprep.subr.mxu0 %v2116
    %2267 = vmatpush1.msra.mxu0 %v2115
    %2268 = vmatprep.subr.mxu0 %v2120
    %2269 = vmatpush1.msra.mxu0 %v2119
    %2270 = vmatprep.subr.mxu0 %v2124
    %2271 = vmatpush1.msra.mxu0 %v2123
    %2272 = vmatprep.subr.mxu0 %v2128
    %2273 = vmatpush1.msra.mxu0 %v2127
    %2274 = vmatprep.subr.mxu0 %v2132
    %2275 = vmatpush1.msra.mxu0 %v2131
    %2276 = vmatprep.subr.mxu0 %v2136
    %2277 = vmatpush1.msra.mxu0 %v2135
    %2278 = vmatprep.subr.mxu0 %v2140
    %2279 = vmatpush1.msra.mxu0 %v2139
    %2280 = vmatprep.subr.mxu0 %v2144
    %2281 = vmatpush1.msra.mxu0 %v2143
    %2282 = vmatprep.subr.mxu0 %v2148
    %2283 = vmatpush1.msra.mxu0 %v2147
    %2284 = vmatprep.subr.mxu0 %v2152
    %2285 = vmatpush1.msra.mxu0 %v2151
    %2286 = vmatprep.subr.mxu0 %v2156
    %2287 = vmatpush1.msra.mxu0 %v2155
    %2288 = vmatprep.subr.mxu0 %v2160
    %2289 = vmatpush1.msra.mxu0 %v2159
    %2290 = vmatprep.subr.mxu0 %v2164
    %2291 = vmatpush1.msra.mxu0 %v2163
    %2292 = vmatprep.subr.mxu0 %v2168
    %2293 = vmatpush1.msra.mxu0 %v2167
    %2294 = vmatprep.subr.mxu0 %v2172
    %2295 = vmatpush1.msra.mxu0 %v2171
    %2296 = vmatprep.subr.mxu0 %v2176
    %2297 = vmatpush1.msra.mxu0 %v2175
    %2298 = vmatprep.subr.mxu0 %v2180
    %2299 = vmatpush1.msra.mxu0 %v2179
    %2300 = vmatprep.subr.mxu0 %v2184
    %2301 = vmatpush1.msra.mxu0 %v2183
    %2302 = vmatprep.subr.mxu0 %v2188
    %2303 = vmatpush1.msra.mxu0 %v2187
    %2304 = vmatprep.subr.mxu0 %v2192
    %2305 = vmatpush1.msra.mxu0 %v2191
    %2306 = vmatprep.subr.mxu0 %v2196
    %2307 = vmatpush1.msra.mxu0 %v2195
    %2308 = vmatprep.subr.mxu0 %v2200
    %2309 = vmatpush1.msra.mxu0 %v2199
    %2310 = vmatprep.subr.mxu0 %v2204
    %2311 = vmatpush1.msra.mxu0 %v2203
    %2312 = vmatprep.subr.mxu0 %v2208
    %2313 = vmatpush1.msra.mxu0 %v2207
    %2314 = vmatprep.subr.mxu0 %v2212
    %2315 = vmatpush1.msra.mxu0 %v2211
    %2316 = vmatprep.subr.mxu0 %v2216
    %2317 = vmatpush1.msra.mxu0 %v2215
    %2318 = vmatprep.subr.mxu0 %v2220
    %2319 = vmatpush1.msra.mxu0 %v2219
    %2320 = vmatprep.mubr.f32.mxu0 %v2232
    %2321 = vmatmul.mubr.f32.gmra.mrb[0].mxu0 %v2228
    %v2322 = vpop.f32.mrb[0].mxu0
    %v2323 = vadd.f32 %v2239, %v2322
    %v2324 = vpop.f32.mrb[0].mxu0
    %v2325 = vadd.f32 %v2243, %v2324
    %2326 = vdwg.mxu0
    %2327 = vmatprep.subr.mxu0 %v2098
    %2328 = vmatpush1.msra.mxu0 %v2097
    %2329 = vmatprep.subr.mxu0 %v2102
    %2330 = vmatpush1.msra.mxu0 %v2101
    %2331 = vmatprep.subr.mxu0 %v2106
    %2332 = vmatpush1.msra.mxu0 %v2105
    %2333 = vmatprep.subr.mxu0 %v2110
    %2334 = vmatpush1.msra.mxu0 %v2109
    %2335 = vmatprep.subr.mxu0 %v2114
    %2336 = vmatpush1.msra.mxu0 %v2113
    %2337 = vmatprep.subr.mxu0 %v2118
    %2338 = vmatpush1.msra.mxu0 %v2117
    %2339 = vmatprep.subr.mxu0 %v2122
    %2340 = vmatpush1.msra.mxu0 %v2121
    %2341 = vmatprep.subr.mxu0 %v2126
    %2342 = vmatpush1.msra.mxu0 %v2125
    %2343 = vmatprep.subr.mxu0 %v2130
    %2344 = vmatpush1.msra.mxu0 %v2129
    %2345 = vmatprep.subr.mxu0 %v2134
    %2346 = vmatpush1.msra.mxu0 %v2133
    %2347 = vmatprep.subr.mxu0 %v2138
    %2348 = vmatpush1.msra.mxu0 %v2137
    %2349 = vmatprep.subr.mxu0 %v2142
    %2350 = vmatpush1.msra.mxu0 %v2141
    %2351 = vmatprep.subr.mxu0 %v2146
    %2352 = vmatpush1.msra.mxu0 %v2145
    %2353 = vmatprep.subr.mxu0 %v2150
    %2354 = vmatpush1.msra.mxu0 %v2149
    %2355 = vmatprep.subr.mxu0 %v2154
    %2356 = vmatpush1.msra.mxu0 %v2153
    %2357 = vmatprep.subr.mxu0 %v2158
    %2358 = vmatpush1.msra.mxu0 %v2157
    %2359 = vmatprep.subr.mxu0 %v2162
    %2360 = vmatpush1.msra.mxu0 %v2161
    %2361 = vmatprep.subr.mxu0 %v2166
    %2362 = vmatpush1.msra.mxu0 %v2165
    %2363 = vmatprep.subr.mxu0 %v2170
    %2364 = vmatpush1.msra.mxu0 %v2169
    %2365 = vmatprep.subr.mxu0 %v2174
    %2366 = vmatpush1.msra.mxu0 %v2173
    %2367 = vmatprep.subr.mxu0 %v2178
    %2368 = vmatpush1.msra.mxu0 %v2177
    %2369 = vmatprep.subr.mxu0 %v2182
    %2370 = vmatpush1.msra.mxu0 %v2181
    %2371 = vmatprep.subr.mxu0 %v2186
    %2372 = vmatpush1.msra.mxu0 %v2185
    %2373 = vmatprep.subr.mxu0 %v2190
    %2374 = vmatpush1.msra.mxu0 %v2189
    %2375 = vmatprep.subr.mxu0 %v2194
    %2376 = vmatpush1.msra.mxu0 %v2193
    %2377 = vmatprep.subr.mxu0 %v2198
    %2378 = vmatpush1.msra.mxu0 %v2197
    %2379 = vmatprep.subr.mxu0 %v2202
    %2380 = vmatpush1.msra.mxu0 %v2201
    %2381 = vmatprep.subr.mxu0 %v2206
    %2382 = vmatpush1.msra.mxu0 %v2205
    %2383 = vmatprep.subr.mxu0 %v2210
    %2384 = vmatpush1.msra.mxu0 %v2209
    %2385 = vmatprep.subr.mxu0 %v2214
    %2386 = vmatpush1.msra.mxu0 %v2213
    %2387 = vmatprep.subr.mxu0 %v2218
    %2388 = vmatpush1.msra.mxu0 %v2217
    %2389 = vmatprep.subr.mxu0 %v2222
    %2390 = vmatpush1.msra.mxu0 %v2221
    %2391 = vmatprep.mubr.f32.mxu0 %v2232
    %2392 = vmatmul.mubr.f32.gmra.mrb[0].mxu0 %v2228
    %v2393 = vpop.f32.mrb[0].mxu0
    %v2394 = vadd.f32 %v2247, %v2393
    %v2395 = vpop.f32.mrb[0].mxu0
    %v2396 = vadd.f32 %v2251, %v2395
    %2397 = vdwg.mxu0
    %v2398 = vxor.u32 %v2323, 2147483648
    %v2399 = vmul.f32 %v2398, 1.442695
    %v2400 = vpow.pop %v2399
    %v2401 = vadd.f32 %v2400, 1.0
    %v2402 = vrcp.pop %v2401
    %v2403 = vmul.f32 1.0, %v2402
    %v2404 = vxor.u32 %v2325, 2147483648
    %v2405 = vmul.f32 %v2404, 1.442695
    %v2406 = vpow.pop %v2405
    %v2407 = vadd.f32 %v2406, 1.0
    %v2408 = vrcp.pop %v2407
    %v2409 = vmul.f32 1.0, %v2408
    %v2410 = vtanh.pop %v2394
    %v2411 = vxor.u32 %v2396, 2147483648
    %v2412 = vmul.f32 %v2411, 1.442695
    %v2413 = vpow.pop %v2412
    %v2414 = vadd.f32 %v2413, 1.0
    %v2415 = vrcp.pop %v2414
    %v2416 = vmul.f32 1.0, %v2415
    %v2417 = vld [vmem:[#allocation4] sm:$0x1]
    %v2418 = vmul.f32 %v2409, %v2417
    %v2419 = vmul.f32 %v2403, %v2410
    %v2420 = vadd.f32 %v2418, %v2419
    %v2421 = vtanh.pop %v2420
    %v2422 = vmul.f32 %v2416, %v2421
    %2423 = vst [vmem:[#allocation4] sm:$0x1] %v2420
    %2424 = vst.msk [vmem:[#allocation2 + $0x1] sm:$0x1] %vm70, %v2422
    %2425 = vst [vmem:[#allocation3 + $0x6] sm:$0x1] %v2422
    %s2426 = sld [smem:[#allocation6 + $0x7]]
    %s2427 = scalar_lea.vmem %s1, %s2426
    %v2428 = vld [vmem:[%s2427] sm:$0x1]
    %2429 = vst.msk [vmem:[#allocation2] sm:$0x1] %vm70, %v2428
    %v2430 = vld [vmem:[#allocation2] sm:$0x3]
    %v2431 = vld [vmem:[#allocation7] sm:$0xff]
    %v2432 = vld [vmem:[#allocation7 + $0x8] sm:$0xff]
    %v2433 = vld [vmem:[#allocation7 + $0x10] sm:$0xff]
    %v2434 = vld [vmem:[#allocation7 + $0x18] sm:$0xff]
    %v2435 = vld [vmem:[#allocation7 + $0x20] sm:$0xff]
    %v2436 = vld [vmem:[#allocation7 + $0x28] sm:$0xff]
    %v2437 = vld [vmem:[#allocation7 + $0x30] sm:$0xff]
    %v2438 = vld [vmem:[#allocation7 + $0x38] sm:$0xff]
    %v2439 = vld [vmem:[#allocation7 + $0x40] sm:$0xff]
    %v2440 = vld [vmem:[#allocation7 + $0x48] sm:$0xff]
    %v2441 = vld [vmem:[#allocation7 + $0x50] sm:$0xff]
    %v2442 = vld [vmem:[#allocation7 + $0x58] sm:$0xff]
    %v2443 = vld [vmem:[#allocation7 + $0x60] sm:$0xff]
    %v2444 = vld [vmem:[#allocation7 + $0x68] sm:$0xff]
    %v2445 = vld [vmem:[#allocation7 + $0x70] sm:$0xff]
    %v2446 = vld [vmem:[#allocation7 + $0x78] sm:$0xff]
    %v2447 = vld [vmem:[#allocation7 + $0x80] sm:$0xff]
    %v2448 = vld [vmem:[#allocation7 + $0x88] sm:$0xff]
    %v2449 = vld [vmem:[#allocation7 + $0x90] sm:$0xff]
    %v2450 = vld [vmem:[#allocation7 + $0x98] sm:$0xff]
    %v2451 = vld [vmem:[#allocation7 + $0xa0] sm:$0xff]
    %v2452 = vld [vmem:[#allocation7 + $0xa8] sm:$0xff]
    %v2453 = vld [vmem:[#allocation7 + $0xb0] sm:$0xff]
    %v2454 = vld [vmem:[#allocation7 + $0xb8] sm:$0xff]
    %v2455 = vld [vmem:[#allocation7 + $0xc0] sm:$0xff]
    %v2456 = vld [vmem:[#allocation7 + $0xc8] sm:$0xff]
    %v2457 = vld [vmem:[#allocation7 + $0xd0] sm:$0xff]
    %v2458 = vld [vmem:[#allocation7 + $0xd8] sm:$0xff]
    %v2459 = vld [vmem:[#allocation7 + $0xe0] sm:$0xff]
    %v2460 = vld [vmem:[#allocation7 + $0xe8] sm:$0xff]
    %v2461 = vld [vmem:[#allocation7 + $0xf0] sm:$0xff]
    %v2462 = vld [vmem:[#allocation7 + $0xf8] sm:$0xff]
    %v2463 = vld [vmem:[#allocation7 + $0x100] sm:$0xff]
    %v2464 = vld [vmem:[#allocation7 + $0x108] sm:$0xff]
    %v2465 = vld [vmem:[#allocation7 + $0x110] sm:$0xff]
    %v2466 = vld [vmem:[#allocation7 + $0x118] sm:$0xff]
    %v2467 = vld [vmem:[#allocation7 + $0x120] sm:$0xff]
    %v2468 = vld [vmem:[#allocation7 + $0x128] sm:$0xff]
    %v2469 = vld [vmem:[#allocation7 + $0x130] sm:$0xff]
    %v2470 = vld [vmem:[#allocation7 + $0x138] sm:$0xff]
    %v2471 = vld [vmem:[#allocation7 + $0x140] sm:$0xff]
    %v2472 = vld [vmem:[#allocation7 + $0x148] sm:$0xff]
    %v2473 = vld [vmem:[#allocation7 + $0x150] sm:$0xff]
    %v2474 = vld [vmem:[#allocation7 + $0x158] sm:$0xff]
    %v2475 = vld [vmem:[#allocation7 + $0x160] sm:$0xff]
    %v2476 = vld [vmem:[#allocation7 + $0x168] sm:$0xff]
    %v2477 = vld [vmem:[#allocation7 + $0x170] sm:$0xff]
    %v2478 = vld [vmem:[#allocation7 + $0x178] sm:$0xff]
    %v2479 = vld [vmem:[#allocation7 + $0x180] sm:$0xff]
    %v2480 = vld [vmem:[#allocation7 + $0x188] sm:$0xff]
    %v2481 = vld [vmem:[#allocation7 + $0x190] sm:$0xff]
    %v2482 = vld [vmem:[#allocation7 + $0x198] sm:$0xff]
    %v2483 = vld [vmem:[#allocation7 + $0x1a0] sm:$0xff]
    %v2484 = vld [vmem:[#allocation7 + $0x1a8] sm:$0xff]
    %v2485 = vld [vmem:[#allocation7 + $0x1b0] sm:$0xff]
    %v2486 = vld [vmem:[#allocation7 + $0x1b8] sm:$0xff]
    %v2487 = vld [vmem:[#allocation7 + $0x1c0] sm:$0xff]
    %v2488 = vld [vmem:[#allocation7 + $0x1c8] sm:$0xff]
    %v2489 = vld [vmem:[#allocation7 + $0x1d0] sm:$0xff]
    %v2490 = vld [vmem:[#allocation7 + $0x1d8] sm:$0xff]
    %v2491 = vld [vmem:[#allocation7 + $0x1e0] sm:$0xff]
    %v2492 = vld [vmem:[#allocation7 + $0x1e8] sm:$0xff]
    %v2493 = vld [vmem:[#allocation7 + $0x1f0] sm:$0xff]
    %v2494 = vld [vmem:[#allocation7 + $0x1f8] sm:$0xff]
    %v2495 = vld [vmem:[#allocation7 + $0x200] sm:$0xff]
    %v2496 = vld [vmem:[#allocation7 + $0x208] sm:$0xff]
    %v2497 = vld [vmem:[#allocation7 + $0x210] sm:$0xff]
    %v2498 = vld [vmem:[#allocation7 + $0x218] sm:$0xff]
    %v2499 = vld [vmem:[#allocation7 + $0x220] sm:$0xff]
    %v2500 = vld [vmem:[#allocation7 + $0x228] sm:$0xff]
    %v2501 = vld [vmem:[#allocation7 + $0x230] sm:$0xff]
    %v2502 = vld [vmem:[#allocation7 + $0x238] sm:$0xff]
    %v2503 = vld [vmem:[#allocation7 + $0x240] sm:$0xff]
    %v2504 = vld [vmem:[#allocation7 + $0x248] sm:$0xff]
    %v2505 = vld [vmem:[#allocation7 + $0x250] sm:$0xff]
    %v2506 = vld [vmem:[#allocation7 + $0x258] sm:$0xff]
    %v2507 = vld [vmem:[#allocation7 + $0x260] sm:$0xff]
    %v2508 = vld [vmem:[#allocation7 + $0x268] sm:$0xff]
    %v2509 = vld [vmem:[#allocation7 + $0x270] sm:$0xff]
    %v2510 = vld [vmem:[#allocation7 + $0x278] sm:$0xff]
    %v2511 = vld [vmem:[#allocation7 + $0x280] sm:$0xff]
    %v2512 = vld [vmem:[#allocation7 + $0x288] sm:$0xff]
    %v2513 = vld [vmem:[#allocation7 + $0x290] sm:$0xff]
    %v2514 = vld [vmem:[#allocation7 + $0x298] sm:$0xff]
    %v2515 = vld [vmem:[#allocation7 + $0x2a0] sm:$0xff]
    %v2516 = vld [vmem:[#allocation7 + $0x2a8] sm:$0xff]
    %v2517 = vld [vmem:[#allocation7 + $0x2b0] sm:$0xff]
    %v2518 = vld [vmem:[#allocation7 + $0x2b8] sm:$0xff]
    %v2519 = vld [vmem:[#allocation7 + $0x2c0] sm:$0xff]
    %v2520 = vld [vmem:[#allocation7 + $0x2c8] sm:$0xff]
    %v2521 = vld [vmem:[#allocation7 + $0x2d0] sm:$0xff]
    %v2522 = vld [vmem:[#allocation7 + $0x2d8] sm:$0xff]
    %v2523 = vld [vmem:[#allocation7 + $0x2e0] sm:$0xff]
    %v2524 = vld [vmem:[#allocation7 + $0x2e8] sm:$0xff]
    %v2525 = vld [vmem:[#allocation7 + $0x2f0] sm:$0xff]
    %v2526 = vld [vmem:[#allocation7 + $0x2f8] sm:$0xff]
    %v2527 = vld [vmem:[#allocation7 + $0x300] sm:$0xff]
    %v2528 = vld [vmem:[#allocation7 + $0x308] sm:$0xff]
    %v2529 = vld [vmem:[#allocation7 + $0x310] sm:$0xff]
    %v2530 = vld [vmem:[#allocation7 + $0x318] sm:$0xff]
    %v2531 = vld [vmem:[#allocation7 + $0x320] sm:$0xff]
    %v2532 = vld [vmem:[#allocation7 + $0x328] sm:$0xff]
    %v2533 = vld [vmem:[#allocation7 + $0x330] sm:$0xff]
    %v2534 = vld [vmem:[#allocation7 + $0x338] sm:$0xff]
    %v2535 = vld [vmem:[#allocation7 + $0x340] sm:$0xff]
    %v2536 = vld [vmem:[#allocation7 + $0x348] sm:$0xff]
    %v2537 = vld [vmem:[#allocation7 + $0x350] sm:$0xff]
    %v2538 = vld [vmem:[#allocation7 + $0x358] sm:$0xff]
    %v2539 = vld [vmem:[#allocation7 + $0x360] sm:$0xff]
    %v2540 = vld [vmem:[#allocation7 + $0x368] sm:$0xff]
    %v2541 = vld [vmem:[#allocation7 + $0x370] sm:$0xff]
    %v2542 = vld [vmem:[#allocation7 + $0x378] sm:$0xff]
    %v2543 = vld [vmem:[#allocation7 + $0x380] sm:$0xff]
    %v2544 = vld [vmem:[#allocation7 + $0x388] sm:$0xff]
    %v2545 = vld [vmem:[#allocation7 + $0x390] sm:$0xff]
    %v2546 = vld [vmem:[#allocation7 + $0x398] sm:$0xff]
    %v2547 = vld [vmem:[#allocation7 + $0x3a0] sm:$0xff]
    %v2548 = vld [vmem:[#allocation7 + $0x3a8] sm:$0xff]
    %v2549 = vld [vmem:[#allocation7 + $0x3b0] sm:$0xff]
    %v2550 = vld [vmem:[#allocation7 + $0x3b8] sm:$0xff]
    %v2551 = vld [vmem:[#allocation7 + $0x3c0] sm:$0xff]
    %v2552 = vld [vmem:[#allocation7 + $0x3c8] sm:$0xff]
    %v2553 = vld [vmem:[#allocation7 + $0x3d0] sm:$0xff]
    %v2554 = vld [vmem:[#allocation7 + $0x3d8] sm:$0xff]
    %v2555 = vld [vmem:[#allocation7 + $0x3e0] sm:$0xff]
    %v2556 = vld [vmem:[#allocation7 + $0x3e8] sm:$0xff]
    %v2557 = vld [vmem:[#allocation7 + $0x3f0] sm:$0xff]
    %v2558 = vld [vmem:[#allocation7 + $0x3f8] sm:$0xff]
    %v2559 = vld [vmem:[%s3] sm:$0xf]
    %v2561 = vlaneseq
    %v2562 = vshrl.u32 %v2561, 7
    %v2563 = vsub.s32 0, %v2562
    %v2564 = vrot.slane %v2430, %v2563
    %v2565 = vlaneseq
    %v2566 = vshrl.u32 %v2565, 7
    %v2567 = vsub.s32 1, %v2566
    %v2568 = vrot.slane %v2430, %v2567
    %v2572 = vlaneseq
    %v2573 = vshrl.u32 %v2572, 7
    %v2574 = vsub.s32 0, %v2573
    %v2575 = vrot.slane %v2559, %v2574
    %v2576 = vlaneseq
    %v2577 = vshrl.u32 %v2576, 7
    %v2578 = vsub.s32 1, %v2577
    %v2579 = vrot.slane %v2559, %v2578
    %v2580 = vlaneseq
    %v2581 = vshrl.u32 %v2580, 7
    %v2582 = vsub.s32 2, %v2581
    %v2583 = vrot.slane %v2559, %v2582
    %v2584 = vlaneseq
    %v2585 = vshrl.u32 %v2584, 7
    %v2586 = vsub.s32 3, %v2585
    %v2587 = vrot.slane %v2559, %v2586
    %2592 = vmatprep.subr.mxu0 %v2432
    %2593 = vmatpush1.msra.mxu0 %v2431
    %2594 = vmatprep.subr.mxu0 %v2436
    %2595 = vmatpush1.msra.mxu0 %v2435
    %2596 = vmatprep.subr.mxu0 %v2440
    %2597 = vmatpush1.msra.mxu0 %v2439
    %2598 = vmatprep.subr.mxu0 %v2444
    %2599 = vmatpush1.msra.mxu0 %v2443
    %2600 = vmatprep.subr.mxu0 %v2448
    %2601 = vmatpush1.msra.mxu0 %v2447
    %2602 = vmatprep.subr.mxu0 %v2452
    %2603 = vmatpush1.msra.mxu0 %v2451
    %2604 = vmatprep.subr.mxu0 %v2456
    %2605 = vmatpush1.msra.mxu0 %v2455
    %2606 = vmatprep.subr.mxu0 %v2460
    %2607 = vmatpush1.msra.mxu0 %v2459
    %2608 = vmatprep.subr.mxu0 %v2464
    %2609 = vmatpush1.msra.mxu0 %v2463
    %2610 = vmatprep.subr.mxu0 %v2468
    %2611 = vmatpush1.msra.mxu0 %v2467
    %2612 = vmatprep.subr.mxu0 %v2472
    %2613 = vmatpush1.msra.mxu0 %v2471
    %2614 = vmatprep.subr.mxu0 %v2476
    %2615 = vmatpush1.msra.mxu0 %v2475
    %2616 = vmatprep.subr.mxu0 %v2480
    %2617 = vmatpush1.msra.mxu0 %v2479
    %2618 = vmatprep.subr.mxu0 %v2484
    %2619 = vmatpush1.msra.mxu0 %v2483
    %2620 = vmatprep.subr.mxu0 %v2488
    %2621 = vmatpush1.msra.mxu0 %v2487
    %2622 = vmatprep.subr.mxu0 %v2492
    %2623 = vmatpush1.msra.mxu0 %v2491
    %2624 = vmatprep.subr.mxu0 %v2496
    %2625 = vmatpush1.msra.mxu0 %v2495
    %2626 = vmatprep.subr.mxu0 %v2500
    %2627 = vmatpush1.msra.mxu0 %v2499
    %2628 = vmatprep.subr.mxu0 %v2504
    %2629 = vmatpush1.msra.mxu0 %v2503
    %2630 = vmatprep.subr.mxu0 %v2508
    %2631 = vmatpush1.msra.mxu0 %v2507
    %2632 = vmatprep.subr.mxu0 %v2512
    %2633 = vmatpush1.msra.mxu0 %v2511
    %2634 = vmatprep.subr.mxu0 %v2516
    %2635 = vmatpush1.msra.mxu0 %v2515
    %2636 = vmatprep.subr.mxu0 %v2520
    %2637 = vmatpush1.msra.mxu0 %v2519
    %2638 = vmatprep.subr.mxu0 %v2524
    %2639 = vmatpush1.msra.mxu0 %v2523
    %2640 = vmatprep.subr.mxu0 %v2528
    %2641 = vmatpush1.msra.mxu0 %v2527
    %2642 = vmatprep.subr.mxu0 %v2532
    %2643 = vmatpush1.msra.mxu0 %v2531
    %2644 = vmatprep.subr.mxu0 %v2536
    %2645 = vmatpush1.msra.mxu0 %v2535
    %2646 = vmatprep.subr.mxu0 %v2540
    %2647 = vmatpush1.msra.mxu0 %v2539
    %2648 = vmatprep.subr.mxu0 %v2544
    %2649 = vmatpush1.msra.mxu0 %v2543
    %2650 = vmatprep.subr.mxu0 %v2548
    %2651 = vmatpush1.msra.mxu0 %v2547
    %2652 = vmatprep.subr.mxu0 %v2552
    %2653 = vmatpush1.msra.mxu0 %v2551
    %2654 = vmatprep.subr.mxu0 %v2556
    %2655 = vmatpush1.msra.mxu0 %v2555
    %2656 = vmatprep.mubr.f32.mxu0 %v2568
    %2657 = vmatmul.mubr.f32.gmra.mrb[0].mxu0 %v2564
    %v2658 = vpop.f32.mrb[0].mxu0
    %v2659 = vadd.f32 %v2575, %v2658
    %v2660 = vpop.f32.mrb[0].mxu0
    %v2661 = vadd.f32 %v2579, %v2660
    %2662 = vdwg.mxu0
    %2663 = vmatprep.subr.mxu0 %v2434
    %2664 = vmatpush1.msra.mxu0 %v2433
    %2665 = vmatprep.subr.mxu0 %v2438
    %2666 = vmatpush1.msra.mxu0 %v2437
    %2667 = vmatprep.subr.mxu0 %v2442
    %2668 = vmatpush1.msra.mxu0 %v2441
    %2669 = vmatprep.subr.mxu0 %v2446
    %2670 = vmatpush1.msra.mxu0 %v2445
    %2671 = vmatprep.subr.mxu0 %v2450
    %2672 = vmatpush1.msra.mxu0 %v2449
    %2673 = vmatprep.subr.mxu0 %v2454
    %2674 = vmatpush1.msra.mxu0 %v2453
    %2675 = vmatprep.subr.mxu0 %v2458
    %2676 = vmatpush1.msra.mxu0 %v2457
    %2677 = vmatprep.subr.mxu0 %v2462
    %2678 = vmatpush1.msra.mxu0 %v2461
    %2679 = vmatprep.subr.mxu0 %v2466
    %2680 = vmatpush1.msra.mxu0 %v2465
    %2681 = vmatprep.subr.mxu0 %v2470
    %2682 = vmatpush1.msra.mxu0 %v2469
    %2683 = vmatprep.subr.mxu0 %v2474
    %2684 = vmatpush1.msra.mxu0 %v2473
    %2685 = vmatprep.subr.mxu0 %v2478
    %2686 = vmatpush1.msra.mxu0 %v2477
    %2687 = vmatprep.subr.mxu0 %v2482
    %2688 = vmatpush1.msra.mxu0 %v2481
    %2689 = vmatprep.subr.mxu0 %v2486
    %2690 = vmatpush1.msra.mxu0 %v2485
    %2691 = vmatprep.subr.mxu0 %v2490
    %2692 = vmatpush1.msra.mxu0 %v2489
    %2693 = vmatprep.subr.mxu0 %v2494
    %2694 = vmatpush1.msra.mxu0 %v2493
    %2695 = vmatprep.subr.mxu0 %v2498
    %2696 = vmatpush1.msra.mxu0 %v2497
    %2697 = vmatprep.subr.mxu0 %v2502
    %2698 = vmatpush1.msra.mxu0 %v2501
    %2699 = vmatprep.subr.mxu0 %v2506
    %2700 = vmatpush1.msra.mxu0 %v2505
    %2701 = vmatprep.subr.mxu0 %v2510
    %2702 = vmatpush1.msra.mxu0 %v2509
    %2703 = vmatprep.subr.mxu0 %v2514
    %2704 = vmatpush1.msra.mxu0 %v2513
    %2705 = vmatprep.subr.mxu0 %v2518
    %2706 = vmatpush1.msra.mxu0 %v2517
    %2707 = vmatprep.subr.mxu0 %v2522
    %2708 = vmatpush1.msra.mxu0 %v2521
    %2709 = vmatprep.subr.mxu0 %v2526
    %2710 = vmatpush1.msra.mxu0 %v2525
    %2711 = vmatprep.subr.mxu0 %v2530
    %2712 = vmatpush1.msra.mxu0 %v2529
    %2713 = vmatprep.subr.mxu0 %v2534
    %2714 = vmatpush1.msra.mxu0 %v2533
    %2715 = vmatprep.subr.mxu0 %v2538
    %2716 = vmatpush1.msra.mxu0 %v2537
    %2717 = vmatprep.subr.mxu0 %v2542
    %2718 = vmatpush1.msra.mxu0 %v2541
    %2719 = vmatprep.subr.mxu0 %v2546
    %2720 = vmatpush1.msra.mxu0 %v2545
    %2721 = vmatprep.subr.mxu0 %v2550
    %2722 = vmatpush1.msra.mxu0 %v2549
    %2723 = vmatprep.subr.mxu0 %v2554
    %2724 = vmatpush1.msra.mxu0 %v2553
    %2725 = vmatprep.subr.mxu0 %v2558
    %2726 = vmatpush1.msra.mxu0 %v2557
    %2727 = vmatprep.mubr.f32.mxu0 %v2568
    %2728 = vmatmul.mubr.f32.gmra.mrb[0].mxu0 %v2564
    %v2729 = vpop.f32.mrb[0].mxu0
    %v2730 = vadd.f32 %v2583, %v2729
    %v2731 = vpop.f32.mrb[0].mxu0
    %v2732 = vadd.f32 %v2587, %v2731
    %2733 = vdwg.mxu0
    %v2734 = vxor.u32 %v2659, 2147483648
    %v2735 = vmul.f32 %v2734, 1.442695
    %v2736 = vpow.pop %v2735
    %v2737 = vadd.f32 %v2736, 1.0
    %v2738 = vrcp.pop %v2737
    %v2739 = vmul.f32 1.0, %v2738
    %v2740 = vxor.u32 %v2661, 2147483648
    %v2741 = vmul.f32 %v2740, 1.442695
    %v2742 = vpow.pop %v2741
    %v2743 = vadd.f32 %v2742, 1.0
    %v2744 = vrcp.pop %v2743
    %v2745 = vmul.f32 1.0, %v2744
    %v2746 = vtanh.pop %v2730
    %v2747 = vxor.u32 %v2732, 2147483648
    %v2748 = vmul.f32 %v2747, 1.442695
    %v2749 = vpow.pop %v2748
    %v2750 = vadd.f32 %v2749, 1.0
    %v2751 = vrcp.pop %v2750
    %v2752 = vmul.f32 1.0, %v2751
    %v2753 = vld [vmem:[#allocation4] sm:$0x1]
    %v2754 = vmul.f32 %v2745, %v2753
    %v2755 = vmul.f32 %v2739, %v2746
    %v2756 = vadd.f32 %v2754, %v2755
    %v2757 = vtanh.pop %v2756
    %v2758 = vmul.f32 %v2752, %v2757
    %2759 = vst [vmem:[#allocation4] sm:$0x1] %v2756
    %2760 = vst.msk [vmem:[#allocation2 + $0x1] sm:$0x1] %vm70, %v2758
    %2761 = vst [vmem:[#allocation3 + $0x7] sm:$0x1] %v2758
    %v2762 = vld [vmem:[#allocation3] sm:$0xff]
    %v2763 = vld [vmem:[#allocation10] sm:$0xff]
    %v2764 = vld [vmem:[#allocation10 + $0x8] sm:$0xff]
    %v2765 = vld [vmem:[#allocation10 + $0x10] sm:$0xff]
    %v2766 = vld [vmem:[#allocation10 + $0x18] sm:$0xff]
    %v2767 = vld [vmem:[#allocation10 + $0x20] sm:$0xff]
    %v2768 = vld [vmem:[#allocation10 + $0x28] sm:$0xff]
    %v2769 = vld [vmem:[#allocation10 + $0x30] sm:$0xff]
    %v2770 = vld [vmem:[#allocation10 + $0x38] sm:$0xff]
    %v2771 = vld [vmem:[#allocation10 + $0x40] sm:$0xff]
    %v2772 = vld [vmem:[#allocation10 + $0x48] sm:$0xff]
    %v2773 = vld [vmem:[#allocation10 + $0x50] sm:$0xff]
    %v2774 = vld [vmem:[#allocation10 + $0x58] sm:$0xff]
    %v2775 = vld [vmem:[#allocation10 + $0x60] sm:$0xff]
    %v2776 = vld [vmem:[#allocation10 + $0x68] sm:$0xff]
    %v2777 = vld [vmem:[#allocation10 + $0x70] sm:$0xff]
    %v2778 = vld [vmem:[#allocation10 + $0x78] sm:$0xff]
    %v2779 = vld [vmem:[%s5] sm:$0x1]
    %v2781 = vlaneseq
    %v2782 = vshrl.u32 %v2781, 7
    %v2783 = vsub.s32 0, %v2782
    %v2784 = vrot.slane %v2779, %v2783
    %2786 = vmatprep.subr.mxu0 0.0
    %2787 = vmatpush1.msra.mxu0 %v2763
    %2788 = vmatprep.subr.mxu0 0.0
    %2789 = vmatpush1.msra.mxu0 %v2764
    %2790 = vmatprep.subr.mxu0 0.0
    %2791 = vmatpush1.msra.mxu0 %v2765
    %2792 = vmatprep.subr.mxu0 0.0
    %2793 = vmatpush1.msra.mxu0 %v2766
    %2794 = vmatprep.subr.mxu0 0.0
    %2795 = vmatpush1.msra.mxu0 %v2767
    %2796 = vmatprep.subr.mxu0 0.0
    %2797 = vmatpush1.msra.mxu0 %v2768
    %2798 = vmatprep.subr.mxu0 0.0
    %2799 = vmatpush1.msra.mxu0 %v2769
    %2800 = vmatprep.subr.mxu0 0.0
    %2801 = vmatpush1.msra.mxu0 %v2770
    %2802 = vmatprep.subr.mxu0 0.0
    %2803 = vmatpush1.msra.mxu0 %v2771
    %2804 = vmatprep.subr.mxu0 0.0
    %2805 = vmatpush1.msra.mxu0 %v2772
    %2806 = vmatprep.subr.mxu0 0.0
    %2807 = vmatpush1.msra.mxu0 %v2773
    %2808 = vmatprep.subr.mxu0 0.0
    %2809 = vmatpush1.msra.mxu0 %v2774
    %2810 = vmatprep.subr.mxu0 0.0
    %2811 = vmatpush1.msra.mxu0 %v2775
    %2812 = vmatprep.subr.mxu0 0.0
    %2813 = vmatpush1.msra.mxu0 %v2776
    %2814 = vmatprep.subr.mxu0 0.0
    %2815 = vmatpush1.msra.mxu0 %v2777
    %2816 = vmatprep.subr.mxu0 0.0
    %2817 = vmatpush1.msra.mxu0 %v2778
    %2818 = vmatprep.subr.mxu0 0.0
    %2819 = vmatpush1.msra.mxu0 0.0
    %2820 = vmatprep.subr.mxu0 0.0
    %2821 = vmatpush1.msra.mxu0 0.0
    %2822 = vmatprep.subr.mxu0 0.0
    %2823 = vmatpush1.msra.mxu0 0.0
    %2824 = vmatprep.subr.mxu0 0.0
    %2825 = vmatpush1.msra.mxu0 0.0
    %2826 = vmatprep.subr.mxu0 0.0
    %2827 = vmatpush1.msra.mxu0 0.0
    %2828 = vmatprep.subr.mxu0 0.0
    %2829 = vmatpush1.msra.mxu0 0.0
    %2830 = vmatprep.subr.mxu0 0.0
    %2831 = vmatpush1.msra.mxu0 0.0
    %2832 = vmatprep.subr.mxu0 0.0
    %2833 = vmatpush1.msra.mxu0 0.0
    %2834 = vmatprep.subr.mxu0 0.0
    %2835 = vmatpush1.msra.mxu0 0.0
    %2836 = vmatprep.subr.mxu0 0.0
    %2837 = vmatpush1.msra.mxu0 0.0
    %2838 = vmatprep.subr.mxu0 0.0
    %2839 = vmatpush1.msra.mxu0 0.0
    %2840 = vmatprep.subr.mxu0 0.0
    %2841 = vmatpush1.msra.mxu0 0.0
    %2842 = vmatprep.subr.mxu0 0.0
    %2843 = vmatpush1.msra.mxu0 0.0
    %2844 = vmatprep.subr.mxu0 0.0
    %2845 = vmatpush1.msra.mxu0 0.0
    %2846 = vmatprep.subr.mxu0 0.0
    %2847 = vmatpush1.msra.mxu0 0.0
    %2848 = vmatprep.subr.mxu0 0.0
    %2849 = vmatpush1.msra.mxu0 0.0
    %2850 = vmatprep.mubr.f32.mxu0 0.0
    %2851 = vmatmul.mubr.f32.gmra.mrb[0].mxu0 %v2762
    %v2852 = vpop.f32.mrb[0].mxu0
    %v2853 = vadd.f32 %v2784, %v2852
    %v2854 = vpop.f32.mrb[0].mxu0
    %2855 = vdwg.mxu0
    %2856 = vst [vmem:[#allocation12] sm:$0xff] %v2853
    %v2857 = vld [vmem:[#allocation2 + $0x1] sm:$0x1]
    %2858 = vst [vmem:[%s9] sm:$0x1] %v2857
    %v2859 = vld [vmem:[#allocation4] sm:$0x1]
    %2860 = vst [vmem:[%s10] sm:$0x1] %v2859
    // Predicated region
    $region38: #{rnnet_forward_seq.1} parent=1 // pred_check
      _
    $region39: #{rnnet_forward_seq.1} parent=1 // pred_check_branch
      %2862 = sbr.rel (0) target = $region41
    $region40: #{rnnet_forward_seq.1} parent=1 // pred_region
      %s2864 = ssub.s32 128, 128
      %2865 = vsyncadd [#allocation9], %s2864
      %s2867 = sshll.u32 [#allocation12], 4
      %s2868 = int_to_ptr.vmem [resolvable:$true] %s2867
      %2870 = dma.vmem_to_hbm [thread:$0]  %s2868, 128, %s8, [#allocation9]
    $region41: #{rnnet_forward_seq.1} parent=1 // pred_fallthru
      _
    // Predicated region
    $region42: #{rnnet_forward_seq.1} parent=1 // pred_check
      _
    $region43: #{rnnet_forward_seq.1} parent=1 // pred_check_branch
      %2872 = sbr.rel (0) target = $region45
    $region44: #{rnnet_forward_seq.1} parent=1 // pred_region
      _
    $region45: #{rnnet_forward_seq.1} parent=1 // pred_fallthru
      _
    // Predicated region
    $region46: #{rnnet_forward_seq.1} parent=1 // pred_check
      _
    $region47: #{rnnet_forward_seq.1} parent=1 // pred_check_branch
      %2874 = sbr.rel (0) target = $region49
    $region48: #{rnnet_forward_seq.1} parent=1 // pred_region
      _
    $region49: #{rnnet_forward_seq.1} parent=1 // pred_fallthru
      _
    // Predicated region
    $region50: #{rnnet_forward_seq.1} parent=1 // pred_check
      _
    $region51: #{rnnet_forward_seq.1} parent=1 // pred_check_branch
      %2876 = sbr.rel (0) target = $region53
    $region52: #{rnnet_forward_seq.1} parent=1 // pred_region
      %2877 = dma.done [#allocation9], 128
    $region53: #{rnnet_forward_seq.1} parent=1 // pred_fallthru
      _
    // Predicated region
    $region54: #{rnnet_forward_seq.1} parent=1 // pred_check
      _
    $region55: #{rnnet_forward_seq.1} parent=1 // pred_check_branch
      %2879 = sbr.rel (0) target = $region57
    $region56: #{rnnet_forward_seq.1} parent=1 // pred_region
      _
    $region57: #{rnnet_forward_seq.1} parent=1 // pred_fallthru
      _
    // Predicated region
    $region58: #{rnnet_forward_seq.1} parent=1 // pred_check
      _
    $region59: #{rnnet_forward_seq.1} parent=1 // pred_check_branch
      %2881 = sbr.rel (0) target = $region61
    $region60: #{rnnet_forward_seq.1} parent=1 // pred_region
      _
    $region61: #{rnnet_forward_seq.1} parent=1 // pred_fallthru
      _
    %2882 = vsyncpa [#allocation8], 1
    %2883 = vsyncpa [#allocation11], 1
    %2884 = vsyncpa [#allocation9], 1

</llo_original>
